<compile_context>
chip_gen: v5e
topology: v5e:2x2
jax: 0.10.0
libtpu: 0.0.40
codegen_flags: <defaults>
</compile_context>

<pallas_src>
import jax
import jax.numpy as jnp
from jax.experimental import pallas as pl
from jax.experimental.pallas import tpu as pltpu

K_RAW = 23            # real input feature count
K_PAD = 32            # padded to a multiple of 8 sublanes
N_ACT = 23 * 128      # 2944 front-end activation width


# ---------------------------------------------------------------------------
# Pallas kernel: full forward pass for one batch tile.
# ---------------------------------------------------------------------------
def _net_kernel(x_ref, wbig_ref, bbig_ref, w2_ref, b2_ref,
                w3_ref, b3_ref, w4_ref, b4_ref, wp_ref, bp_ref, o_ref):
    f32 = jnp.float32
    bf16 = jnp.bfloat16

    # Front end: all 7 branches as one matmul (bf16 operands, f32 accum).
    xb = x_ref[...].astype(bf16)                                  # (BT, 32)
    act = jnp.dot(xb, wbig_ref[...], preferred_element_type=f32)  # (BT, 2944)
    act = jnp.maximum(act + bbig_ref[...], 0.0)

    # hidden2 (K = 2944 single large dot), hidden3, hidden4.
    h2 = jnp.dot(act.astype(bf16), w2_ref[...], preferred_element_type=f32)
    h2 = jnp.maximum(h2 + b2_ref[...], 0.0)                       # (BT, 256)
    h3 = jnp.maximum(
        jnp.dot(h2, w3_ref[...], preferred_element_type=f32) + b3_ref[...], 0.0)
    h4 = jnp.maximum(
        jnp.dot(h3, w4_ref[...], preferred_element_type=f32) + b4_ref[...], 0.0)

    # predict: Linear(128, 1) as VPU mul + lane reduction (avoid N=1 matmul).
    out = jnp.sum(h4 * wp_ref[...], axis=-1, keepdims=True) + bp_ref[...]
    o_ref[...] = out.astype(o_ref.dtype)


def _resident_spec(shape):
    """Full-array block, constant index map -> stays VMEM-resident."""
    nd = len(shape)
    return pl.BlockSpec(shape, lambda i, nd=nd: (0,) * nd)


# ---------------------------------------------------------------------------
# Glue: fold the front end into one big weight, repack hidden2, pallas_call.
# ---------------------------------------------------------------------------
def _kernel_params(raw):
    f32 = jnp.float32

    # --- fold 3x Linear(1,128) and 4x Conv1d(1,128,3,pad=1) into (K_PAD, 2944)
    wbig = jnp.zeros((K_PAD, N_ACT), f32)
    bbig = jnp.zeros((1, N_ACT), f32)
    for k in range(3):
        c0 = k * 128
        wbig = wbig.at[k, c0:c0 + 128].set(raw[f"w_h1_{k}"][:, 0])
        bbig = bbig.at[0, c0:c0 + 128].set(raw[f"b_h1_{k}"])
    for j in range(4):
        wj = raw[f"w_conv{j}"][:, 0, :]          # (128, 3)
        bj = raw[f"b_conv{j}"]                   # (128,)
        for t in range(5):
            c0 = 384 + (j * 5 + t) * 128         # timestep-major activation block
            bbig = bbig.at[0, c0:c0 + 128].set(bj)
            for d in range(3):
                o = t + d - 1                    # position in the unpadded segment
                if 0 <= o <= 4:
                    wbig = wbig.at[3 + 5 * j + o, c0:c0 + 128].add(wj[:, d])

    # --- permute hidden2 rows to match the activation layout above ----------
    # PyTorch x8 layout for conv j: row 384 + j*640 + c*5 + t (channel-major).
    # Kernel activation layout:      col 384 + (j*5 + t)*128 + c.
    w2t = raw["w_h2"].T                                            # (2944, 256)
    blocks = [w2t[:384]]
    for j in range(4):
        blk = w2t[384 + j * 640: 384 + (j + 1) * 640].reshape(128, 5, 256)
        blocks.append(blk.transpose(1, 0, 2).reshape(640, 256))    # [t*128 + c]
    w2p = jnp.concatenate(blocks, axis=0)                          # (2944, 256)

    return dict(
        wbig=wbig.astype(jnp.bfloat16),
        bbig=bbig,
        w2=w2p.astype(jnp.bfloat16),
        b2=raw["b_h2"].reshape(1, 256),
        w3=raw["w_h3"].T, b3=raw["b_h3"].reshape(1, 128),
        w4=raw["w_h4"].T, b4=raw["b_h4"].reshape(1, 128),
        wp=raw["w_pred"].reshape(1, 128),
        bp=raw["b_pred"].reshape(1, 1),
    )


def _round_up(a, m):
    return ((a + m - 1) // m) * m


def net_forward_pallas(x, raw):
    B = x.shape[0]
    kp = _kernel_params(raw)

    # Batch tiling: one tile for small batches, 256-row tiles for large ones.
    BT = 256 if B > 256 else _round_up(max(B, 1), 8)
    Bp = _round_up(B, BT)
    nb = Bp // BT

    # Pad batch rows and feature columns (padded features hit zero weights).
    x_pad = jnp.zeros((Bp, K_PAD), jnp.float32).at[:B, :K_RAW].set(x)

    weights = (kp["wbig"], kp["bbig"], kp["w2"], kp["b2"],
               kp["w3"], kp["b3"], kp["w4"], kp["b4"], kp["wp"], kp["bp"])

    in_specs = [pl.BlockSpec((BT, K_PAD), lambda i: (i, 0))]
    in_specs += [_resident_spec(w.shape) for w in weights]

    out = pl.pallas_call(
        _net_kernel,
        out_shape=jax.ShapeDtypeStruct((Bp, 1), jnp.float32),
        grid=(nb,),
        in_specs=in_specs,
        out_specs=pl.BlockSpec((BT, 1), lambda i: (i, 0)),
        compiler_params=pltpu.CompilerParams(
            dimension_semantics=("parallel",)),
    )(x_pad, *weights)
    return out[:B]


# ---------------------------------------------------------------------------
# Pure-JAX reference replicating PyTorch semantics (for validation).
# ---------------------------------------------------------------------------
def net_forward_ref(x, raw):
    B = x.shape[0]
    outs = []
    for k in range(3):
        xk = jnp.maximum(x[:, k:k + 1] @ raw[f"w_h1_{k}"].T + raw[f"b_h1_{k}"], 0.0)
        outs.append(xk)                                            # (B, 128)
    for j in range(4):
        seg = x[:, 3 + 5 * j: 8 + 5 * j]
        pad = jnp.pad(seg, ((0, 0), (1, 1)))
        pj = jnp.stack([pad[:, t:t + 3] for t in range(5)], axis=1)  # (B,5,3)
        conv = (jnp.einsum("btk,ck->bct", pj, raw[f"w_conv{j}"][:, 0, :])
                + raw[f"b_conv{j}"][None, :, None])
        outs.append(jnp.maximum(conv, 0.0).reshape(B, 640))        # channel-major
    x8 = jnp.concatenate(outs, axis=1)                             # (B, 2944)
    h2 = jnp.maximum(x8 @ raw["w_h2"].T + raw["b_h2"], 0.0)
    h3 = jnp.maximum(h2 @ raw["w_h3"].T + raw["b_h3"], 0.0)
    h4 = jnp.maximum(h3 @ raw["w_h4"].T + raw["b_h4"], 0.0)
    return h4 @ raw["w_pred"].T + raw["b_pred"]


def init_raw_params(key):
    raw = {}
    names_shapes = []
    for k in range(3):
        names_shapes += [(f"w_h1_{k}", (128, 1)), (f"b_h1_{k}", (128,))]
    for j in range(4):
        names_shapes += [(f"w_conv{j}", (128, 1, 3)), (f"b_conv{j}", (128,))]
    names_shapes += [
        ("w_h2", (256, 2944)), ("b_h2", (256,)),
        ("w_h3", (128, 256)), ("b_h3", (128,)),
        ("w_h4", (128, 128)), ("b_h4", (128,)),
        ("w_pred", (1, 128)), ("b_pred", (1,)),
    ]
    keys = jax.random.split(key, len(names_shapes))
    for (name, shape), sk in zip(names_shapes, keys):
        raw[name] = 0.1 * jax.random.normal(sk, shape, jnp.float32)
    return raw


if __name__ == "__main__":
    key = jax.random.PRNGKey(0)
    kparam, kx = jax.random.split(key)
    raw = init_raw_params(kparam)

    B = 8
    x = jax.random.normal(kx, (B, 23), jnp.float32)

    out = net_forward_pallas(x, raw)
    out = jax.block_until_ready(out)
    assert out.shape == (B, 1), out.shape

    ref = net_forward_ref(x, raw)
    if not jnp.allclose(out, ref, rtol=5e-2, atol=5e-2):
        raise SystemExit(f"mismatch: max err {jnp.max(jnp.abs(out - ref))}")

    print("KERNEL_OK")
</pallas_src>

<mosaic_0001>
module attributes {stable_mosaic.version = 11 : i64} {
  func.func @_net_kernel(%arg0: i32, %arg1: memref<8x32xf32, #tpu.memory_space<vmem>>, %arg2: memref<32x2944xbf16, #tpu.memory_space<vmem>>, %arg3: memref<1x2944xf32, #tpu.memory_space<vmem>>, %arg4: memref<2944x256xbf16, #tpu.memory_space<vmem>>, %arg5: memref<1x256xf32, #tpu.memory_space<vmem>>, %arg6: memref<256x128xf32, #tpu.memory_space<vmem>>, %arg7: memref<1x128xf32, #tpu.memory_space<vmem>>, %arg8: memref<128x128xf32, #tpu.memory_space<vmem>>, %arg9: memref<1x128xf32, #tpu.memory_space<vmem>>, %arg10: memref<1x128xf32, #tpu.memory_space<vmem>>, %arg11: memref<1x1xf32, #tpu.memory_space<vmem>>, %arg12: memref<8x1xf32, #tpu.memory_space<vmem>>) attributes {dimension_semantics = [#tpu.dimension_semantics<parallel>], iteration_bounds = array<i64: 1>, scalar_prefetch = 0 : i64, scratch_operands = 0 : i64, tpu.core_type = #tpu.core_type<tc>, window_params = [{transform_indices = @transform_0, window_bounds = array<i64: 8, 32>}, {pipeline_mode = #tpu.pipeline_mode<synchronous>, transform_indices = @transform_1, window_bounds = array<i64: 32, 2944>}, {pipeline_mode = #tpu.pipeline_mode<synchronous>, transform_indices = @transform_2, window_bounds = array<i64: 1, 2944>}, {pipeline_mode = #tpu.pipeline_mode<synchronous>, transform_indices = @transform_3, window_bounds = array<i64: 2944, 256>}, {pipeline_mode = #tpu.pipeline_mode<synchronous>, transform_indices = @transform_4, window_bounds = array<i64: 1, 256>}, {pipeline_mode = #tpu.pipeline_mode<synchronous>, transform_indices = @transform_5, window_bounds = array<i64: 256, 128>}, {pipeline_mode = #tpu.pipeline_mode<synchronous>, transform_indices = @transform_6, window_bounds = array<i64: 1, 128>}, {pipeline_mode = #tpu.pipeline_mode<synchronous>, transform_indices = @transform_7, window_bounds = array<i64: 128, 128>}, {pipeline_mode = #tpu.pipeline_mode<synchronous>, transform_indices = @transform_8, window_bounds = array<i64: 1, 128>}, {pipeline_mode = #tpu.pipeline_mode<synchronous>, transform_indices = @transform_9, window_bounds = array<i64: 1, 128>}, {pipeline_mode = #tpu.pipeline_mode<synchronous>, transform_indices = @transform_10, window_bounds = array<i64: 1, 1>}, {transform_indices = @transform_11, window_bounds = array<i64: 8, 1>}]} {
    %c0 = arith.constant 0 : index
    %c0_0 = arith.constant 0 : index
    %0 = vector.load %arg1[%c0, %c0_0] : memref<8x32xf32, #tpu.memory_space<vmem>>, vector<8x32xf32>
    %1 = arith.truncf %0 : vector<8x32xf32> to vector<8x32xbf16>
    %c0_1 = arith.constant 0 : index
    %c0_2 = arith.constant 0 : index
    %2 = vector.load %arg2[%c0_1, %c0_2] : memref<32x2944xbf16, #tpu.memory_space<vmem>>, vector<32x2944xbf16>
    %cst = arith.constant dense<0.000000e+00> : vector<8x2944xf32>
    %3 = tpu.matmul %1, %2, %cst {dimension_numbers = #tpu.dot_dimension_numbers<[1], [0], [0], [1], [0, 0, 1, 1], [], []>} : vector<8x32xbf16>, vector<32x2944xbf16>, vector<8x2944xf32> -> vector<8x2944xf32>
    %c0_3 = arith.constant 0 : index
    %c0_4 = arith.constant 0 : index
    %4 = vector.load %arg3[%c0_3, %c0_4] : memref<1x2944xf32, #tpu.memory_space<vmem>>, vector<1x2944xf32>
    %5 = vector.broadcast %4 : vector<1x2944xf32> to vector<8x2944xf32>
    %6 = arith.addf %3, %5 : vector<8x2944xf32>
    %cst_5 = arith.constant 0.000000e+00 : f32
    %7 = vector.broadcast %cst_5 : f32 to vector<8x2944xf32>
    %8 = arith.maximumf %6, %7 : vector<8x2944xf32>
    %9 = arith.truncf %8 : vector<8x2944xf32> to vector<8x2944xbf16>
    %c0_6 = arith.constant 0 : index
    %c0_7 = arith.constant 0 : index
    %10 = vector.load %arg4[%c0_6, %c0_7] : memref<2944x256xbf16, #tpu.memory_space<vmem>>, vector<2944x256xbf16>
    %cst_8 = arith.constant dense<0.000000e+00> : vector<8x256xf32>
    %11 = tpu.matmul %9, %10, %cst_8 {dimension_numbers = #tpu.dot_dimension_numbers<[1], [0], [0], [1], [0, 0, 1, 1], [], []>} : vector<8x2944xbf16>, vector<2944x256xbf16>, vector<8x256xf32> -> vector<8x256xf32>
    %c0_9 = arith.constant 0 : index
    %c0_10 = arith.constant 0 : index
    %12 = vector.load %arg5[%c0_9, %c0_10] : memref<1x256xf32, #tpu.memory_space<vmem>>, vector<1x256xf32>
    %13 = vector.broadcast %12 : vector<1x256xf32> to vector<8x256xf32>
    %14 = arith.addf %11, %13 : vector<8x256xf32>
    %cst_11 = arith.constant 0.000000e+00 : f32
    %15 = vector.broadcast %cst_11 : f32 to vector<8x256xf32>
    %16 = arith.maximumf %14, %15 : vector<8x256xf32>
    %c0_12 = arith.constant 0 : index
    %c0_13 = arith.constant 0 : index
    %17 = vector.load %arg6[%c0_12, %c0_13] : memref<256x128xf32, #tpu.memory_space<vmem>>, vector<256x128xf32>
    %cst_14 = arith.constant dense<0.000000e+00> : vector<8x128xf32>
    %18 = tpu.matmul %16, %17, %cst_14 {dimension_numbers = #tpu.dot_dimension_numbers<[1], [0], [0], [1], [0, 0, 1, 1], [], []>} : vector<8x256xf32>, vector<256x128xf32>, vector<8x128xf32> -> vector<8x128xf32>
    %c0_15 = arith.constant 0 : index
    %c0_16 = arith.constant 0 : index
    %19 = vector.load %arg7[%c0_15, %c0_16] : memref<1x128xf32, #tpu.memory_space<vmem>>, vector<1x128xf32>
    %20 = vector.broadcast %19 : vector<1x128xf32> to vector<8x128xf32>
    %21 = arith.addf %18, %20 : vector<8x128xf32>
    %cst_17 = arith.constant 0.000000e+00 : f32
    %22 = vector.broadcast %cst_17 : f32 to vector<8x128xf32>
    %23 = arith.maximumf %21, %22 : vector<8x128xf32>
    %c0_18 = arith.constant 0 : index
    %c0_19 = arith.constant 0 : index
    %24 = vector.load %arg8[%c0_18, %c0_19] : memref<128x128xf32, #tpu.memory_space<vmem>>, vector<128x128xf32>
    %cst_20 = arith.constant dense<0.000000e+00> : vector<8x128xf32>
    %25 = tpu.matmul %23, %24, %cst_20 {dimension_numbers = #tpu.dot_dimension_numbers<[1], [0], [0], [1], [0, 0, 1, 1], [], []>} : vector<8x128xf32>, vector<128x128xf32>, vector<8x128xf32> -> vector<8x128xf32>
    %c0_21 = arith.constant 0 : index
    %c0_22 = arith.constant 0 : index
    %26 = vector.load %arg9[%c0_21, %c0_22] : memref<1x128xf32, #tpu.memory_space<vmem>>, vector<1x128xf32>
    %27 = vector.broadcast %26 : vector<1x128xf32> to vector<8x128xf32>
    %28 = arith.addf %25, %27 : vector<8x128xf32>
    %cst_23 = arith.constant 0.000000e+00 : f32
    %29 = vector.broadcast %cst_23 : f32 to vector<8x128xf32>
    %30 = arith.maximumf %28, %29 : vector<8x128xf32>
    %c0_24 = arith.constant 0 : index
    %c0_25 = arith.constant 0 : index
    %31 = vector.load %arg10[%c0_24, %c0_25] : memref<1x128xf32, #tpu.memory_space<vmem>>, vector<1x128xf32>
    %32 = vector.broadcast %31 : vector<1x128xf32> to vector<8x128xf32>
    %33 = arith.mulf %30, %32 : vector<8x128xf32>
    %cst_26 = arith.constant dense<0.000000e+00> : vector<8xf32>
    %34 = vector.multi_reduction <add>, %33, %cst_26 [1] : vector<8x128xf32> to vector<8xf32>
    %35 = vector.shape_cast %34 : vector<8xf32> to vector<8x1xf32>
    %c0_27 = arith.constant 0 : index
    %c0_28 = arith.constant 0 : index
    %36 = vector.load %arg11[%c0_27, %c0_28] : memref<1x1xf32, #tpu.memory_space<vmem>>, vector<1x1xf32>
    %37 = vector.broadcast %36 : vector<1x1xf32> to vector<8x1xf32>
    %38 = arith.addf %35, %37 : vector<8x1xf32>
    %c0_29 = arith.constant 0 : index
    %c0_30 = arith.constant 0 : index
    %39 = vector.load %arg12[%c0_29, %c0_30] : memref<8x1xf32, #tpu.memory_space<vmem>>, vector<8x1xf32>
    tpu.vector_store %arg12[%c0_29, %c0_30], %38 {strides = array<i32>} : memref<8x1xf32, #tpu.memory_space<vmem>>, vector<8x1xf32>,
    return
  }
  func.func @transform_0(%arg0: i32) -> (i32, i32) {
    %c0_i32 = arith.constant 0 : i32
    %c0_i32_0 = arith.constant 0 : i32
    return %arg0, %c0_i32 : i32, i32
  }
  func.func @transform_1(%arg0: i32) -> (i32, i32) {
    %c0_i32 = arith.constant 0 : i32
    %c0_i32_0 = arith.constant 0 : i32
    %c0_i32_1 = arith.constant 0 : i32
    return %c0_i32, %c0_i32_0 : i32, i32
  }
  func.func @transform_2(%arg0: i32) -> (i32, i32) {
    %c0_i32 = arith.constant 0 : i32
    %c0_i32_0 = arith.constant 0 : i32
    %c0_i32_1 = arith.constant 0 : i32
    return %c0_i32, %c0_i32_0 : i32, i32
  }
  func.func @transform_3(%arg0: i32) -> (i32, i32) {
    %c0_i32 = arith.constant 0 : i32
    %c0_i32_0 = arith.constant 0 : i32
    %c0_i32_1 = arith.constant 0 : i32
    return %c0_i32, %c0_i32_0 : i32, i32
  }
  func.func @transform_4(%arg0: i32) -> (i32, i32) {
    %c0_i32 = arith.constant 0 : i32
    %c0_i32_0 = arith.constant 0 : i32
    %c0_i32_1 = arith.constant 0 : i32
    return %c0_i32, %c0_i32_0 : i32, i32
  }
  func.func @transform_5(%arg0: i32) -> (i32, i32) {
    %c0_i32 = arith.constant 0 : i32
    %c0_i32_0 = arith.constant 0 : i32
    %c0_i32_1 = arith.constant 0 : i32
    return %c0_i32, %c0_i32_0 : i32, i32
  }
  func.func @transform_6(%arg0: i32) -> (i32, i32) {
    %c0_i32 = arith.constant 0 : i32
    %c0_i32_0 = arith.constant 0 : i32
    %c0_i32_1 = arith.constant 0 : i32
    return %c0_i32, %c0_i32_0 : i32, i32
  }
  func.func @transform_7(%arg0: i32) -> (i32, i32) {
    %c0_i32 = arith.constant 0 : i32
    %c0_i32_0 = arith.constant 0 : i32
    %c0_i32_1 = arith.constant 0 : i32
    return %c0_i32, %c0_i32_0 : i32, i32
  }
  func.func @transform_8(%arg0: i32) -> (i32, i32) {
    %c0_i32 = arith.constant 0 : i32
    %c0_i32_0 = arith.constant 0 : i32
    %c0_i32_1 = arith.constant 0 : i32
    return %c0_i32, %c0_i32_0 : i32, i32
  }
  func.func @transform_9(%arg0: i32) -> (i32, i32) {
    %c0_i32 = arith.constant 0 : i32
    %c0_i32_0 = arith.constant 0 : i32
    %c0_i32_1 = arith.constant 0 : i32
    return %c0_i32, %c0_i32_0 : i32, i32
  }
  func.func @transform_10(%arg0: i32) -> (i32, i32) {
    %c0_i32 = arith.constant 0 : i32
    %c0_i32_0 = arith.constant 0 : i32
    %c0_i32_1 = arith.constant 0 : i32
    return %c0_i32, %c0_i32_0 : i32, i32
  }
  func.func @transform_11(%arg0: i32) -> (i32, i32) {
    %c0_i32 = arith.constant 0 : i32
    %c0_i32_0 = arith.constant 0 : i32
    return %arg0, %c0_i32 : i32, i32
  }
}

</mosaic_0001>

<llo_original>
// kernel: tpu_custom_call.1
$region0: #{tpu_custom_call.1}
  #allocation0 [shape = 'u32[]', space=smem, size = 0x4, offset = 0x4, fixed_abs, tag = 'smem constant byte address 0x4 - core index']
  #allocation1 [shape = 'u32[72,128]{1,0:T(1,128)}', space=vmem, size = 0x9000, scoped, tag = 'internal scratch']
  #allocation2 [shape = 'f32[1,1]{1,0:T(1,128)S(1)}', space=vmem, size = 0x200, scoped, tag = 'scoped memory for tpu_custom_call.1']
  %s0 = inlined_call_operand.hbm [shape: f32[8,32], index: 0, kind: input, shape index: {}]
  %s1 = inlined_call_operand.hbm [shape: bf16[32,2944], index: 1, kind: input, shape index: {}]
  %s2 = inlined_call_operand.hbm [shape: f32[1,2944], index: 2, kind: input, shape index: {}]
  %s3 = inlined_call_operand.hbm [shape: bf16[2944,256], index: 3, kind: input, shape index: {}]
  %s4 = inlined_call_operand.hbm [shape: f32[1,256], index: 4, kind: input, shape index: {}]
  %s5 = inlined_call_operand.hbm [shape: f32[256,128], index: 5, kind: input, shape index: {}]
  %s6 = inlined_call_operand.hbm [shape: f32[1,128], index: 6, kind: input, shape index: {}]
  %s7 = inlined_call_operand.hbm [shape: f32[128,128], index: 7, kind: input, shape index: {}]
  %s8 = inlined_call_operand.hbm [shape: f32[1,128], index: 8, kind: input, shape index: {}]
  %s9 = inlined_call_operand.hbm [shape: f32[1,128], index: 9, kind: input, shape index: {}]
  %s10 = inlined_call_operand.<no memory space> [shape: f32[1,1], index: 10, kind: input, shape index: {}]
  %s11 = inlined_call_operand.vmem [shape: f32[8,1], index: 11, kind: output, shape index: {}]
  %s12 = sld [smem:[#allocation0]]
  $region94: #{tpu_custom_call.1} parent=0
    _
  %s14 = ssub.s32 1, %s12
  %s15 = scalar_select 0, %s14, %s12
  %v16 = vstv %s10
  %17 = vst [vmem:[#allocation2] sm:$0x1] %v16
  $region1: #{tpu_custom_call.1} parent=0
    #allocation3 [shape = 'u8[4096]{0}', space=vmem, size = 0x1000, scoped, tag = 'input window, operand 0, single buffered']
    #allocation4 [shape = 's32[1]{0}', space=sflag, size = 0x4, scoped, tag = 'scoped memory for tpu_custom_call.1']
    #allocation5 [shape = 'u8[188416]{0}', space=vmem, size = 0x2e000, scoped, tag = 'input window, operand 1, single buffered']
    #allocation6 [shape = 's32[1]{0}', space=sflag, size = 0x4, scoped, tag = 'scoped memory for tpu_custom_call.1']
    #allocation7 [shape = 'u8[11776]{0}', space=vmem, size = 0x3000, scoped, tag = 'input window, operand 2, single buffered']
    #allocation8 [shape = 'u8[1507328]{0}', space=vmem, size = 0x170000, scoped, tag = 'input window, operand 3, single buffered']
    #allocation9 [shape = 's32[1]{0}', space=sflag, size = 0x4, scoped, tag = 'scoped memory for tpu_custom_call.1']
    #allocation10 [shape = 'u8[1024]{0}', space=vmem, size = 0x400, scoped, tag = 'input window, operand 4, single buffered']
    #allocation11 [shape = 'u8[131072]{0}', space=vmem, size = 0x20000, scoped, tag = 'input window, operand 5, single buffered']
    #allocation12 [shape = 's32[1]{0}', space=sflag, size = 0x4, scoped, tag = 'scoped memory for tpu_custom_call.1']
    #allocation13 [shape = 'u8[512]{0}', space=vmem, size = 0x400, scoped, tag = 'input window, operand 6, single buffered']
    #allocation14 [shape = 'u8[65536]{0}', space=vmem, size = 0x10000, scoped, tag = 'input window, operand 7, single buffered']
    #allocation15 [shape = 's32[1]{0}', space=sflag, size = 0x4, scoped, tag = 'scoped memory for tpu_custom_call.1']
    #allocation16 [shape = 'u8[512]{0}', space=vmem, size = 0x400, scoped, tag = 'input window, operand 8, single buffered']
    #allocation17 [shape = 'u8[512]{0}', space=vmem, size = 0x400, scoped, tag = 'input window, operand 9, single buffered']
    #allocation18 [shape = 's32[1]{0}', space=sflag, size = 0x4, scoped, tag = 'scoped memory for tpu_custom_call.1']
    %18 = vsyncpa [#allocation4], 0
    %19 = vsyncpa [#allocation6], 0
    %20 = vsyncpa [#allocation9], 0
    %21 = vsyncpa [#allocation12], 0
    %22 = vsyncpa [#allocation15], 0
    %23 = vsyncpa [#allocation18], 0
    // Predicated region
    $region2: #{tpu_custom_call.1} parent=1 // pred_check
      _
    $region3: #{tpu_custom_call.1} parent=1 // pred_check_branch
      %25 = sbr.rel (0) target = $region5
    $region4: #{tpu_custom_call.1} parent=1 // pred_region
      %27 = vsyncadd [#allocation4], 0
      %s29 = sshll.u32 %s0, 4
      %s30 = int_to_ptr.hbm [resolvable:$true] %s29
      %s31 = sshll.u32 [#allocation3], 4
      %s32 = int_to_ptr.vmem [resolvable:$true] %s31
      %34 = dma.hbm_to_vmem [thread:$0]  %s30, 128, %s32, [#allocation4]
    $region5: #{tpu_custom_call.1} parent=1 // pred_fallthru
      _
    // Predicated region
    $region6: #{tpu_custom_call.1} parent=1 // pred_check
      _
    $region7: #{tpu_custom_call.1} parent=1 // pred_check_branch
      %36 = sbr.rel (0) target = $region9
    $region8: #{tpu_custom_call.1} parent=1 // pred_region
      %38 = vsyncadd [#allocation6], 0
      %s39 = sshll.u32 %s1, 4
      %s40 = int_to_ptr.hbm [resolvable:$true] %s39
      %s41 = sshll.u32 [#allocation5], 4
      %s42 = int_to_ptr.vmem [resolvable:$true] %s41
      %47 = dma.hbm_to_vmem [thread:$0]  %s40, 5888, %s42, [#allocation6], 1472, 1472, 92
    $region9: #{tpu_custom_call.1} parent=1 // pred_fallthru
      _
    // Predicated region
    $region10: #{tpu_custom_call.1} parent=1 // pred_check
      _
    $region11: #{tpu_custom_call.1} parent=1 // pred_check_branch
      %49 = sbr.rel (0) target = $region13
    $region12: #{tpu_custom_call.1} parent=1 // pred_region
      %51 = vsyncadd [#allocation6], 0
      %s53 = sshll.u32 %s2, 4
      %s54 = int_to_ptr.hbm [resolvable:$true] %s53
      %s55 = sshll.u32 [#allocation7], 4
      %s56 = int_to_ptr.vmem [resolvable:$true] %s55
      %58 = dma.hbm_to_vmem [thread:$0]  %s54, 368, %s56, [#allocation6]
    $region13: #{tpu_custom_call.1} parent=1 // pred_fallthru
      _
    // Predicated region
    $region14: #{tpu_custom_call.1} parent=1 // pred_check
      _
    $region15: #{tpu_custom_call.1} parent=1 // pred_check_branch
      %60 = sbr.rel (0) target = $region17
    $region16: #{tpu_custom_call.1} parent=1 // pred_region
      %62 = vsyncadd [#allocation9], 0
      %s63 = sshll.u32 %s3, 4
      %s64 = int_to_ptr.hbm [resolvable:$true] %s63
      %s65 = sshll.u32 [#allocation8], 4
      %s66 = int_to_ptr.vmem [resolvable:$true] %s65
      %71 = dma.hbm_to_vmem [thread:$0]  %s64, 47104, %s66, [#allocation9], 128, 128, 8
    $region17: #{tpu_custom_call.1} parent=1 // pred_fallthru
      _
    // Predicated region
    $region18: #{tpu_custom_call.1} parent=1 // pred_check
      _
    $region19: #{tpu_custom_call.1} parent=1 // pred_check_branch
      %73 = sbr.rel (0) target = $region21
    $region20: #{tpu_custom_call.1} parent=1 // pred_region
      %75 = vsyncadd [#allocation9], 0
      %s77 = sshll.u32 %s4, 4
      %s78 = int_to_ptr.hbm [resolvable:$true] %s77
      %s79 = sshll.u32 [#allocation10], 4
      %s80 = int_to_ptr.vmem [resolvable:$true] %s79
      %82 = dma.hbm_to_vmem [thread:$0]  %s78, 32, %s80, [#allocation9]
    $region21: #{tpu_custom_call.1} parent=1 // pred_fallthru
      _
    // Predicated region
    $region22: #{tpu_custom_call.1} parent=1 // pred_check
      _
    $region23: #{tpu_custom_call.1} parent=1 // pred_check_branch
      %84 = sbr.rel (0) target = $region25
    $region24: #{tpu_custom_call.1} parent=1 // pred_region
      %86 = vsyncadd [#allocation12], 0
      %s87 = sshll.u32 %s5, 4
      %s88 = int_to_ptr.hbm [resolvable:$true] %s87
      %s89 = sshll.u32 [#allocation11], 4
      %s90 = int_to_ptr.vmem [resolvable:$true] %s89
      %95 = dma.hbm_to_vmem [thread:$0]  %s88, 4096, %s90, [#allocation12], 128, 128, 8
    $region25: #{tpu_custom_call.1} parent=1 // pred_fallthru
      _
    // Predicated region
    $region26: #{tpu_custom_call.1} parent=1 // pred_check
      _
    $region27: #{tpu_custom_call.1} parent=1 // pred_check_branch
      %97 = sbr.rel (0) target = $region29
    $region28: #{tpu_custom_call.1} parent=1 // pred_region
      %99 = vsyncadd [#allocation12], 0
      %s101 = sshll.u32 %s6, 4
      %s102 = int_to_ptr.hbm [resolvable:$true] %s101
      %s103 = sshll.u32 [#allocation13], 4
      %s104 = int_to_ptr.vmem [resolvable:$true] %s103
      %106 = dma.hbm_to_vmem [thread:$0]  %s102, 16, %s104, [#allocation12]
    $region29: #{tpu_custom_call.1} parent=1 // pred_fallthru
      _
    // Predicated region
    $region30: #{tpu_custom_call.1} parent=1 // pred_check
      _
    $region31: #{tpu_custom_call.1} parent=1 // pred_check_branch
      %108 = sbr.rel (0) target = $region33
    $region32: #{tpu_custom_call.1} parent=1 // pred_region
      %110 = vsyncadd [#allocation15], 0
      %s111 = sshll.u32 %s7, 4
      %s112 = int_to_ptr.hbm [resolvable:$true] %s111
      %s113 = sshll.u32 [#allocation14], 4
      %s114 = int_to_ptr.vmem [resolvable:$true] %s113
      %119 = dma.hbm_to_vmem [thread:$0]  %s112, 2048, %s114, [#allocation15], 128, 128, 8
    $region33: #{tpu_custom_call.1} parent=1 // pred_fallthru
      _
    // Predicated region
    $region34: #{tpu_custom_call.1} parent=1 // pred_check
      _
    $region35: #{tpu_custom_call.1} parent=1 // pred_check_branch
      %121 = sbr.rel (0) target = $region37
    $region36: #{tpu_custom_call.1} parent=1 // pred_region
      %123 = vsyncadd [#allocation15], 0
      %s125 = sshll.u32 %s8, 4
      %s126 = int_to_ptr.hbm [resolvable:$true] %s125
      %s127 = sshll.u32 [#allocation16], 4
      %s128 = int_to_ptr.vmem [resolvable:$true] %s127
      %130 = dma.hbm_to_vmem [thread:$0]  %s126, 16, %s128, [#allocation15]
    $region37: #{tpu_custom_call.1} parent=1 // pred_fallthru
      _
    // Predicated region
    $region38: #{tpu_custom_call.1} parent=1 // pred_check
      _
    $region39: #{tpu_custom_call.1} parent=1 // pred_check_branch
      %132 = sbr.rel (0) target = $region41
    $region40: #{tpu_custom_call.1} parent=1 // pred_region
      %134 = vsyncadd [#allocation18], 0
      %s136 = sshll.u32 %s9, 4
      %s137 = int_to_ptr.hbm [resolvable:$true] %s136
      %s138 = sshll.u32 [#allocation17], 4
      %s139 = int_to_ptr.vmem [resolvable:$true] %s138
      %141 = dma.hbm_to_vmem [thread:$0]  %s137, 16, %s139, [#allocation18]
    $region41: #{tpu_custom_call.1} parent=1 // pred_fallthru
      _
    // Predicated region
    $region42: #{tpu_custom_call.1} parent=1 // pred_check
      _
    $region43: #{tpu_custom_call.1} parent=1 // pred_check_branch
      %143 = sbr.rel (0) target = $region45
    $region44: #{tpu_custom_call.1} parent=1 // pred_region
      _
    $region45: #{tpu_custom_call.1} parent=1 // pred_fallthru
      _
    // Predicated region
    $region46: #{tpu_custom_call.1} parent=1 // pred_check
      _
    $region47: #{tpu_custom_call.1} parent=1 // pred_check_branch
      %145 = sbr.rel (0) target = $region49
    $region48: #{tpu_custom_call.1} parent=1 // pred_region
      %147 = dma.done [#allocation4], 128
    $region49: #{tpu_custom_call.1} parent=1 // pred_fallthru
      _
    // Predicated region
    $region50: #{tpu_custom_call.1} parent=1 // pred_check
      _
    $region51: #{tpu_custom_call.1} parent=1 // pred_check_branch
      %149 = sbr.rel (0) target = $region53
    $region52: #{tpu_custom_call.1} parent=1 // pred_region
      %151 = dma.done [#allocation6], 5888
    $region53: #{tpu_custom_call.1} parent=1 // pred_fallthru
      _
    // Predicated region
    $region54: #{tpu_custom_call.1} parent=1 // pred_check
      _
    $region55: #{tpu_custom_call.1} parent=1 // pred_check_branch
      %153 = sbr.rel (0) target = $region57
    $region56: #{tpu_custom_call.1} parent=1 // pred_region
      %155 = dma.done [#allocation6], 368
    $region57: #{tpu_custom_call.1} parent=1 // pred_fallthru
      _
    // Predicated region
    $region58: #{tpu_custom_call.1} parent=1 // pred_check
      _
    $region59: #{tpu_custom_call.1} parent=1 // pred_check_branch
      %157 = sbr.rel (0) target = $region61
    $region60: #{tpu_custom_call.1} parent=1 // pred_region
      %159 = dma.done [#allocation9], 47104
    $region61: #{tpu_custom_call.1} parent=1 // pred_fallthru
      _
    // Predicated region
    $region62: #{tpu_custom_call.1} parent=1 // pred_check
      _
    $region63: #{tpu_custom_call.1} parent=1 // pred_check_branch
      %161 = sbr.rel (0) target = $region65
    $region64: #{tpu_custom_call.1} parent=1 // pred_region
      %163 = dma.done [#allocation9], 32
    $region65: #{tpu_custom_call.1} parent=1 // pred_fallthru
      _
    // Predicated region
    $region66: #{tpu_custom_call.1} parent=1 // pred_check
      _
    $region67: #{tpu_custom_call.1} parent=1 // pred_check_branch
      %165 = sbr.rel (0) target = $region69
    $region68: #{tpu_custom_call.1} parent=1 // pred_region
      %167 = dma.done [#allocation12], 4096
    $region69: #{tpu_custom_call.1} parent=1 // pred_fallthru
      _
    // Predicated region
    $region70: #{tpu_custom_call.1} parent=1 // pred_check
      _
    $region71: #{tpu_custom_call.1} parent=1 // pred_check_branch
      %169 = sbr.rel (0) target = $region73
    $region72: #{tpu_custom_call.1} parent=1 // pred_region
      %171 = dma.done [#allocation12], 16
    $region73: #{tpu_custom_call.1} parent=1 // pred_fallthru
      _
    // Predicated region
    $region74: #{tpu_custom_call.1} parent=1 // pred_check
      _
    $region75: #{tpu_custom_call.1} parent=1 // pred_check_branch
      %173 = sbr.rel (0) target = $region77
    $region76: #{tpu_custom_call.1} parent=1 // pred_region
      %175 = dma.done [#allocation15], 2048
    $region77: #{tpu_custom_call.1} parent=1 // pred_fallthru
      _
    // Predicated region
    $region78: #{tpu_custom_call.1} parent=1 // pred_check
      _
    $region79: #{tpu_custom_call.1} parent=1 // pred_check_branch
      %177 = sbr.rel (0) target = $region81
    $region80: #{tpu_custom_call.1} parent=1 // pred_region
      %179 = dma.done [#allocation15], 16
    $region81: #{tpu_custom_call.1} parent=1 // pred_fallthru
      _
    // Predicated region
    $region82: #{tpu_custom_call.1} parent=1 // pred_check
      _
    $region83: #{tpu_custom_call.1} parent=1 // pred_check_branch
      %181 = sbr.rel (0) target = $region85
    $region84: #{tpu_custom_call.1} parent=1 // pred_region
      %183 = dma.done [#allocation18], 16
    $region85: #{tpu_custom_call.1} parent=1 // pred_fallthru
      _
    %v185 = vld [vmem:[#allocation3] sm:$0xff]
    %v186 = vpack.c.bf16 %v185, %v185
    %v187 = vld [vmem:[#allocation5] sm:$0xff]
    %v188 = vld [vmem:[#allocation5 + $0x8] sm:$0xff]
    %v189 = vld [vmem:[#allocation5 + $0x10] sm:$0xff]
    %v190 = vld [vmem:[#allocation5 + $0x18] sm:$0xff]
    %v191 = vld [vmem:[#allocation5 + $0x20] sm:$0xff]
    %v192 = vld [vmem:[#allocation5 + $0x28] sm:$0xff]
    %v193 = vld [vmem:[#allocation5 + $0x30] sm:$0xff]
    %v194 = vld [vmem:[#allocation5 + $0x38] sm:$0xff]
    %v195 = vld [vmem:[#allocation5 + $0x40] sm:$0xff]
    %v196 = vld [vmem:[#allocation5 + $0x48] sm:$0xff]
    %v197 = vld [vmem:[#allocation5 + $0x50] sm:$0xff]
    %v198 = vld [vmem:[#allocation5 + $0x58] sm:$0xf]
    %v199 = vld [vmem:[#allocation5 + $0x5c] sm:$0xff]
    %v200 = vld [vmem:[#allocation5 + $0x64] sm:$0xff]
    %v201 = vld [vmem:[#allocation5 + $0x6c] sm:$0xff]
    %v202 = vld [vmem:[#allocation5 + $0x74] sm:$0xff]
    %v203 = vld [vmem:[#allocation5 + $0x7c] sm:$0xff]
    %v204 = vld [vmem:[#allocation5 + $0x84] sm:$0xff]
    %v205 = vld [vmem:[#allocation5 + $0x8c] sm:$0xff]
    %v206 = vld [vmem:[#allocation5 + $0x94] sm:$0xff]
    %v207 = vld [vmem:[#allocation5 + $0x9c] sm:$0xff]
    %v208 = vld [vmem:[#allocation5 + $0xa4] sm:$0xff]
    %v209 = vld [vmem:[#allocation5 + $0xac] sm:$0xff]
    %v210 = vld [vmem:[#allocation5 + $0xb4] sm:$0xf]
    %v211 = vld [vmem:[#allocation5 + $0xb8] sm:$0xff]
    %v212 = vld [vmem:[#allocation5 + $0xc0] sm:$0xff]
    %v213 = vld [vmem:[#allocation5 + $0xc8] sm:$0xff]
    %v214 = vld [vmem:[#allocation5 + $0xd0] sm:$0xff]
    %v215 = vld [vmem:[#allocation5 + $0xd8] sm:$0xff]
    %v216 = vld [vmem:[#allocation5 + $0xe0] sm:$0xff]
    %v217 = vld [vmem:[#allocation5 + $0xe8] sm:$0xff]
    %v218 = vld [vmem:[#allocation5 + $0xf0] sm:$0xff]
    %v219 = vld [vmem:[#allocation5 + $0xf8] sm:$0xff]
    %v220 = vld [vmem:[#allocation5 + $0x100] sm:$0xff]
    %v221 = vld [vmem:[#allocation5 + $0x108] sm:$0xff]
    %v222 = vld [vmem:[#allocation5 + $0x110] sm:$0xf]
    %v223 = vld [vmem:[#allocation5 + $0x114] sm:$0xff]
    %v224 = vld [vmem:[#allocation5 + $0x11c] sm:$0xff]
    %v225 = vld [vmem:[#allocation5 + $0x124] sm:$0xff]
    %v226 = vld [vmem:[#allocation5 + $0x12c] sm:$0xff]
    %v227 = vld [vmem:[#allocation5 + $0x134] sm:$0xff]
    %v228 = vld [vmem:[#allocation5 + $0x13c] sm:$0xff]
    %v229 = vld [vmem:[#allocation5 + $0x144] sm:$0xff]
    %v230 = vld [vmem:[#allocation5 + $0x14c] sm:$0xff]
    %v231 = vld [vmem:[#allocation5 + $0x154] sm:$0xff]
    %v232 = vld [vmem:[#allocation5 + $0x15c] sm:$0xff]
    %v233 = vld [vmem:[#allocation5 + $0x164] sm:$0xff]
    %v234 = vld [vmem:[#allocation5 + $0x16c] sm:$0xf]
    %v235 = vld [vmem:[#allocation7] sm:$0xff]
    %v236 = vld [vmem:[#allocation7 + $0x8] sm:$0xff]
    %v237 = vld [vmem:[#allocation7 + $0x10] sm:$0xff]
    %v241 = vperm.slane %v235, 0
    %v242 = vperm.slane %v235, 1
    %v243 = vperm.slane %v235, 2
    %v244 = vperm.slane %v235, 3
    %v245 = vperm.slane %v235, 4
    %v246 = vperm.slane %v235, 5
    %v247 = vperm.slane %v235, 6
    %v248 = vperm.slane %v235, 7
    %v249 = vperm.slane %v236, 0
    %v250 = vperm.slane %v236, 1
    %v251 = vperm.slane %v236, 2
    %v252 = vperm.slane %v236, 3
    %v253 = vperm.slane %v236, 4
    %v254 = vperm.slane %v236, 5
    %v255 = vperm.slane %v236, 6
    %v256 = vperm.slane %v236, 7
    %v257 = vperm.slane %v237, 0
    %v258 = vperm.slane %v237, 1
    %v259 = vperm.slane %v237, 2
    %v260 = vperm.slane %v237, 3
    %v261 = vperm.slane %v237, 4
    %v262 = vperm.slane %v237, 5
    %v263 = vperm.slane %v237, 6
    %v335 = vunpack.c.l.b16 %v187
    %v336 = vunpack.c.h.b16 %v187
    %v337 = vunpack.c.l.b16 %v188
    %v338 = vunpack.c.h.b16 %v188
    %v339 = vunpack.c.l.b16 %v189
    %v340 = vunpack.c.h.b16 %v189
    %v341 = vunpack.c.l.b16 %v190
    %v342 = vunpack.c.h.b16 %v190
    %v343 = vunpack.c.l.b16 %v191
    %v344 = vunpack.c.h.b16 %v191
    %v345 = vunpack.c.l.b16 %v192
    %v346 = vunpack.c.h.b16 %v192
    %v347 = vunpack.c.l.b16 %v193
    %v348 = vunpack.c.h.b16 %v193
    %v349 = vunpack.c.l.b16 %v194
    %v350 = vunpack.c.h.b16 %v194
    %v351 = vunpack.c.l.b16 %v195
    %v352 = vunpack.c.h.b16 %v195
    %v353 = vunpack.c.l.b16 %v196
    %v354 = vunpack.c.h.b16 %v196
    %v355 = vunpack.c.l.b16 %v197
    %v356 = vunpack.c.h.b16 %v197
    %v357 = vunpack.c.l.b16 %v198
    %v358 = vunpack.c.l.b16 %v199
    %v359 = vunpack.c.h.b16 %v199
    %v360 = vunpack.c.l.b16 %v200
    %v361 = vunpack.c.h.b16 %v200
    %v362 = vunpack.c.l.b16 %v201
    %v363 = vunpack.c.h.b16 %v201
    %v364 = vunpack.c.l.b16 %v202
    %v365 = vunpack.c.h.b16 %v202
    %v366 = vunpack.c.l.b16 %v203
    %v367 = vunpack.c.h.b16 %v203
    %v368 = vunpack.c.l.b16 %v204
    %v369 = vunpack.c.h.b16 %v204
    %v370 = vunpack.c.l.b16 %v205
    %v371 = vunpack.c.h.b16 %v205
    %v372 = vunpack.c.l.b16 %v206
    %v373 = vunpack.c.h.b16 %v206
    %v374 = vunpack.c.l.b16 %v207
    %v375 = vunpack.c.h.b16 %v207
    %v376 = vunpack.c.l.b16 %v208
    %v377 = vunpack.c.h.b16 %v208
    %v378 = vunpack.c.l.b16 %v209
    %v379 = vunpack.c.h.b16 %v209
    %v380 = vunpack.c.l.b16 %v210
    %v381 = vunpack.c.l.b16 %v211
    %v382 = vunpack.c.h.b16 %v211
    %v383 = vunpack.c.l.b16 %v212
    %v384 = vunpack.c.h.b16 %v212
    %v385 = vunpack.c.l.b16 %v213
    %v386 = vunpack.c.h.b16 %v213
    %v387 = vunpack.c.l.b16 %v214
    %v388 = vunpack.c.h.b16 %v214
    %v389 = vunpack.c.l.b16 %v215
    %v390 = vunpack.c.h.b16 %v215
    %v391 = vunpack.c.l.b16 %v216
    %v392 = vunpack.c.h.b16 %v216
    %v393 = vunpack.c.l.b16 %v217
    %v394 = vunpack.c.h.b16 %v217
    %v395 = vunpack.c.l.b16 %v218
    %v396 = vunpack.c.h.b16 %v218
    %v397 = vunpack.c.l.b16 %v219
    %v398 = vunpack.c.h.b16 %v219
    %v399 = vunpack.c.l.b16 %v220
    %v400 = vunpack.c.h.b16 %v220
    %v401 = vunpack.c.l.b16 %v221
    %v402 = vunpack.c.h.b16 %v221
    %v403 = vunpack.c.l.b16 %v222
    %v404 = vunpack.c.l.b16 %v223
    %v405 = vunpack.c.h.b16 %v223
    %v406 = vunpack.c.l.b16 %v224
    %v407 = vunpack.c.h.b16 %v224
    %v408 = vunpack.c.l.b16 %v225
    %v409 = vunpack.c.h.b16 %v225
    %v410 = vunpack.c.l.b16 %v226
    %v411 = vunpack.c.h.b16 %v226
    %v412 = vunpack.c.l.b16 %v227
    %v413 = vunpack.c.h.b16 %v227
    %v414 = vunpack.c.l.b16 %v228
    %v415 = vunpack.c.h.b16 %v228
    %v416 = vunpack.c.l.b16 %v229
    %v417 = vunpack.c.h.b16 %v229
    %v418 = vunpack.c.l.b16 %v230
    %v419 = vunpack.c.h.b16 %v230
    %v420 = vunpack.c.l.b16 %v231
    %v421 = vunpack.c.h.b16 %v231
    %v422 = vunpack.c.l.b16 %v232
    %v423 = vunpack.c.h.b16 %v232
    %v424 = vunpack.c.l.b16 %v233
    %v425 = vunpack.c.h.b16 %v233
    %v426 = vunpack.c.l.b16 %v234
    %v427 = vpack.c.b16 %v358, %v335
    %v428 = vpack.c.b16 %v359, %v336
    %v429 = vpack.c.b16 %v360, %v337
    %v430 = vpack.c.b16 %v361, %v338
    %v431 = vpack.c.b16 %v362, %v339
    %v432 = vpack.c.b16 %v363, %v340
    %v433 = vpack.c.b16 %v364, %v341
    %v434 = vpack.c.b16 %v365, %v342
    %v435 = vpack.c.b16 %v366, %v343
    %v436 = vpack.c.b16 %v367, %v344
    %v437 = vpack.c.b16 %v368, %v345
    %v438 = vpack.c.b16 %v369, %v346
    %v439 = vpack.c.b16 %v370, %v347
    %v440 = vpack.c.b16 %v371, %v348
    %v441 = vpack.c.b16 %v372, %v349
    %v442 = vpack.c.b16 %v373, %v350
    %v443 = vpack.c.b16 %v374, %v351
    %v444 = vpack.c.b16 %v375, %v352
    %v445 = vpack.c.b16 %v376, %v353
    %v446 = vpack.c.b16 %v377, %v354
    %v447 = vpack.c.b16 %v378, %v355
    %v448 = vpack.c.b16 %v379, %v356
    %v449 = vpack.c.b16 %v380, %v357
    %v450 = vpack.c.b16 %v404, %v381
    %v451 = vpack.c.b16 %v405, %v382
    %v452 = vpack.c.b16 %v406, %v383
    %v453 = vpack.c.b16 %v407, %v384
    %v454 = vpack.c.b16 %v408, %v385
    %v455 = vpack.c.b16 %v409, %v386
    %v456 = vpack.c.b16 %v410, %v387
    %v457 = vpack.c.b16 %v411, %v388
    %v458 = vpack.c.b16 %v412, %v389
    %v459 = vpack.c.b16 %v413, %v390
    %v460 = vpack.c.b16 %v414, %v391
    %v461 = vpack.c.b16 %v415, %v392
    %v462 = vpack.c.b16 %v416, %v393
    %v463 = vpack.c.b16 %v417, %v394
    %v464 = vpack.c.b16 %v418, %v395
    %v465 = vpack.c.b16 %v419, %v396
    %v466 = vpack.c.b16 %v420, %v397
    %v467 = vpack.c.b16 %v421, %v398
    %v468 = vpack.c.b16 %v422, %v399
    %v469 = vpack.c.b16 %v423, %v400
    %v470 = vpack.c.b16 %v424, %v401
    %v471 = vpack.c.b16 %v425, %v402
    %v472 = vpack.c.b16 %v426, %v403
    %vm519 = vcmask 261120
    %v521 = vsel %vm519, %v186, 0
    %523 = vmatpush.bf16.msra.mxu0 0
    %524 = vmatpush.bf16.msra.mxu0 0
    %525 = vmatpush.bf16.msra.mxu0 0
    %526 = vmatpush.bf16.msra.mxu0 0
    %527 = vmatpush.bf16.msra.mxu0 0
    %528 = vmatpush.bf16.msra.mxu0 0
    %529 = vmatpush.bf16.msra.mxu0 %v450
    %530 = vmatpush.bf16.msra.mxu0 %v427
    %531 = vmatmul.bf16.gmra.mxu0 %v521
    %v532 = vpop.f32.mrf.mxu0
    %v533 = vadd.f32 %v241, %v532
    %v534 = vpop.f32.mrf.mxu0
    %535 = vdwg.mxu0
    %536 = vmatpush.bf16.msra.mxu0 0
    %537 = vmatpush.bf16.msra.mxu0 0
    %538 = vmatpush.bf16.msra.mxu0 0
    %539 = vmatpush.bf16.msra.mxu0 0
    %540 = vmatpush.bf16.msra.mxu0 0
    %541 = vmatpush.bf16.msra.mxu0 0
    %542 = vmatpush.bf16.msra.mxu0 %v451
    %543 = vmatpush.bf16.msra.mxu0 %v428
    %544 = vmatmul.bf16.gmra.mxu0 %v521
    %v545 = vpop.f32.mrf.mxu0
    %v546 = vadd.f32 %v242, %v545
    %v547 = vpop.f32.mrf.mxu0
    %548 = vdwg.mxu0
    %549 = vmatpush.bf16.msra.mxu0 0
    %550 = vmatpush.bf16.msra.mxu0 0
    %551 = vmatpush.bf16.msra.mxu0 0
    %552 = vmatpush.bf16.msra.mxu0 0
    %553 = vmatpush.bf16.msra.mxu0 0
    %554 = vmatpush.bf16.msra.mxu0 0
    %555 = vmatpush.bf16.msra.mxu0 %v452
    %556 = vmatpush.bf16.msra.mxu0 %v429
    %557 = vmatmul.bf16.gmra.mxu0 %v521
    %v558 = vpop.f32.mrf.mxu0
    %v559 = vadd.f32 %v243, %v558
    %v560 = vpop.f32.mrf.mxu0
    %561 = vdwg.mxu0
    %562 = vmatpush.bf16.msra.mxu0 0
    %563 = vmatpush.bf16.msra.mxu0 0
    %564 = vmatpush.bf16.msra.mxu0 0
    %565 = vmatpush.bf16.msra.mxu0 0
    %566 = vmatpush.bf16.msra.mxu0 0
    %567 = vmatpush.bf16.msra.mxu0 0
    %568 = vmatpush.bf16.msra.mxu0 %v453
    %569 = vmatpush.bf16.msra.mxu0 %v430
    %570 = vmatmul.bf16.gmra.mxu0 %v521
    %v571 = vpop.f32.mrf.mxu0
    %v572 = vadd.f32 %v244, %v571
    %v573 = vpop.f32.mrf.mxu0
    %574 = vdwg.mxu0
    %575 = vmatpush.bf16.msra.mxu0 0
    %576 = vmatpush.bf16.msra.mxu0 0
    %577 = vmatpush.bf16.msra.mxu0 0
    %578 = vmatpush.bf16.msra.mxu0 0
    %579 = vmatpush.bf16.msra.mxu0 0
    %580 = vmatpush.bf16.msra.mxu0 0
    %581 = vmatpush.bf16.msra.mxu0 %v454
    %582 = vmatpush.bf16.msra.mxu0 %v431
    %583 = vmatmul.bf16.gmra.mxu0 %v521
    %v584 = vpop.f32.mrf.mxu0
    %v585 = vadd.f32 %v245, %v584
    %v586 = vpop.f32.mrf.mxu0
    %587 = vdwg.mxu0
    %588 = vmatpush.bf16.msra.mxu0 0
    %589 = vmatpush.bf16.msra.mxu0 0
    %590 = vmatpush.bf16.msra.mxu0 0
    %591 = vmatpush.bf16.msra.mxu0 0
    %592 = vmatpush.bf16.msra.mxu0 0
    %593 = vmatpush.bf16.msra.mxu0 0
    %594 = vmatpush.bf16.msra.mxu0 %v455
    %595 = vmatpush.bf16.msra.mxu0 %v432
    %596 = vmatmul.bf16.gmra.mxu0 %v521
    %v597 = vpop.f32.mrf.mxu0
    %v598 = vadd.f32 %v246, %v597
    %v599 = vpop.f32.mrf.mxu0
    %600 = vdwg.mxu0
    %601 = vmatpush.bf16.msra.mxu0 0
    %602 = vmatpush.bf16.msra.mxu0 0
    %603 = vmatpush.bf16.msra.mxu0 0
    %604 = vmatpush.bf16.msra.mxu0 0
    %605 = vmatpush.bf16.msra.mxu0 0
    %606 = vmatpush.bf16.msra.mxu0 0
    %607 = vmatpush.bf16.msra.mxu0 %v456
    %608 = vmatpush.bf16.msra.mxu0 %v433
    %609 = vmatmul.bf16.gmra.mxu0 %v521
    %v610 = vpop.f32.mrf.mxu0
    %v611 = vadd.f32 %v247, %v610
    %v612 = vpop.f32.mrf.mxu0
    %613 = vdwg.mxu0
    %614 = vmatpush.bf16.msra.mxu0 0
    %615 = vmatpush.bf16.msra.mxu0 0
    %616 = vmatpush.bf16.msra.mxu0 0
    %617 = vmatpush.bf16.msra.mxu0 0
    %618 = vmatpush.bf16.msra.mxu0 0
    %619 = vmatpush.bf16.msra.mxu0 0
    %620 = vmatpush.bf16.msra.mxu0 %v457
    %621 = vmatpush.bf16.msra.mxu0 %v434
    %622 = vmatmul.bf16.gmra.mxu0 %v521
    %v623 = vpop.f32.mrf.mxu0
    %v624 = vadd.f32 %v248, %v623
    %v625 = vpop.f32.mrf.mxu0
    %626 = vdwg.mxu0
    %627 = vmatpush.bf16.msra.mxu0 0
    %628 = vmatpush.bf16.msra.mxu0 0
    %629 = vmatpush.bf16.msra.mxu0 0
    %630 = vmatpush.bf16.msra.mxu0 0
    %631 = vmatpush.bf16.msra.mxu0 0
    %632 = vmatpush.bf16.msra.mxu0 0
    %633 = vmatpush.bf16.msra.mxu0 %v458
    %634 = vmatpush.bf16.msra.mxu0 %v435
    %635 = vmatmul.bf16.gmra.mxu0 %v521
    %v636 = vpop.f32.mrf.mxu0
    %v637 = vadd.f32 %v249, %v636
    %v638 = vpop.f32.mrf.mxu0
    %639 = vdwg.mxu0
    %640 = vmatpush.bf16.msra.mxu0 0
    %641 = vmatpush.bf16.msra.mxu0 0
    %642 = vmatpush.bf16.msra.mxu0 0
    %643 = vmatpush.bf16.msra.mxu0 0
    %644 = vmatpush.bf16.msra.mxu0 0
    %645 = vmatpush.bf16.msra.mxu0 0
    %646 = vmatpush.bf16.msra.mxu0 %v459
    %647 = vmatpush.bf16.msra.mxu0 %v436
    %648 = vmatmul.bf16.gmra.mxu0 %v521
    %v649 = vpop.f32.mrf.mxu0
    %v650 = vadd.f32 %v250, %v649
    %v651 = vpop.f32.mrf.mxu0
    %652 = vdwg.mxu0
    %653 = vmatpush.bf16.msra.mxu0 0
    %654 = vmatpush.bf16.msra.mxu0 0
    %655 = vmatpush.bf16.msra.mxu0 0
    %656 = vmatpush.bf16.msra.mxu0 0
    %657 = vmatpush.bf16.msra.mxu0 0
    %658 = vmatpush.bf16.msra.mxu0 0
    %659 = vmatpush.bf16.msra.mxu0 %v460
    %660 = vmatpush.bf16.msra.mxu0 %v437
    %661 = vmatmul.bf16.gmra.mxu0 %v521
    %v662 = vpop.f32.mrf.mxu0
    %v663 = vadd.f32 %v251, %v662
    %v664 = vpop.f32.mrf.mxu0
    %665 = vdwg.mxu0
    %666 = vmatpush.bf16.msra.mxu0 0
    %667 = vmatpush.bf16.msra.mxu0 0
    %668 = vmatpush.bf16.msra.mxu0 0
    %669 = vmatpush.bf16.msra.mxu0 0
    %670 = vmatpush.bf16.msra.mxu0 0
    %671 = vmatpush.bf16.msra.mxu0 0
    %672 = vmatpush.bf16.msra.mxu0 %v461
    %673 = vmatpush.bf16.msra.mxu0 %v438
    %674 = vmatmul.bf16.gmra.mxu0 %v521
    %v675 = vpop.f32.mrf.mxu0
    %v676 = vadd.f32 %v252, %v675
    %v677 = vpop.f32.mrf.mxu0
    %678 = vdwg.mxu0
    %679 = vmatpush.bf16.msra.mxu0 0
    %680 = vmatpush.bf16.msra.mxu0 0
    %681 = vmatpush.bf16.msra.mxu0 0
    %682 = vmatpush.bf16.msra.mxu0 0
    %683 = vmatpush.bf16.msra.mxu0 0
    %684 = vmatpush.bf16.msra.mxu0 0
    %685 = vmatpush.bf16.msra.mxu0 %v462
    %686 = vmatpush.bf16.msra.mxu0 %v439
    %687 = vmatmul.bf16.gmra.mxu0 %v521
    %v688 = vpop.f32.mrf.mxu0
    %v689 = vadd.f32 %v253, %v688
    %v690 = vpop.f32.mrf.mxu0
    %691 = vdwg.mxu0
    %692 = vmatpush.bf16.msra.mxu0 0
    %693 = vmatpush.bf16.msra.mxu0 0
    %694 = vmatpush.bf16.msra.mxu0 0
    %695 = vmatpush.bf16.msra.mxu0 0
    %696 = vmatpush.bf16.msra.mxu0 0
    %697 = vmatpush.bf16.msra.mxu0 0
    %698 = vmatpush.bf16.msra.mxu0 %v463
    %699 = vmatpush.bf16.msra.mxu0 %v440
    %700 = vmatmul.bf16.gmra.mxu0 %v521
    %v701 = vpop.f32.mrf.mxu0
    %v702 = vadd.f32 %v254, %v701
    %v703 = vpop.f32.mrf.mxu0
    %704 = vdwg.mxu0
    %705 = vmatpush.bf16.msra.mxu0 0
    %706 = vmatpush.bf16.msra.mxu0 0
    %707 = vmatpush.bf16.msra.mxu0 0
    %708 = vmatpush.bf16.msra.mxu0 0
    %709 = vmatpush.bf16.msra.mxu0 0
    %710 = vmatpush.bf16.msra.mxu0 0
    %711 = vmatpush.bf16.msra.mxu0 %v464
    %712 = vmatpush.bf16.msra.mxu0 %v441
    %713 = vmatmul.bf16.gmra.mxu0 %v521
    %v714 = vpop.f32.mrf.mxu0
    %v715 = vadd.f32 %v255, %v714
    %v716 = vpop.f32.mrf.mxu0
    %717 = vdwg.mxu0
    %718 = vmatpush.bf16.msra.mxu0 0
    %719 = vmatpush.bf16.msra.mxu0 0
    %720 = vmatpush.bf16.msra.mxu0 0
    %721 = vmatpush.bf16.msra.mxu0 0
    %722 = vmatpush.bf16.msra.mxu0 0
    %723 = vmatpush.bf16.msra.mxu0 0
    %724 = vmatpush.bf16.msra.mxu0 %v465
    %725 = vmatpush.bf16.msra.mxu0 %v442
    %726 = vmatmul.bf16.gmra.mxu0 %v521
    %v727 = vpop.f32.mrf.mxu0
    %v728 = vadd.f32 %v256, %v727
    %v729 = vpop.f32.mrf.mxu0
    %730 = vdwg.mxu0
    %731 = vmatpush.bf16.msra.mxu0 0
    %732 = vmatpush.bf16.msra.mxu0 0
    %733 = vmatpush.bf16.msra.mxu0 0
    %734 = vmatpush.bf16.msra.mxu0 0
    %735 = vmatpush.bf16.msra.mxu0 0
    %736 = vmatpush.bf16.msra.mxu0 0
    %737 = vmatpush.bf16.msra.mxu0 %v466
    %738 = vmatpush.bf16.msra.mxu0 %v443
    %739 = vmatmul.bf16.gmra.mxu0 %v521
    %v740 = vpop.f32.mrf.mxu0
    %v741 = vadd.f32 %v257, %v740
    %v742 = vpop.f32.mrf.mxu0
    %743 = vdwg.mxu0
    %744 = vmatpush.bf16.msra.mxu0 0
    %745 = vmatpush.bf16.msra.mxu0 0
    %746 = vmatpush.bf16.msra.mxu0 0
    %747 = vmatpush.bf16.msra.mxu0 0
    %748 = vmatpush.bf16.msra.mxu0 0
    %749 = vmatpush.bf16.msra.mxu0 0
    %750 = vmatpush.bf16.msra.mxu0 %v467
    %751 = vmatpush.bf16.msra.mxu0 %v444
    %752 = vmatmul.bf16.gmra.mxu0 %v521
    %v753 = vpop.f32.mrf.mxu0
    %v754 = vadd.f32 %v258, %v753
    %v755 = vpop.f32.mrf.mxu0
    %756 = vdwg.mxu0
    %757 = vmatpush.bf16.msra.mxu0 0
    %758 = vmatpush.bf16.msra.mxu0 0
    %759 = vmatpush.bf16.msra.mxu0 0
    %760 = vmatpush.bf16.msra.mxu0 0
    %761 = vmatpush.bf16.msra.mxu0 0
    %762 = vmatpush.bf16.msra.mxu0 0
    %763 = vmatpush.bf16.msra.mxu0 %v468
    %764 = vmatpush.bf16.msra.mxu0 %v445
    %765 = vmatmul.bf16.gmra.mxu0 %v521
    %v766 = vpop.f32.mrf.mxu0
    %v767 = vadd.f32 %v259, %v766
    %v768 = vpop.f32.mrf.mxu0
    %769 = vdwg.mxu0
    %770 = vmatpush.bf16.msra.mxu0 0
    %771 = vmatpush.bf16.msra.mxu0 0
    %772 = vmatpush.bf16.msra.mxu0 0
    %773 = vmatpush.bf16.msra.mxu0 0
    %774 = vmatpush.bf16.msra.mxu0 0
    %775 = vmatpush.bf16.msra.mxu0 0
    %776 = vmatpush.bf16.msra.mxu0 %v469
    %777 = vmatpush.bf16.msra.mxu0 %v446
    %778 = vmatmul.bf16.gmra.mxu0 %v521
    %v779 = vpop.f32.mrf.mxu0
    %v780 = vadd.f32 %v260, %v779
    %v781 = vpop.f32.mrf.mxu0
    %782 = vdwg.mxu0
    %783 = vmatpush.bf16.msra.mxu0 0
    %784 = vmatpush.bf16.msra.mxu0 0
    %785 = vmatpush.bf16.msra.mxu0 0
    %786 = vmatpush.bf16.msra.mxu0 0
    %787 = vmatpush.bf16.msra.mxu0 0
    %788 = vmatpush.bf16.msra.mxu0 0
    %789 = vmatpush.bf16.msra.mxu0 %v470
    %790 = vmatpush.bf16.msra.mxu0 %v447
    %791 = vmatmul.bf16.gmra.mxu0 %v521
    %v792 = vpop.f32.mrf.mxu0
    %v793 = vadd.f32 %v261, %v792
    %v794 = vpop.f32.mrf.mxu0
    %795 = vdwg.mxu0
    %796 = vmatpush.bf16.msra.mxu0 0
    %797 = vmatpush.bf16.msra.mxu0 0
    %798 = vmatpush.bf16.msra.mxu0 0
    %799 = vmatpush.bf16.msra.mxu0 0
    %800 = vmatpush.bf16.msra.mxu0 0
    %801 = vmatpush.bf16.msra.mxu0 0
    %802 = vmatpush.bf16.msra.mxu0 %v471
    %803 = vmatpush.bf16.msra.mxu0 %v448
    %804 = vmatmul.bf16.gmra.mxu0 %v521
    %v805 = vpop.f32.mrf.mxu0
    %v806 = vadd.f32 %v262, %v805
    %v807 = vpop.f32.mrf.mxu0
    %808 = vdwg.mxu0
    %809 = vmatpush.bf16.msra.mxu0 0
    %810 = vmatpush.bf16.msra.mxu0 0
    %811 = vmatpush.bf16.msra.mxu0 0
    %812 = vmatpush.bf16.msra.mxu0 0
    %813 = vmatpush.bf16.msra.mxu0 0
    %814 = vmatpush.bf16.msra.mxu0 0
    %815 = vmatpush.bf16.msra.mxu0 %v472
    %816 = vmatpush.bf16.msra.mxu0 %v449
    %817 = vmatmul.bf16.gmra.mxu0 %v521
    %v818 = vpop.f32.mrf.mxu0
    %v819 = vadd.f32 %v263, %v818
    %v820 = vpop.f32.mrf.mxu0
    %821 = vdwg.mxu0
    %v822 = vmax.f32 %v533, 0.0
    %v823 = vmax.f32 %v546, 0.0
    %v824 = vmax.f32 %v559, 0.0
    %v825 = vmax.f32 %v572, 0.0
    %v826 = vmax.f32 %v585, 0.0
    %v827 = vmax.f32 %v598, 0.0
    %v828 = vmax.f32 %v611, 0.0
    %v829 = vmax.f32 %v624, 0.0
    %v830 = vmax.f32 %v637, 0.0
    %v831 = vmax.f32 %v650, 0.0
    %v832 = vmax.f32 %v663, 0.0
    %v833 = vmax.f32 %v676, 0.0
    %v834 = vmax.f32 %v689, 0.0
    %v835 = vmax.f32 %v702, 0.0
    %v836 = vmax.f32 %v715, 0.0
    %v837 = vmax.f32 %v728, 0.0
    %v838 = vmax.f32 %v741, 0.0
    %v839 = vmax.f32 %v754, 0.0
    %v840 = vmax.f32 %v767, 0.0
    %v841 = vmax.f32 %v780, 0.0
    %v842 = vmax.f32 %v793, 0.0
    %v843 = vmax.f32 %v806, 0.0
    %v844 = vmax.f32 %v819, 0.0
    %v845 = vpack.c.bf16 %v822, %v822
    %v846 = vpack.c.bf16 %v823, %v823
    %v847 = vpack.c.bf16 %v824, %v824
    %v848 = vpack.c.bf16 %v825, %v825
    %v849 = vpack.c.bf16 %v826, %v826
    %v850 = vpack.c.bf16 %v827, %v827
    %v851 = vpack.c.bf16 %v828, %v828
    %v852 = vpack.c.bf16 %v829, %v829
    %v853 = vpack.c.bf16 %v830, %v830
    %v854 = vpack.c.bf16 %v831, %v831
    %v855 = vpack.c.bf16 %v832, %v832
    %v856 = vpack.c.bf16 %v833, %v833
    %v857 = vpack.c.bf16 %v834, %v834
    %v858 = vpack.c.bf16 %v835, %v835
    %v859 = vpack.c.bf16 %v836, %v836
    %v860 = vpack.c.bf16 %v837, %v837
    %v861 = vpack.c.bf16 %v838, %v838
    %v862 = vpack.c.bf16 %v839, %v839
    %v863 = vpack.c.bf16 %v840, %v840
    %v864 = vpack.c.bf16 %v841, %v841
    %v865 = vpack.c.bf16 %v842, %v842
    %v866 = vpack.c.bf16 %v843, %v843
    %v867 = vpack.c.bf16 %v844, %v844
    %v868 = vld [vmem:[#allocation8] sm:$0xff]
    %v869 = vld [vmem:[#allocation8 + $0x8] sm:$0xff]
    %v870 = vld [vmem:[#allocation8 + $0x10] sm:$0xff]
    %v871 = vld [vmem:[#allocation8 + $0x18] sm:$0xff]
    %v872 = vld [vmem:[#allocation8 + $0x20] sm:$0xff]
    %v873 = vld [vmem:[#allocation8 + $0x28] sm:$0xff]
    %v874 = vld [vmem:[#allocation8 + $0x30] sm:$0xff]
    %v875 = vld [vmem:[#allocation8 + $0x38] sm:$0xff]
    %v876 = vld [vmem:[#allocation8 + $0x40] sm:$0xff]
    %v877 = vld [vmem:[#allocation8 + $0x48] sm:$0xff]
    %v878 = vld [vmem:[#allocation8 + $0x50] sm:$0xff]
    %v879 = vld [vmem:[#allocation8 + $0x58] sm:$0xff]
    %v880 = vld [vmem:[#allocation8 + $0x60] sm:$0xff]
    %v881 = vld [vmem:[#allocation8 + $0x68] sm:$0xff]
    %v882 = vld [vmem:[#allocation8 + $0x70] sm:$0xff]
    %v883 = vld [vmem:[#allocation8 + $0x78] sm:$0xff]
    %v884 = vld [vmem:[#allocation8 + $0x80] sm:$0xff]
    %v885 = vld [vmem:[#allocation8 + $0x88] sm:$0xff]
    %v886 = vld [vmem:[#allocation8 + $0x90] sm:$0xff]
    %v887 = vld [vmem:[#allocation8 + $0x98] sm:$0xff]
    %v888 = vld [vmem:[#allocation8 + $0xa0] sm:$0xff]
    %v889 = vld [vmem:[#allocation8 + $0xa8] sm:$0xff]
    %v890 = vld [vmem:[#allocation8 + $0xb0] sm:$0xff]
    %v891 = vld [vmem:[#allocation8 + $0xb8] sm:$0xff]
    %v892 = vld [vmem:[#allocation8 + $0xc0] sm:$0xff]
    %v893 = vld [vmem:[#allocation8 + $0xc8] sm:$0xff]
    %v894 = vld [vmem:[#allocation8 + $0xd0] sm:$0xff]
    %v895 = vld [vmem:[#allocation8 + $0xd8] sm:$0xff]
    %v896 = vld [vmem:[#allocation8 + $0xe0] sm:$0xff]
    %v897 = vld [vmem:[#allocation8 + $0xe8] sm:$0xff]
    %v898 = vld [vmem:[#allocation8 + $0xf0] sm:$0xff]
    %v899 = vld [vmem:[#allocation8 + $0xf8] sm:$0xff]
    %v900 = vld [vmem:[#allocation8 + $0x100] sm:$0xff]
    %v901 = vld [vmem:[#allocation8 + $0x108] sm:$0xff]
    %v902 = vld [vmem:[#allocation8 + $0x110] sm:$0xff]
    %v903 = vld [vmem:[#allocation8 + $0x118] sm:$0xff]
    %v904 = vld [vmem:[#allocation8 + $0x120] sm:$0xff]
    %v905 = vld [vmem:[#allocation8 + $0x128] sm:$0xff]
    %v906 = vld [vmem:[#allocation8 + $0x130] sm:$0xff]
    %v907 = vld [vmem:[#allocation8 + $0x138] sm:$0xff]
    %v908 = vld [vmem:[#allocation8 + $0x140] sm:$0xff]
    %v909 = vld [vmem:[#allocation8 + $0x148] sm:$0xff]
    %v910 = vld [vmem:[#allocation8 + $0x150] sm:$0xff]
    %v911 = vld [vmem:[#allocation8 + $0x158] sm:$0xff]
    %v912 = vld [vmem:[#allocation8 + $0x160] sm:$0xff]
    %v913 = vld [vmem:[#allocation8 + $0x168] sm:$0xff]
    %v914 = vld [vmem:[#allocation8 + $0x170] sm:$0xff]
    %v915 = vld [vmem:[#allocation8 + $0x178] sm:$0xff]
    %v916 = vld [vmem:[#allocation8 + $0x180] sm:$0xff]
    %v917 = vld [vmem:[#allocation8 + $0x188] sm:$0xff]
    %v918 = vld [vmem:[#allocation8 + $0x190] sm:$0xff]
    %v919 = vld [vmem:[#allocation8 + $0x198] sm:$0xff]
    %v920 = vld [vmem:[#allocation8 + $0x1a0] sm:$0xff]
    %v921 = vld [vmem:[#allocation8 + $0x1a8] sm:$0xff]
    %v922 = vld [vmem:[#allocation8 + $0x1b0] sm:$0xff]
    %v923 = vld [vmem:[#allocation8 + $0x1b8] sm:$0xff]
    %v924 = vld [vmem:[#allocation8 + $0x1c0] sm:$0xff]
    %v925 = vld [vmem:[#allocation8 + $0x1c8] sm:$0xff]
    %v926 = vld [vmem:[#allocation8 + $0x1d0] sm:$0xff]
    %v927 = vld [vmem:[#allocation8 + $0x1d8] sm:$0xff]
    %v928 = vld [vmem:[#allocation8 + $0x1e0] sm:$0xff]
    %v929 = vld [vmem:[#allocation8 + $0x1e8] sm:$0xff]
    %v930 = vld [vmem:[#allocation8 + $0x1f0] sm:$0xff]
    %v931 = vld [vmem:[#allocation8 + $0x1f8] sm:$0xff]
    %v932 = vld [vmem:[#allocation8 + $0x200] sm:$0xff]
    %v933 = vld [vmem:[#allocation8 + $0x208] sm:$0xff]
    %v934 = vld [vmem:[#allocation8 + $0x210] sm:$0xff]
    %v935 = vld [vmem:[#allocation8 + $0x218] sm:$0xff]
    %v936 = vld [vmem:[#allocation8 + $0x220] sm:$0xff]
    %v937 = vld [vmem:[#allocation8 + $0x228] sm:$0xff]
    %v938 = vld [vmem:[#allocation8 + $0x230] sm:$0xff]
    %v939 = vld [vmem:[#allocation8 + $0x238] sm:$0xff]
    %v940 = vld [vmem:[#allocation8 + $0x240] sm:$0xff]
    %v941 = vld [vmem:[#allocation8 + $0x248] sm:$0xff]
    %v942 = vld [vmem:[#allocation8 + $0x250] sm:$0xff]
    %v943 = vld [vmem:[#allocation8 + $0x258] sm:$0xff]
    %v944 = vld [vmem:[#allocation8 + $0x260] sm:$0xff]
    %v945 = vld [vmem:[#allocation8 + $0x268] sm:$0xff]
    %v946 = vld [vmem:[#allocation8 + $0x270] sm:$0xff]
    %v947 = vld [vmem:[#allocation8 + $0x278] sm:$0xff]
    %v948 = vld [vmem:[#allocation8 + $0x280] sm:$0xff]
    %v949 = vld [vmem:[#allocation8 + $0x288] sm:$0xff]
    %v950 = vld [vmem:[#allocation8 + $0x290] sm:$0xff]
    %v951 = vld [vmem:[#allocation8 + $0x298] sm:$0xff]
    %v952 = vld [vmem:[#allocation8 + $0x2a0] sm:$0xff]
    %v953 = vld [vmem:[#allocation8 + $0x2a8] sm:$0xff]
    %v954 = vld [vmem:[#allocation8 + $0x2b0] sm:$0xff]
    %v955 = vld [vmem:[#allocation8 + $0x2b8] sm:$0xff]
    %v956 = vld [vmem:[#allocation8 + $0x2c0] sm:$0xff]
    %v957 = vld [vmem:[#allocation8 + $0x2c8] sm:$0xff]
    %v958 = vld [vmem:[#allocation8 + $0x2d0] sm:$0xff]
    %v959 = vld [vmem:[#allocation8 + $0x2d8] sm:$0xff]
    %v960 = vld [vmem:[#allocation8 + $0x2e0] sm:$0xff]
    %v961 = vld [vmem:[#allocation8 + $0x2e8] sm:$0xff]
    %v962 = vld [vmem:[#allocation8 + $0x2f0] sm:$0xff]
    %v963 = vld [vmem:[#allocation8 + $0x2f8] sm:$0xff]
    %v964 = vld [vmem:[#allocation8 + $0x300] sm:$0xff]
    %v965 = vld [vmem:[#allocation8 + $0x308] sm:$0xff]
    %v966 = vld [vmem:[#allocation8 + $0x310] sm:$0xff]
    %v967 = vld [vmem:[#allocation8 + $0x318] sm:$0xff]
    %v968 = vld [vmem:[#allocation8 + $0x320] sm:$0xff]
    %v969 = vld [vmem:[#allocation8 + $0x328] sm:$0xff]
    %v970 = vld [vmem:[#allocation8 + $0x330] sm:$0xff]
    %v971 = vld [vmem:[#allocation8 + $0x338] sm:$0xff]
    %v972 = vld [vmem:[#allocation8 + $0x340] sm:$0xff]
    %v973 = vld [vmem:[#allocation8 + $0x348] sm:$0xff]
    %v974 = vld [vmem:[#allocation8 + $0x350] sm:$0xff]
    %v975 = vld [vmem:[#allocation8 + $0x358] sm:$0xff]
    %v976 = vld [vmem:[#allocation8 + $0x360] sm:$0xff]
    %v977 = vld [vmem:[#allocation8 + $0x368] sm:$0xff]
    %v978 = vld [vmem:[#allocation8 + $0x370] sm:$0xff]
    %v979 = vld [vmem:[#allocation8 + $0x378] sm:$0xff]
    %v980 = vld [vmem:[#allocation8 + $0x380] sm:$0xff]
    %v981 = vld [vmem:[#allocation8 + $0x388] sm:$0xff]
    %v982 = vld [vmem:[#allocation8 + $0x390] sm:$0xff]
    %v983 = vld [vmem:[#allocation8 + $0x398] sm:$0xff]
    %v984 = vld [vmem:[#allocation8 + $0x3a0] sm:$0xff]
    %v985 = vld [vmem:[#allocation8 + $0x3a8] sm:$0xff]
    %v986 = vld [vmem:[#allocation8 + $0x3b0] sm:$0xff]
    %v987 = vld [vmem:[#allocation8 + $0x3b8] sm:$0xff]
    %v988 = vld [vmem:[#allocation8 + $0x3c0] sm:$0xff]
    %v989 = vld [vmem:[#allocation8 + $0x3c8] sm:$0xff]
    %v990 = vld [vmem:[#allocation8 + $0x3d0] sm:$0xff]
    %v991 = vld [vmem:[#allocation8 + $0x3d8] sm:$0xff]
    %v992 = vld [vmem:[#allocation8 + $0x3e0] sm:$0xff]
    %v993 = vld [vmem:[#allocation8 + $0x3e8] sm:$0xff]
    %v994 = vld [vmem:[#allocation8 + $0x3f0] sm:$0xff]
    %v995 = vld [vmem:[#allocation8 + $0x3f8] sm:$0xff]
    %v996 = vld [vmem:[#allocation8 + $0x400] sm:$0xff]
    %v997 = vld [vmem:[#allocation8 + $0x408] sm:$0xff]
    %v998 = vld [vmem:[#allocation8 + $0x410] sm:$0xff]
    %v999 = vld [vmem:[#allocation8 + $0x418] sm:$0xff]
    %v1000 = vld [vmem:[#allocation8 + $0x420] sm:$0xff]
    %v1001 = vld [vmem:[#allocation8 + $0x428] sm:$0xff]
    %v1002 = vld [vmem:[#allocation8 + $0x430] sm:$0xff]
    %v1003 = vld [vmem:[#allocation8 + $0x438] sm:$0xff]
    %v1004 = vld [vmem:[#allocation8 + $0x440] sm:$0xff]
    %v1005 = vld [vmem:[#allocation8 + $0x448] sm:$0xff]
    %v1006 = vld [vmem:[#allocation8 + $0x450] sm:$0xff]
    %v1007 = vld [vmem:[#allocation8 + $0x458] sm:$0xff]
    %v1008 = vld [vmem:[#allocation8 + $0x460] sm:$0xff]
    %v1009 = vld [vmem:[#allocation8 + $0x468] sm:$0xff]
    %v1010 = vld [vmem:[#allocation8 + $0x470] sm:$0xff]
    %v1011 = vld [vmem:[#allocation8 + $0x478] sm:$0xff]
    %v1012 = vld [vmem:[#allocation8 + $0x480] sm:$0xff]
    %v1013 = vld [vmem:[#allocation8 + $0x488] sm:$0xff]
    %v1014 = vld [vmem:[#allocation8 + $0x490] sm:$0xff]
    %v1015 = vld [vmem:[#allocation8 + $0x498] sm:$0xff]
    %v1016 = vld [vmem:[#allocation8 + $0x4a0] sm:$0xff]
    %v1017 = vld [vmem:[#allocation8 + $0x4a8] sm:$0xff]
    %v1018 = vld [vmem:[#allocation8 + $0x4b0] sm:$0xff]
    %v1019 = vld [vmem:[#allocation8 + $0x4b8] sm:$0xff]
    %v1020 = vld [vmem:[#allocation8 + $0x4c0] sm:$0xff]
    %v1021 = vld [vmem:[#allocation8 + $0x4c8] sm:$0xff]
    %v1022 = vld [vmem:[#allocation8 + $0x4d0] sm:$0xff]
    %v1023 = vld [vmem:[#allocation8 + $0x4d8] sm:$0xff]
    %v1024 = vld [vmem:[#allocation8 + $0x4e0] sm:$0xff]
    %v1025 = vld [vmem:[#allocation8 + $0x4e8] sm:$0xff]
    %v1026 = vld [vmem:[#allocation8 + $0x4f0] sm:$0xff]
    %v1027 = vld [vmem:[#allocation8 + $0x4f8] sm:$0xff]
    %v1028 = vld [vmem:[#allocation8 + $0x500] sm:$0xff]
    %v1029 = vld [vmem:[#allocation8 + $0x508] sm:$0xff]
    %v1030 = vld [vmem:[#allocation8 + $0x510] sm:$0xff]
    %v1031 = vld [vmem:[#allocation8 + $0x518] sm:$0xff]
    %v1032 = vld [vmem:[#allocation8 + $0x520] sm:$0xff]
    %v1033 = vld [vmem:[#allocation8 + $0x528] sm:$0xff]
    %v1034 = vld [vmem:[#allocation8 + $0x530] sm:$0xff]
    %v1035 = vld [vmem:[#allocation8 + $0x538] sm:$0xff]
    %v1036 = vld [vmem:[#allocation8 + $0x540] sm:$0xff]
    %v1037 = vld [vmem:[#allocation8 + $0x548] sm:$0xff]
    %v1038 = vld [vmem:[#allocation8 + $0x550] sm:$0xff]
    %v1039 = vld [vmem:[#allocation8 + $0x558] sm:$0xff]
    %v1040 = vld [vmem:[#allocation8 + $0x560] sm:$0xff]
    %v1041 = vld [vmem:[#allocation8 + $0x568] sm:$0xff]
    %v1042 = vld [vmem:[#allocation8 + $0x570] sm:$0xff]
    %v1043 = vld [vmem:[#allocation8 + $0x578] sm:$0xff]
    %v1044 = vld [vmem:[#allocation8 + $0x580] sm:$0xff]
    %v1045 = vld [vmem:[#allocation8 + $0x588] sm:$0xff]
    %v1046 = vld [vmem:[#allocation8 + $0x590] sm:$0xff]
    %v1047 = vld [vmem:[#allocation8 + $0x598] sm:$0xff]
    %v1048 = vld [vmem:[#allocation8 + $0x5a0] sm:$0xff]
    %v1049 = vld [vmem:[#allocation8 + $0x5a8] sm:$0xff]
    %v1050 = vld [vmem:[#allocation8 + $0x5b0] sm:$0xff]
    %v1051 = vld [vmem:[#allocation8 + $0x5b8] sm:$0xff]
    %v1052 = vld [vmem:[#allocation8 + $0x5c0] sm:$0xff]
    %v1053 = vld [vmem:[#allocation8 + $0x5c8] sm:$0xff]
    %v1054 = vld [vmem:[#allocation8 + $0x5d0] sm:$0xff]
    %v1055 = vld [vmem:[#allocation8 + $0x5d8] sm:$0xff]
    %v1056 = vld [vmem:[#allocation8 + $0x5e0] sm:$0xff]
    %v1057 = vld [vmem:[#allocation8 + $0x5e8] sm:$0xff]
    %v1058 = vld [vmem:[#allocation8 + $0x5f0] sm:$0xff]
    %v1059 = vld [vmem:[#allocation8 + $0x5f8] sm:$0xff]
    %v1060 = vld [vmem:[#allocation8 + $0x600] sm:$0xff]
    %v1061 = vld [vmem:[#allocation8 + $0x608] sm:$0xff]
    %v1062 = vld [vmem:[#allocation8 + $0x610] sm:$0xff]
    %v1063 = vld [vmem:[#allocation8 + $0x618] sm:$0xff]
    %v1064 = vld [vmem:[#allocation8 + $0x620] sm:$0xff]
    %v1065 = vld [vmem:[#allocation8 + $0x628] sm:$0xff]
    %v1066 = vld [vmem:[#allocation8 + $0x630] sm:$0xff]
    %v1067 = vld [vmem:[#allocation8 + $0x638] sm:$0xff]
    %v1068 = vld [vmem:[#allocation8 + $0x640] sm:$0xff]
    %v1069 = vld [vmem:[#allocation8 + $0x648] sm:$0xff]
    %v1070 = vld [vmem:[#allocation8 + $0x650] sm:$0xff]
    %v1071 = vld [vmem:[#allocation8 + $0x658] sm:$0xff]
    %v1072 = vld [vmem:[#allocation8 + $0x660] sm:$0xff]
    %v1073 = vld [vmem:[#allocation8 + $0x668] sm:$0xff]
    %v1074 = vld [vmem:[#allocation8 + $0x670] sm:$0xff]
    %v1075 = vld [vmem:[#allocation8 + $0x678] sm:$0xff]
    %v1076 = vld [vmem:[#allocation8 + $0x680] sm:$0xff]
    %v1077 = vld [vmem:[#allocation8 + $0x688] sm:$0xff]
    %v1078 = vld [vmem:[#allocation8 + $0x690] sm:$0xff]
    %v1079 = vld [vmem:[#allocation8 + $0x698] sm:$0xff]
    %v1080 = vld [vmem:[#allocation8 + $0x6a0] sm:$0xff]
    %v1081 = vld [vmem:[#allocation8 + $0x6a8] sm:$0xff]
    %v1082 = vld [vmem:[#allocation8 + $0x6b0] sm:$0xff]
    %v1083 = vld [vmem:[#allocation8 + $0x6b8] sm:$0xff]
    %v1084 = vld [vmem:[#allocation8 + $0x6c0] sm:$0xff]
    %v1085 = vld [vmem:[#allocation8 + $0x6c8] sm:$0xff]
    %v1086 = vld [vmem:[#allocation8 + $0x6d0] sm:$0xff]
    %v1087 = vld [vmem:[#allocation8 + $0x6d8] sm:$0xff]
    %v1088 = vld [vmem:[#allocation8 + $0x6e0] sm:$0xff]
    %v1089 = vld [vmem:[#allocation8 + $0x6e8] sm:$0xff]
    %v1090 = vld [vmem:[#allocation8 + $0x6f0] sm:$0xff]
    %v1091 = vld [vmem:[#allocation8 + $0x6f8] sm:$0xff]
    %v1092 = vld [vmem:[#allocation8 + $0x700] sm:$0xff]
    %v1093 = vld [vmem:[#allocation8 + $0x708] sm:$0xff]
    %v1094 = vld [vmem:[#allocation8 + $0x710] sm:$0xff]
    %v1095 = vld [vmem:[#allocation8 + $0x718] sm:$0xff]
    %v1096 = vld [vmem:[#allocation8 + $0x720] sm:$0xff]
    %v1097 = vld [vmem:[#allocation8 + $0x728] sm:$0xff]
    %v1098 = vld [vmem:[#allocation8 + $0x730] sm:$0xff]
    %v1099 = vld [vmem:[#allocation8 + $0x738] sm:$0xff]
    %v1100 = vld [vmem:[#allocation8 + $0x740] sm:$0xff]
    %v1101 = vld [vmem:[#allocation8 + $0x748] sm:$0xff]
    %v1102 = vld [vmem:[#allocation8 + $0x750] sm:$0xff]
    %v1103 = vld [vmem:[#allocation8 + $0x758] sm:$0xff]
    %v1104 = vld [vmem:[#allocation8 + $0x760] sm:$0xff]
    %v1105 = vld [vmem:[#allocation8 + $0x768] sm:$0xff]
    %v1106 = vld [vmem:[#allocation8 + $0x770] sm:$0xff]
    %v1107 = vld [vmem:[#allocation8 + $0x778] sm:$0xff]
    %v1108 = vld [vmem:[#allocation8 + $0x780] sm:$0xff]
    %v1109 = vld [vmem:[#allocation8 + $0x788] sm:$0xff]
    %v1110 = vld [vmem:[#allocation8 + $0x790] sm:$0xff]
    %v1111 = vld [vmem:[#allocation8 + $0x798] sm:$0xff]
    %v1112 = vld [vmem:[#allocation8 + $0x7a0] sm:$0xff]
    %v1113 = vld [vmem:[#allocation8 + $0x7a8] sm:$0xff]
    %v1114 = vld [vmem:[#allocation8 + $0x7b0] sm:$0xff]
    %v1115 = vld [vmem:[#allocation8 + $0x7b8] sm:$0xff]
    %v1116 = vld [vmem:[#allocation8 + $0x7c0] sm:$0xff]
    %v1117 = vld [vmem:[#allocation8 + $0x7c8] sm:$0xff]
    %v1118 = vld [vmem:[#allocation8 + $0x7d0] sm:$0xff]
    %v1119 = vld [vmem:[#allocation8 + $0x7d8] sm:$0xff]
    %v1120 = vld [vmem:[#allocation8 + $0x7e0] sm:$0xff]
    %v1121 = vld [vmem:[#allocation8 + $0x7e8] sm:$0xff]
    %v1122 = vld [vmem:[#allocation8 + $0x7f0] sm:$0xff]
    %v1123 = vld [vmem:[#allocation8 + $0x7f8] sm:$0xff]
    %v1124 = vld [vmem:[#allocation8 + $0x800] sm:$0xff]
    %v1125 = vld [vmem:[#allocation8 + $0x808] sm:$0xff]
    %v1126 = vld [vmem:[#allocation8 + $0x810] sm:$0xff]
    %v1127 = vld [vmem:[#allocation8 + $0x818] sm:$0xff]
    %v1128 = vld [vmem:[#allocation8 + $0x820] sm:$0xff]
    %v1129 = vld [vmem:[#allocation8 + $0x828] sm:$0xff]
    %v1130 = vld [vmem:[#allocation8 + $0x830] sm:$0xff]
    %v1131 = vld [vmem:[#allocation8 + $0x838] sm:$0xff]
    %v1132 = vld [vmem:[#allocation8 + $0x840] sm:$0xff]
    %v1133 = vld [vmem:[#allocation8 + $0x848] sm:$0xff]
    %v1134 = vld [vmem:[#allocation8 + $0x850] sm:$0xff]
    %v1135 = vld [vmem:[#allocation8 + $0x858] sm:$0xff]
    %v1136 = vld [vmem:[#allocation8 + $0x860] sm:$0xff]
    %v1137 = vld [vmem:[#allocation8 + $0x868] sm:$0xff]
    %v1138 = vld [vmem:[#allocation8 + $0x870] sm:$0xff]
    %v1139 = vld [vmem:[#allocation8 + $0x878] sm:$0xff]
    %v1140 = vld [vmem:[#allocation8 + $0x880] sm:$0xff]
    %v1141 = vld [vmem:[#allocation8 + $0x888] sm:$0xff]
    %v1142 = vld [vmem:[#allocation8 + $0x890] sm:$0xff]
    %v1143 = vld [vmem:[#allocation8 + $0x898] sm:$0xff]
    %v1144 = vld [vmem:[#allocation8 + $0x8a0] sm:$0xff]
    %v1145 = vld [vmem:[#allocation8 + $0x8a8] sm:$0xff]
    %v1146 = vld [vmem:[#allocation8 + $0x8b0] sm:$0xff]
    %v1147 = vld [vmem:[#allocation8 + $0x8b8] sm:$0xff]
    %v1148 = vld [vmem:[#allocation8 + $0x8c0] sm:$0xff]
    %v1149 = vld [vmem:[#allocation8 + $0x8c8] sm:$0xff]
    %v1150 = vld [vmem:[#allocation8 + $0x8d0] sm:$0xff]
    %v1151 = vld [vmem:[#allocation8 + $0x8d8] sm:$0xff]
    %v1152 = vld [vmem:[#allocation8 + $0x8e0] sm:$0xff]
    %v1153 = vld [vmem:[#allocation8 + $0x8e8] sm:$0xff]
    %v1154 = vld [vmem:[#allocation8 + $0x8f0] sm:$0xff]
    %v1155 = vld [vmem:[#allocation8 + $0x8f8] sm:$0xff]
    %v1156 = vld [vmem:[#allocation8 + $0x900] sm:$0xff]
    %v1157 = vld [vmem:[#allocation8 + $0x908] sm:$0xff]
    %v1158 = vld [vmem:[#allocation8 + $0x910] sm:$0xff]
    %v1159 = vld [vmem:[#allocation8 + $0x918] sm:$0xff]
    %v1160 = vld [vmem:[#allocation8 + $0x920] sm:$0xff]
    %v1161 = vld [vmem:[#allocation8 + $0x928] sm:$0xff]
    %v1162 = vld [vmem:[#allocation8 + $0x930] sm:$0xff]
    %v1163 = vld [vmem:[#allocation8 + $0x938] sm:$0xff]
    %v1164 = vld [vmem:[#allocation8 + $0x940] sm:$0xff]
    %v1165 = vld [vmem:[#allocation8 + $0x948] sm:$0xff]
    %v1166 = vld [vmem:[#allocation8 + $0x950] sm:$0xff]
    %v1167 = vld [vmem:[#allocation8 + $0x958] sm:$0xff]
    %v1168 = vld [vmem:[#allocation8 + $0x960] sm:$0xff]
    %v1169 = vld [vmem:[#allocation8 + $0x968] sm:$0xff]
    %v1170 = vld [vmem:[#allocation8 + $0x970] sm:$0xff]
    %v1171 = vld [vmem:[#allocation8 + $0x978] sm:$0xff]
    %v1172 = vld [vmem:[#allocation8 + $0x980] sm:$0xff]
    %v1173 = vld [vmem:[#allocation8 + $0x988] sm:$0xff]
    %v1174 = vld [vmem:[#allocation8 + $0x990] sm:$0xff]
    %v1175 = vld [vmem:[#allocation8 + $0x998] sm:$0xff]
    %v1176 = vld [vmem:[#allocation8 + $0x9a0] sm:$0xff]
    %v1177 = vld [vmem:[#allocation8 + $0x9a8] sm:$0xff]
    %v1178 = vld [vmem:[#allocation8 + $0x9b0] sm:$0xff]
    %v1179 = vld [vmem:[#allocation8 + $0x9b8] sm:$0xff]
    %v1180 = vld [vmem:[#allocation8 + $0x9c0] sm:$0xff]
    %v1181 = vld [vmem:[#allocation8 + $0x9c8] sm:$0xff]
    %v1182 = vld [vmem:[#allocation8 + $0x9d0] sm:$0xff]
    %v1183 = vld [vmem:[#allocation8 + $0x9d8] sm:$0xff]
    %v1184 = vld [vmem:[#allocation8 + $0x9e0] sm:$0xff]
    %v1185 = vld [vmem:[#allocation8 + $0x9e8] sm:$0xff]
    %v1186 = vld [vmem:[#allocation8 + $0x9f0] sm:$0xff]
    %v1187 = vld [vmem:[#allocation8 + $0x9f8] sm:$0xff]
    %v1188 = vld [vmem:[#allocation8 + $0xa00] sm:$0xff]
    %v1189 = vld [vmem:[#allocation8 + $0xa08] sm:$0xff]
    %v1190 = vld [vmem:[#allocation8 + $0xa10] sm:$0xff]
    %v1191 = vld [vmem:[#allocation8 + $0xa18] sm:$0xff]
    %v1192 = vld [vmem:[#allocation8 + $0xa20] sm:$0xff]
    %v1193 = vld [vmem:[#allocation8 + $0xa28] sm:$0xff]
    %v1194 = vld [vmem:[#allocation8 + $0xa30] sm:$0xff]
    %v1195 = vld [vmem:[#allocation8 + $0xa38] sm:$0xff]
    %v1196 = vld [vmem:[#allocation8 + $0xa40] sm:$0xff]
    %v1197 = vld [vmem:[#allocation8 + $0xa48] sm:$0xff]
    %v1198 = vld [vmem:[#allocation8 + $0xa50] sm:$0xff]
    %v1199 = vld [vmem:[#allocation8 + $0xa58] sm:$0xff]
    %v1200 = vld [vmem:[#allocation8 + $0xa60] sm:$0xff]
    %v1201 = vld [vmem:[#allocation8 + $0xa68] sm:$0xff]
    %v1202 = vld [vmem:[#allocation8 + $0xa70] sm:$0xff]
    %v1203 = vld [vmem:[#allocation8 + $0xa78] sm:$0xff]
    %v1204 = vld [vmem:[#allocation8 + $0xa80] sm:$0xff]
    %v1205 = vld [vmem:[#allocation8 + $0xa88] sm:$0xff]
    %v1206 = vld [vmem:[#allocation8 + $0xa90] sm:$0xff]
    %v1207 = vld [vmem:[#allocation8 + $0xa98] sm:$0xff]
    %v1208 = vld [vmem:[#allocation8 + $0xaa0] sm:$0xff]
    %v1209 = vld [vmem:[#allocation8 + $0xaa8] sm:$0xff]
    %v1210 = vld [vmem:[#allocation8 + $0xab0] sm:$0xff]
    %v1211 = vld [vmem:[#allocation8 + $0xab8] sm:$0xff]
    %v1212 = vld [vmem:[#allocation8 + $0xac0] sm:$0xff]
    %v1213 = vld [vmem:[#allocation8 + $0xac8] sm:$0xff]
    %v1214 = vld [vmem:[#allocation8 + $0xad0] sm:$0xff]
    %v1215 = vld [vmem:[#allocation8 + $0xad8] sm:$0xff]
    %v1216 = vld [vmem:[#allocation8 + $0xae0] sm:$0xff]
    %v1217 = vld [vmem:[#allocation8 + $0xae8] sm:$0xff]
    %v1218 = vld [vmem:[#allocation8 + $0xaf0] sm:$0xff]
    %v1219 = vld [vmem:[#allocation8 + $0xaf8] sm:$0xff]
    %v1220 = vld [vmem:[#allocation8 + $0xb00] sm:$0xff]
    %v1221 = vld [vmem:[#allocation8 + $0xb08] sm:$0xff]
    %v1222 = vld [vmem:[#allocation8 + $0xb10] sm:$0xff]
    %v1223 = vld [vmem:[#allocation8 + $0xb18] sm:$0xff]
    %v1224 = vld [vmem:[#allocation8 + $0xb20] sm:$0xff]
    %v1225 = vld [vmem:[#allocation8 + $0xb28] sm:$0xff]
    %v1226 = vld [vmem:[#allocation8 + $0xb30] sm:$0xff]
    %v1227 = vld [vmem:[#allocation8 + $0xb38] sm:$0xff]
    %v1228 = vld [vmem:[#allocation8 + $0xb40] sm:$0xff]
    %v1229 = vld [vmem:[#allocation8 + $0xb48] sm:$0xff]
    %v1230 = vld [vmem:[#allocation8 + $0xb50] sm:$0xff]
    %v1231 = vld [vmem:[#allocation8 + $0xb58] sm:$0xff]
    %v1232 = vld [vmem:[#allocation8 + $0xb60] sm:$0xff]
    %v1233 = vld [vmem:[#allocation8 + $0xb68] sm:$0xff]
    %v1234 = vld [vmem:[#allocation8 + $0xb70] sm:$0xff]
    %v1235 = vld [vmem:[#allocation8 + $0xb78] sm:$0xff]
    %v1236 = vld [vmem:[#allocation10] sm:$0x3]
    %v1238 = vperm.slane %v1236, 0
    %v1239 = vperm.slane %v1236, 1
    %v1610 = vunpack.c.l.b16 %v868
    %v1611 = vunpack.c.h.b16 %v868
    %v1612 = vunpack.c.l.b16 %v869
    %v1613 = vunpack.c.h.b16 %v869
    %v1614 = vunpack.c.l.b16 %v870
    %v1615 = vunpack.c.h.b16 %v870
    %v1616 = vunpack.c.l.b16 %v871
    %v1617 = vunpack.c.h.b16 %v871
    %v1618 = vunpack.c.l.b16 %v872
    %v1619 = vunpack.c.h.b16 %v872
    %v1620 = vunpack.c.l.b16 %v873
    %v1621 = vunpack.c.h.b16 %v873
    %v1622 = vunpack.c.l.b16 %v874
    %v1623 = vunpack.c.h.b16 %v874
    %v1624 = vunpack.c.l.b16 %v875
    %v1625 = vunpack.c.h.b16 %v875
    %v1626 = vunpack.c.l.b16 %v876
    %v1627 = vunpack.c.h.b16 %v876
    %v1628 = vunpack.c.l.b16 %v877
    %v1629 = vunpack.c.h.b16 %v877
    %v1630 = vunpack.c.l.b16 %v878
    %v1631 = vunpack.c.h.b16 %v878
    %v1632 = vunpack.c.l.b16 %v879
    %v1633 = vunpack.c.h.b16 %v879
    %v1634 = vunpack.c.l.b16 %v880
    %v1635 = vunpack.c.h.b16 %v880
    %v1636 = vunpack.c.l.b16 %v881
    %v1637 = vunpack.c.h.b16 %v881
    %v1638 = vunpack.c.l.b16 %v882
    %v1639 = vunpack.c.h.b16 %v882
    %v1640 = vunpack.c.l.b16 %v883
    %v1641 = vunpack.c.h.b16 %v883
    %v1642 = vunpack.c.l.b16 %v884
    %v1643 = vunpack.c.h.b16 %v884
    %v1644 = vunpack.c.l.b16 %v885
    %v1645 = vunpack.c.h.b16 %v885
    %v1646 = vunpack.c.l.b16 %v886
    %v1647 = vunpack.c.h.b16 %v886
    %v1648 = vunpack.c.l.b16 %v887
    %v1649 = vunpack.c.h.b16 %v887
    %v1650 = vunpack.c.l.b16 %v888
    %v1651 = vunpack.c.h.b16 %v888
    %v1652 = vunpack.c.l.b16 %v889
    %v1653 = vunpack.c.h.b16 %v889
    %v1654 = vunpack.c.l.b16 %v890
    %v1655 = vunpack.c.h.b16 %v890
    %v1656 = vunpack.c.l.b16 %v891
    %v1657 = vunpack.c.h.b16 %v891
    %v1658 = vunpack.c.l.b16 %v892
    %v1659 = vunpack.c.h.b16 %v892
    %v1660 = vunpack.c.l.b16 %v893
    %v1661 = vunpack.c.h.b16 %v893
    %v1662 = vunpack.c.l.b16 %v894
    %v1663 = vunpack.c.h.b16 %v894
    %v1664 = vunpack.c.l.b16 %v895
    %v1665 = vunpack.c.h.b16 %v895
    %v1666 = vunpack.c.l.b16 %v896
    %v1667 = vunpack.c.h.b16 %v896
    %v1668 = vunpack.c.l.b16 %v897
    %v1669 = vunpack.c.h.b16 %v897
    %v1670 = vunpack.c.l.b16 %v898
    %v1671 = vunpack.c.h.b16 %v898
    %v1672 = vunpack.c.l.b16 %v899
    %v1673 = vunpack.c.h.b16 %v899
    %v1674 = vunpack.c.l.b16 %v900
    %v1675 = vunpack.c.h.b16 %v900
    %v1676 = vunpack.c.l.b16 %v901
    %v1677 = vunpack.c.h.b16 %v901
    %v1678 = vunpack.c.l.b16 %v902
    %v1679 = vunpack.c.h.b16 %v902
    %v1680 = vunpack.c.l.b16 %v903
    %v1681 = vunpack.c.h.b16 %v903
    %v1682 = vunpack.c.l.b16 %v904
    %v1683 = vunpack.c.h.b16 %v904
    %v1684 = vunpack.c.l.b16 %v905
    %v1685 = vunpack.c.h.b16 %v905
    %v1686 = vunpack.c.l.b16 %v906
    %v1687 = vunpack.c.h.b16 %v906
    %v1688 = vunpack.c.l.b16 %v907
    %v1689 = vunpack.c.h.b16 %v907
    %v1690 = vunpack.c.l.b16 %v908
    %v1691 = vunpack.c.h.b16 %v908
    %v1692 = vunpack.c.l.b16 %v909
    %v1693 = vunpack.c.h.b16 %v909
    %v1694 = vunpack.c.l.b16 %v910
    %v1695 = vunpack.c.h.b16 %v910
    %v1696 = vunpack.c.l.b16 %v911
    %v1697 = vunpack.c.h.b16 %v911
    %v1698 = vunpack.c.l.b16 %v912
    %v1699 = vunpack.c.h.b16 %v912
    %v1700 = vunpack.c.l.b16 %v913
    %v1701 = vunpack.c.h.b16 %v913
    %v1702 = vunpack.c.l.b16 %v914
    %v1703 = vunpack.c.h.b16 %v914
    %v1704 = vunpack.c.l.b16 %v915
    %v1705 = vunpack.c.h.b16 %v915
    %v1706 = vunpack.c.l.b16 %v916
    %v1707 = vunpack.c.h.b16 %v916
    %v1708 = vunpack.c.l.b16 %v917
    %v1709 = vunpack.c.h.b16 %v917
    %v1710 = vunpack.c.l.b16 %v918
    %v1711 = vunpack.c.h.b16 %v918
    %v1712 = vunpack.c.l.b16 %v919
    %v1713 = vunpack.c.h.b16 %v919
    %v1714 = vunpack.c.l.b16 %v920
    %v1715 = vunpack.c.h.b16 %v920
    %v1716 = vunpack.c.l.b16 %v921
    %v1717 = vunpack.c.h.b16 %v921
    %v1718 = vunpack.c.l.b16 %v922
    %v1719 = vunpack.c.h.b16 %v922
    %v1720 = vunpack.c.l.b16 %v923
    %v1721 = vunpack.c.h.b16 %v923
    %v1722 = vunpack.c.l.b16 %v924
    %v1723 = vunpack.c.h.b16 %v924
    %v1724 = vunpack.c.l.b16 %v925
    %v1725 = vunpack.c.h.b16 %v925
    %v1726 = vunpack.c.l.b16 %v926
    %v1727 = vunpack.c.h.b16 %v926
    %v1728 = vunpack.c.l.b16 %v927
    %v1729 = vunpack.c.h.b16 %v927
    %v1730 = vunpack.c.l.b16 %v928
    %v1731 = vunpack.c.h.b16 %v928
    %v1732 = vunpack.c.l.b16 %v929
    %v1733 = vunpack.c.h.b16 %v929
    %v1734 = vunpack.c.l.b16 %v930
    %v1735 = vunpack.c.h.b16 %v930
    %v1736 = vunpack.c.l.b16 %v931
    %v1737 = vunpack.c.h.b16 %v931
    %v1738 = vunpack.c.l.b16 %v932
    %v1739 = vunpack.c.h.b16 %v932
    %v1740 = vunpack.c.l.b16 %v933
    %v1741 = vunpack.c.h.b16 %v933
    %v1742 = vunpack.c.l.b16 %v934
    %v1743 = vunpack.c.h.b16 %v934
    %v1744 = vunpack.c.l.b16 %v935
    %v1745 = vunpack.c.h.b16 %v935
    %v1746 = vunpack.c.l.b16 %v936
    %v1747 = vunpack.c.h.b16 %v936
    %v1748 = vunpack.c.l.b16 %v937
    %v1749 = vunpack.c.h.b16 %v937
    %v1750 = vunpack.c.l.b16 %v938
    %v1751 = vunpack.c.h.b16 %v938
    %v1752 = vunpack.c.l.b16 %v939
    %v1753 = vunpack.c.h.b16 %v939
    %v1754 = vunpack.c.l.b16 %v940
    %v1755 = vunpack.c.h.b16 %v940
    %v1756 = vunpack.c.l.b16 %v941
    %v1757 = vunpack.c.h.b16 %v941
    %v1758 = vunpack.c.l.b16 %v942
    %v1759 = vunpack.c.h.b16 %v942
    %v1760 = vunpack.c.l.b16 %v943
    %v1761 = vunpack.c.h.b16 %v943
    %v1762 = vunpack.c.l.b16 %v944
    %v1763 = vunpack.c.h.b16 %v944
    %v1764 = vunpack.c.l.b16 %v945
    %v1765 = vunpack.c.h.b16 %v945
    %v1766 = vunpack.c.l.b16 %v946
    %v1767 = vunpack.c.h.b16 %v946
    %v1768 = vunpack.c.l.b16 %v947
    %v1769 = vunpack.c.h.b16 %v947
    %v1770 = vunpack.c.l.b16 %v948
    %v1771 = vunpack.c.h.b16 %v948
    %v1772 = vunpack.c.l.b16 %v949
    %v1773 = vunpack.c.h.b16 %v949
    %v1774 = vunpack.c.l.b16 %v950
    %v1775 = vunpack.c.h.b16 %v950
    %v1776 = vunpack.c.l.b16 %v951
    %v1777 = vunpack.c.h.b16 %v951
    %v1778 = vunpack.c.l.b16 %v952
    %v1779 = vunpack.c.h.b16 %v952
    %v1780 = vunpack.c.l.b16 %v953
    %v1781 = vunpack.c.h.b16 %v953
    %v1782 = vunpack.c.l.b16 %v954
    %v1783 = vunpack.c.h.b16 %v954
    %v1784 = vunpack.c.l.b16 %v955
    %v1785 = vunpack.c.h.b16 %v955
    %v1786 = vunpack.c.l.b16 %v956
    %v1787 = vunpack.c.h.b16 %v956
    %v1788 = vunpack.c.l.b16 %v957
    %v1789 = vunpack.c.h.b16 %v957
    %v1790 = vunpack.c.l.b16 %v958
    %v1791 = vunpack.c.h.b16 %v958
    %v1792 = vunpack.c.l.b16 %v959
    %v1793 = vunpack.c.h.b16 %v959
    %v1794 = vunpack.c.l.b16 %v960
    %v1795 = vunpack.c.h.b16 %v960
    %v1796 = vunpack.c.l.b16 %v961
    %v1797 = vunpack.c.h.b16 %v961
    %v1798 = vunpack.c.l.b16 %v962
    %v1799 = vunpack.c.h.b16 %v962
    %v1800 = vunpack.c.l.b16 %v963
    %v1801 = vunpack.c.h.b16 %v963
    %v1802 = vunpack.c.l.b16 %v964
    %v1803 = vunpack.c.h.b16 %v964
    %v1804 = vunpack.c.l.b16 %v965
    %v1805 = vunpack.c.h.b16 %v965
    %v1806 = vunpack.c.l.b16 %v966
    %v1807 = vunpack.c.h.b16 %v966
    %v1808 = vunpack.c.l.b16 %v967
    %v1809 = vunpack.c.h.b16 %v967
    %v1810 = vunpack.c.l.b16 %v968
    %v1811 = vunpack.c.h.b16 %v968
    %v1812 = vunpack.c.l.b16 %v969
    %v1813 = vunpack.c.h.b16 %v969
    %v1814 = vunpack.c.l.b16 %v970
    %v1815 = vunpack.c.h.b16 %v970
    %v1816 = vunpack.c.l.b16 %v971
    %v1817 = vunpack.c.h.b16 %v971
    %v1818 = vunpack.c.l.b16 %v972
    %v1819 = vunpack.c.h.b16 %v972
    %v1820 = vunpack.c.l.b16 %v973
    %v1821 = vunpack.c.h.b16 %v973
    %v1822 = vunpack.c.l.b16 %v974
    %v1823 = vunpack.c.h.b16 %v974
    %v1824 = vunpack.c.l.b16 %v975
    %v1825 = vunpack.c.h.b16 %v975
    %v1826 = vunpack.c.l.b16 %v976
    %v1827 = vunpack.c.h.b16 %v976
    %v1828 = vunpack.c.l.b16 %v977
    %v1829 = vunpack.c.h.b16 %v977
    %v1830 = vunpack.c.l.b16 %v978
    %v1831 = vunpack.c.h.b16 %v978
    %v1832 = vunpack.c.l.b16 %v979
    %v1833 = vunpack.c.h.b16 %v979
    %v1834 = vunpack.c.l.b16 %v980
    %v1835 = vunpack.c.h.b16 %v980
    %v1836 = vunpack.c.l.b16 %v981
    %v1837 = vunpack.c.h.b16 %v981
    %v1838 = vunpack.c.l.b16 %v982
    %v1839 = vunpack.c.h.b16 %v982
    %v1840 = vunpack.c.l.b16 %v983
    %v1841 = vunpack.c.h.b16 %v983
    %v1842 = vunpack.c.l.b16 %v984
    %v1843 = vunpack.c.h.b16 %v984
    %v1844 = vunpack.c.l.b16 %v985
    %v1845 = vunpack.c.h.b16 %v985
    %v1846 = vunpack.c.l.b16 %v986
    %v1847 = vunpack.c.h.b16 %v986
    %v1848 = vunpack.c.l.b16 %v987
    %v1849 = vunpack.c.h.b16 %v987
    %v1850 = vunpack.c.l.b16 %v988
    %v1851 = vunpack.c.h.b16 %v988
    %v1852 = vunpack.c.l.b16 %v989
    %v1853 = vunpack.c.h.b16 %v989
    %v1854 = vunpack.c.l.b16 %v990
    %v1855 = vunpack.c.h.b16 %v990
    %v1856 = vunpack.c.l.b16 %v991
    %v1857 = vunpack.c.h.b16 %v991
    %v1858 = vunpack.c.l.b16 %v992
    %v1859 = vunpack.c.h.b16 %v992
    %v1860 = vunpack.c.l.b16 %v993
    %v1861 = vunpack.c.h.b16 %v993
    %v1862 = vunpack.c.l.b16 %v994
    %v1863 = vunpack.c.h.b16 %v994
    %v1864 = vunpack.c.l.b16 %v995
    %v1865 = vunpack.c.h.b16 %v995
    %v1866 = vunpack.c.l.b16 %v996
    %v1867 = vunpack.c.h.b16 %v996
    %v1868 = vunpack.c.l.b16 %v997
    %v1869 = vunpack.c.h.b16 %v997
    %v1870 = vunpack.c.l.b16 %v998
    %v1871 = vunpack.c.h.b16 %v998
    %v1872 = vunpack.c.l.b16 %v999
    %v1873 = vunpack.c.h.b16 %v999
    %v1874 = vunpack.c.l.b16 %v1000
    %v1875 = vunpack.c.h.b16 %v1000
    %v1876 = vunpack.c.l.b16 %v1001
    %v1877 = vunpack.c.h.b16 %v1001
    %v1878 = vunpack.c.l.b16 %v1002
    %v1879 = vunpack.c.h.b16 %v1002
    %v1880 = vunpack.c.l.b16 %v1003
    %v1881 = vunpack.c.h.b16 %v1003
    %v1882 = vunpack.c.l.b16 %v1004
    %v1883 = vunpack.c.h.b16 %v1004
    %v1884 = vunpack.c.l.b16 %v1005
    %v1885 = vunpack.c.h.b16 %v1005
    %v1886 = vunpack.c.l.b16 %v1006
    %v1887 = vunpack.c.h.b16 %v1006
    %v1888 = vunpack.c.l.b16 %v1007
    %v1889 = vunpack.c.h.b16 %v1007
    %v1890 = vunpack.c.l.b16 %v1008
    %v1891 = vunpack.c.h.b16 %v1008
    %v1892 = vunpack.c.l.b16 %v1009
    %v1893 = vunpack.c.h.b16 %v1009
    %v1894 = vunpack.c.l.b16 %v1010
    %v1895 = vunpack.c.h.b16 %v1010
    %v1896 = vunpack.c.l.b16 %v1011
    %v1897 = vunpack.c.h.b16 %v1011
    %v1898 = vunpack.c.l.b16 %v1012
    %v1899 = vunpack.c.h.b16 %v1012
    %v1900 = vunpack.c.l.b16 %v1013
    %v1901 = vunpack.c.h.b16 %v1013
    %v1902 = vunpack.c.l.b16 %v1014
    %v1903 = vunpack.c.h.b16 %v1014
    %v1904 = vunpack.c.l.b16 %v1015
    %v1905 = vunpack.c.h.b16 %v1015
    %v1906 = vunpack.c.l.b16 %v1016
    %v1907 = vunpack.c.h.b16 %v1016
    %v1908 = vunpack.c.l.b16 %v1017
    %v1909 = vunpack.c.h.b16 %v1017
    %v1910 = vunpack.c.l.b16 %v1018
    %v1911 = vunpack.c.h.b16 %v1018
    %v1912 = vunpack.c.l.b16 %v1019
    %v1913 = vunpack.c.h.b16 %v1019
    %v1914 = vunpack.c.l.b16 %v1020
    %v1915 = vunpack.c.h.b16 %v1020
    %v1916 = vunpack.c.l.b16 %v1021
    %v1917 = vunpack.c.h.b16 %v1021
    %v1918 = vunpack.c.l.b16 %v1022
    %v1919 = vunpack.c.h.b16 %v1022
    %v1920 = vunpack.c.l.b16 %v1023
    %v1921 = vunpack.c.h.b16 %v1023
    %v1922 = vunpack.c.l.b16 %v1024
    %v1923 = vunpack.c.h.b16 %v1024
    %v1924 = vunpack.c.l.b16 %v1025
    %v1925 = vunpack.c.h.b16 %v1025
    %v1926 = vunpack.c.l.b16 %v1026
    %v1927 = vunpack.c.h.b16 %v1026
    %v1928 = vunpack.c.l.b16 %v1027
    %v1929 = vunpack.c.h.b16 %v1027
    %v1930 = vunpack.c.l.b16 %v1028
    %v1931 = vunpack.c.h.b16 %v1028
    %v1932 = vunpack.c.l.b16 %v1029
    %v1933 = vunpack.c.h.b16 %v1029
    %v1934 = vunpack.c.l.b16 %v1030
    %v1935 = vunpack.c.h.b16 %v1030
    %v1936 = vunpack.c.l.b16 %v1031
    %v1937 = vunpack.c.h.b16 %v1031
    %v1938 = vunpack.c.l.b16 %v1032
    %v1939 = vunpack.c.h.b16 %v1032
    %v1940 = vunpack.c.l.b16 %v1033
    %v1941 = vunpack.c.h.b16 %v1033
    %v1942 = vunpack.c.l.b16 %v1034
    %v1943 = vunpack.c.h.b16 %v1034
    %v1944 = vunpack.c.l.b16 %v1035
    %v1945 = vunpack.c.h.b16 %v1035
    %v1946 = vunpack.c.l.b16 %v1036
    %v1947 = vunpack.c.h.b16 %v1036
    %v1948 = vunpack.c.l.b16 %v1037
    %v1949 = vunpack.c.h.b16 %v1037
    %v1950 = vunpack.c.l.b16 %v1038
    %v1951 = vunpack.c.h.b16 %v1038
    %v1952 = vunpack.c.l.b16 %v1039
    %v1953 = vunpack.c.h.b16 %v1039
    %v1954 = vunpack.c.l.b16 %v1040
    %v1955 = vunpack.c.h.b16 %v1040
    %v1956 = vunpack.c.l.b16 %v1041
    %v1957 = vunpack.c.h.b16 %v1041
    %v1958 = vunpack.c.l.b16 %v1042
    %v1959 = vunpack.c.h.b16 %v1042
    %v1960 = vunpack.c.l.b16 %v1043
    %v1961 = vunpack.c.h.b16 %v1043
    %v1962 = vunpack.c.l.b16 %v1044
    %v1963 = vunpack.c.h.b16 %v1044
    %v1964 = vunpack.c.l.b16 %v1045
    %v1965 = vunpack.c.h.b16 %v1045
    %v1966 = vunpack.c.l.b16 %v1046
    %v1967 = vunpack.c.h.b16 %v1046
    %v1968 = vunpack.c.l.b16 %v1047
    %v1969 = vunpack.c.h.b16 %v1047
    %v1970 = vunpack.c.l.b16 %v1048
    %v1971 = vunpack.c.h.b16 %v1048
    %v1972 = vunpack.c.l.b16 %v1049
    %v1973 = vunpack.c.h.b16 %v1049
    %v1974 = vunpack.c.l.b16 %v1050
    %v1975 = vunpack.c.h.b16 %v1050
    %v1976 = vunpack.c.l.b16 %v1051
    %v1977 = vunpack.c.h.b16 %v1051
    %v1978 = vunpack.c.l.b16 %v1052
    %v1979 = vunpack.c.h.b16 %v1052
    %v1980 = vunpack.c.l.b16 %v1053
    %v1981 = vunpack.c.h.b16 %v1053
    %v1982 = vunpack.c.l.b16 %v1054
    %v1983 = vunpack.c.h.b16 %v1054
    %v1984 = vunpack.c.l.b16 %v1055
    %v1985 = vunpack.c.h.b16 %v1055
    %v1986 = vunpack.c.l.b16 %v1056
    %v1987 = vunpack.c.h.b16 %v1056
    %v1988 = vunpack.c.l.b16 %v1057
    %v1989 = vunpack.c.h.b16 %v1057
    %v1990 = vunpack.c.l.b16 %v1058
    %v1991 = vunpack.c.h.b16 %v1058
    %v1992 = vunpack.c.l.b16 %v1059
    %v1993 = vunpack.c.h.b16 %v1059
    %v1994 = vunpack.c.l.b16 %v1060
    %v1995 = vunpack.c.h.b16 %v1060
    %v1996 = vunpack.c.l.b16 %v1061
    %v1997 = vunpack.c.h.b16 %v1061
    %v1998 = vunpack.c.l.b16 %v1062
    %v1999 = vunpack.c.h.b16 %v1062
    %v2000 = vunpack.c.l.b16 %v1063
    %v2001 = vunpack.c.h.b16 %v1063
    %v2002 = vunpack.c.l.b16 %v1064
    %v2003 = vunpack.c.h.b16 %v1064
    %v2004 = vunpack.c.l.b16 %v1065
    %v2005 = vunpack.c.h.b16 %v1065
    %v2006 = vunpack.c.l.b16 %v1066
    %v2007 = vunpack.c.h.b16 %v1066
    %v2008 = vunpack.c.l.b16 %v1067
    %v2009 = vunpack.c.h.b16 %v1067
    %v2010 = vunpack.c.l.b16 %v1068
    %v2011 = vunpack.c.h.b16 %v1068
    %v2012 = vunpack.c.l.b16 %v1069
    %v2013 = vunpack.c.h.b16 %v1069
    %v2014 = vunpack.c.l.b16 %v1070
    %v2015 = vunpack.c.h.b16 %v1070
    %v2016 = vunpack.c.l.b16 %v1071
    %v2017 = vunpack.c.h.b16 %v1071
    %v2018 = vunpack.c.l.b16 %v1072
    %v2019 = vunpack.c.h.b16 %v1072
    %v2020 = vunpack.c.l.b16 %v1073
    %v2021 = vunpack.c.h.b16 %v1073
    %v2022 = vunpack.c.l.b16 %v1074
    %v2023 = vunpack.c.h.b16 %v1074
    %v2024 = vunpack.c.l.b16 %v1075
    %v2025 = vunpack.c.h.b16 %v1075
    %v2026 = vunpack.c.l.b16 %v1076
    %v2027 = vunpack.c.h.b16 %v1076
    %v2028 = vunpack.c.l.b16 %v1077
    %v2029 = vunpack.c.h.b16 %v1077
    %v2030 = vunpack.c.l.b16 %v1078
    %v2031 = vunpack.c.h.b16 %v1078
    %v2032 = vunpack.c.l.b16 %v1079
    %v2033 = vunpack.c.h.b16 %v1079
    %v2034 = vunpack.c.l.b16 %v1080
    %v2035 = vunpack.c.h.b16 %v1080
    %v2036 = vunpack.c.l.b16 %v1081
    %v2037 = vunpack.c.h.b16 %v1081
    %v2038 = vunpack.c.l.b16 %v1082
    %v2039 = vunpack.c.h.b16 %v1082
    %v2040 = vunpack.c.l.b16 %v1083
    %v2041 = vunpack.c.h.b16 %v1083
    %v2042 = vunpack.c.l.b16 %v1084
    %v2043 = vunpack.c.h.b16 %v1084
    %v2044 = vunpack.c.l.b16 %v1085
    %v2045 = vunpack.c.h.b16 %v1085
    %v2046 = vunpack.c.l.b16 %v1086
    %v2047 = vunpack.c.h.b16 %v1086
    %v2048 = vunpack.c.l.b16 %v1087
    %v2049 = vunpack.c.h.b16 %v1087
    %v2050 = vunpack.c.l.b16 %v1088
    %v2051 = vunpack.c.h.b16 %v1088
    %v2052 = vunpack.c.l.b16 %v1089
    %v2053 = vunpack.c.h.b16 %v1089
    %v2054 = vunpack.c.l.b16 %v1090
    %v2055 = vunpack.c.h.b16 %v1090
    %v2056 = vunpack.c.l.b16 %v1091
    %v2057 = vunpack.c.h.b16 %v1091
    %v2058 = vunpack.c.l.b16 %v1092
    %v2059 = vunpack.c.h.b16 %v1092
    %v2060 = vunpack.c.l.b16 %v1093
    %v2061 = vunpack.c.h.b16 %v1093
    %v2062 = vunpack.c.l.b16 %v1094
    %v2063 = vunpack.c.h.b16 %v1094
    %v2064 = vunpack.c.l.b16 %v1095
    %v2065 = vunpack.c.h.b16 %v1095
    %v2066 = vunpack.c.l.b16 %v1096
    %v2067 = vunpack.c.h.b16 %v1096
    %v2068 = vunpack.c.l.b16 %v1097
    %v2069 = vunpack.c.h.b16 %v1097
    %v2070 = vunpack.c.l.b16 %v1098
    %v2071 = vunpack.c.h.b16 %v1098
    %v2072 = vunpack.c.l.b16 %v1099
    %v2073 = vunpack.c.h.b16 %v1099
    %v2074 = vunpack.c.l.b16 %v1100
    %v2075 = vunpack.c.h.b16 %v1100
    %v2076 = vunpack.c.l.b16 %v1101
    %v2077 = vunpack.c.h.b16 %v1101
    %v2078 = vunpack.c.l.b16 %v1102
    %v2079 = vunpack.c.h.b16 %v1102
    %v2080 = vunpack.c.l.b16 %v1103
    %v2081 = vunpack.c.h.b16 %v1103
    %v2082 = vunpack.c.l.b16 %v1104
    %v2083 = vunpack.c.h.b16 %v1104
    %v2084 = vunpack.c.l.b16 %v1105
    %v2085 = vunpack.c.h.b16 %v1105
    %v2086 = vunpack.c.l.b16 %v1106
    %v2087 = vunpack.c.h.b16 %v1106
    %v2088 = vunpack.c.l.b16 %v1107
    %v2089 = vunpack.c.h.b16 %v1107
    %v2090 = vunpack.c.l.b16 %v1108
    %v2091 = vunpack.c.h.b16 %v1108
    %v2092 = vunpack.c.l.b16 %v1109
    %v2093 = vunpack.c.h.b16 %v1109
    %v2094 = vunpack.c.l.b16 %v1110
    %v2095 = vunpack.c.h.b16 %v1110
    %v2096 = vunpack.c.l.b16 %v1111
    %v2097 = vunpack.c.h.b16 %v1111
    %v2098 = vunpack.c.l.b16 %v1112
    %v2099 = vunpack.c.h.b16 %v1112
    %v2100 = vunpack.c.l.b16 %v1113
    %v2101 = vunpack.c.h.b16 %v1113
    %v2102 = vunpack.c.l.b16 %v1114
    %v2103 = vunpack.c.h.b16 %v1114
    %v2104 = vunpack.c.l.b16 %v1115
    %v2105 = vunpack.c.h.b16 %v1115
    %v2106 = vunpack.c.l.b16 %v1116
    %v2107 = vunpack.c.h.b16 %v1116
    %v2108 = vunpack.c.l.b16 %v1117
    %v2109 = vunpack.c.h.b16 %v1117
    %v2110 = vunpack.c.l.b16 %v1118
    %v2111 = vunpack.c.h.b16 %v1118
    %v2112 = vunpack.c.l.b16 %v1119
    %v2113 = vunpack.c.h.b16 %v1119
    %v2114 = vunpack.c.l.b16 %v1120
    %v2115 = vunpack.c.h.b16 %v1120
    %v2116 = vunpack.c.l.b16 %v1121
    %v2117 = vunpack.c.h.b16 %v1121
    %v2118 = vunpack.c.l.b16 %v1122
    %v2119 = vunpack.c.h.b16 %v1122
    %v2120 = vunpack.c.l.b16 %v1123
    %v2121 = vunpack.c.h.b16 %v1123
    %v2122 = vunpack.c.l.b16 %v1124
    %v2123 = vunpack.c.h.b16 %v1124
    %v2124 = vunpack.c.l.b16 %v1125
    %v2125 = vunpack.c.h.b16 %v1125
    %v2126 = vunpack.c.l.b16 %v1126
    %v2127 = vunpack.c.h.b16 %v1126
    %v2128 = vunpack.c.l.b16 %v1127
    %v2129 = vunpack.c.h.b16 %v1127
    %v2130 = vunpack.c.l.b16 %v1128
    %v2131 = vunpack.c.h.b16 %v1128
    %v2132 = vunpack.c.l.b16 %v1129
    %v2133 = vunpack.c.h.b16 %v1129
    %v2134 = vunpack.c.l.b16 %v1130
    %v2135 = vunpack.c.h.b16 %v1130
    %v2136 = vunpack.c.l.b16 %v1131
    %v2137 = vunpack.c.h.b16 %v1131
    %v2138 = vunpack.c.l.b16 %v1132
    %v2139 = vunpack.c.h.b16 %v1132
    %v2140 = vunpack.c.l.b16 %v1133
    %v2141 = vunpack.c.h.b16 %v1133
    %v2142 = vunpack.c.l.b16 %v1134
    %v2143 = vunpack.c.h.b16 %v1134
    %v2144 = vunpack.c.l.b16 %v1135
    %v2145 = vunpack.c.h.b16 %v1135
    %v2146 = vunpack.c.l.b16 %v1136
    %v2147 = vunpack.c.h.b16 %v1136
    %v2148 = vunpack.c.l.b16 %v1137
    %v2149 = vunpack.c.h.b16 %v1137
    %v2150 = vunpack.c.l.b16 %v1138
    %v2151 = vunpack.c.h.b16 %v1138
    %v2152 = vunpack.c.l.b16 %v1139
    %v2153 = vunpack.c.h.b16 %v1139
    %v2154 = vunpack.c.l.b16 %v1140
    %v2155 = vunpack.c.h.b16 %v1140
    %v2156 = vunpack.c.l.b16 %v1141
    %v2157 = vunpack.c.h.b16 %v1141
    %v2158 = vunpack.c.l.b16 %v1142
    %v2159 = vunpack.c.h.b16 %v1142
    %v2160 = vunpack.c.l.b16 %v1143
    %v2161 = vunpack.c.h.b16 %v1143
    %v2162 = vunpack.c.l.b16 %v1144
    %v2163 = vunpack.c.h.b16 %v1144
    %v2164 = vunpack.c.l.b16 %v1145
    %v2165 = vunpack.c.h.b16 %v1145
    %v2166 = vunpack.c.l.b16 %v1146
    %v2167 = vunpack.c.h.b16 %v1146
    %v2168 = vunpack.c.l.b16 %v1147
    %v2169 = vunpack.c.h.b16 %v1147
    %v2170 = vunpack.c.l.b16 %v1148
    %v2171 = vunpack.c.h.b16 %v1148
    %v2172 = vunpack.c.l.b16 %v1149
    %v2173 = vunpack.c.h.b16 %v1149
    %v2174 = vunpack.c.l.b16 %v1150
    %v2175 = vunpack.c.h.b16 %v1150
    %v2176 = vunpack.c.l.b16 %v1151
    %v2177 = vunpack.c.h.b16 %v1151
    %v2178 = vunpack.c.l.b16 %v1152
    %v2179 = vunpack.c.h.b16 %v1152
    %v2180 = vunpack.c.l.b16 %v1153
    %v2181 = vunpack.c.h.b16 %v1153
    %v2182 = vunpack.c.l.b16 %v1154
    %v2183 = vunpack.c.h.b16 %v1154
    %v2184 = vunpack.c.l.b16 %v1155
    %v2185 = vunpack.c.h.b16 %v1155
    %v2186 = vunpack.c.l.b16 %v1156
    %v2187 = vunpack.c.h.b16 %v1156
    %v2188 = vunpack.c.l.b16 %v1157
    %v2189 = vunpack.c.h.b16 %v1157
    %v2190 = vunpack.c.l.b16 %v1158
    %v2191 = vunpack.c.h.b16 %v1158
    %v2192 = vunpack.c.l.b16 %v1159
    %v2193 = vunpack.c.h.b16 %v1159
    %v2194 = vunpack.c.l.b16 %v1160
    %v2195 = vunpack.c.h.b16 %v1160
    %v2196 = vunpack.c.l.b16 %v1161
    %v2197 = vunpack.c.h.b16 %v1161
    %v2198 = vunpack.c.l.b16 %v1162
    %v2199 = vunpack.c.h.b16 %v1162
    %v2200 = vunpack.c.l.b16 %v1163
    %v2201 = vunpack.c.h.b16 %v1163
    %v2202 = vunpack.c.l.b16 %v1164
    %v2203 = vunpack.c.h.b16 %v1164
    %v2204 = vunpack.c.l.b16 %v1165
    %v2205 = vunpack.c.h.b16 %v1165
    %v2206 = vunpack.c.l.b16 %v1166
    %v2207 = vunpack.c.h.b16 %v1166
    %v2208 = vunpack.c.l.b16 %v1167
    %v2209 = vunpack.c.h.b16 %v1167
    %v2210 = vunpack.c.l.b16 %v1168
    %v2211 = vunpack.c.h.b16 %v1168
    %v2212 = vunpack.c.l.b16 %v1169
    %v2213 = vunpack.c.h.b16 %v1169
    %v2214 = vunpack.c.l.b16 %v1170
    %v2215 = vunpack.c.h.b16 %v1170
    %v2216 = vunpack.c.l.b16 %v1171
    %v2217 = vunpack.c.h.b16 %v1171
    %v2218 = vunpack.c.l.b16 %v1172
    %v2219 = vunpack.c.h.b16 %v1172
    %v2220 = vunpack.c.l.b16 %v1173
    %v2221 = vunpack.c.h.b16 %v1173
    %v2222 = vunpack.c.l.b16 %v1174
    %v2223 = vunpack.c.h.b16 %v1174
    %v2224 = vunpack.c.l.b16 %v1175
    %v2225 = vunpack.c.h.b16 %v1175
    %v2226 = vunpack.c.l.b16 %v1176
    %v2227 = vunpack.c.h.b16 %v1176
    %v2228 = vunpack.c.l.b16 %v1177
    %v2229 = vunpack.c.h.b16 %v1177
    %v2230 = vunpack.c.l.b16 %v1178
    %v2231 = vunpack.c.h.b16 %v1178
    %v2232 = vunpack.c.l.b16 %v1179
    %v2233 = vunpack.c.h.b16 %v1179
    %v2234 = vunpack.c.l.b16 %v1180
    %v2235 = vunpack.c.h.b16 %v1180
    %v2236 = vunpack.c.l.b16 %v1181
    %v2237 = vunpack.c.h.b16 %v1181
    %v2238 = vunpack.c.l.b16 %v1182
    %v2239 = vunpack.c.h.b16 %v1182
    %v2240 = vunpack.c.l.b16 %v1183
    %v2241 = vunpack.c.h.b16 %v1183
    %v2242 = vunpack.c.l.b16 %v1184
    %v2243 = vunpack.c.h.b16 %v1184
    %v2244 = vunpack.c.l.b16 %v1185
    %v2245 = vunpack.c.h.b16 %v1185
    %v2246 = vunpack.c.l.b16 %v1186
    %v2247 = vunpack.c.h.b16 %v1186
    %v2248 = vunpack.c.l.b16 %v1187
    %v2249 = vunpack.c.h.b16 %v1187
    %v2250 = vunpack.c.l.b16 %v1188
    %v2251 = vunpack.c.h.b16 %v1188
    %v2252 = vunpack.c.l.b16 %v1189
    %v2253 = vunpack.c.h.b16 %v1189
    %v2254 = vunpack.c.l.b16 %v1190
    %v2255 = vunpack.c.h.b16 %v1190
    %v2256 = vunpack.c.l.b16 %v1191
    %v2257 = vunpack.c.h.b16 %v1191
    %v2258 = vunpack.c.l.b16 %v1192
    %v2259 = vunpack.c.h.b16 %v1192
    %v2260 = vunpack.c.l.b16 %v1193
    %v2261 = vunpack.c.h.b16 %v1193
    %v2262 = vunpack.c.l.b16 %v1194
    %v2263 = vunpack.c.h.b16 %v1194
    %v2264 = vunpack.c.l.b16 %v1195
    %v2265 = vunpack.c.h.b16 %v1195
    %v2266 = vunpack.c.l.b16 %v1196
    %v2267 = vunpack.c.h.b16 %v1196
    %v2268 = vunpack.c.l.b16 %v1197
    %v2269 = vunpack.c.h.b16 %v1197
    %v2270 = vunpack.c.l.b16 %v1198
    %v2271 = vunpack.c.h.b16 %v1198
    %v2272 = vunpack.c.l.b16 %v1199
    %v2273 = vunpack.c.h.b16 %v1199
    %v2274 = vunpack.c.l.b16 %v1200
    %v2275 = vunpack.c.h.b16 %v1200
    %v2276 = vunpack.c.l.b16 %v1201
    %v2277 = vunpack.c.h.b16 %v1201
    %v2278 = vunpack.c.l.b16 %v1202
    %v2279 = vunpack.c.h.b16 %v1202
    %v2280 = vunpack.c.l.b16 %v1203
    %v2281 = vunpack.c.h.b16 %v1203
    %v2282 = vunpack.c.l.b16 %v1204
    %v2283 = vunpack.c.h.b16 %v1204
    %v2284 = vunpack.c.l.b16 %v1205
    %v2285 = vunpack.c.h.b16 %v1205
    %v2286 = vunpack.c.l.b16 %v1206
    %v2287 = vunpack.c.h.b16 %v1206
    %v2288 = vunpack.c.l.b16 %v1207
    %v2289 = vunpack.c.h.b16 %v1207
    %v2290 = vunpack.c.l.b16 %v1208
    %v2291 = vunpack.c.h.b16 %v1208
    %v2292 = vunpack.c.l.b16 %v1209
    %v2293 = vunpack.c.h.b16 %v1209
    %v2294 = vunpack.c.l.b16 %v1210
    %v2295 = vunpack.c.h.b16 %v1210
    %v2296 = vunpack.c.l.b16 %v1211
    %v2297 = vunpack.c.h.b16 %v1211
    %v2298 = vunpack.c.l.b16 %v1212
    %v2299 = vunpack.c.h.b16 %v1212
    %v2300 = vunpack.c.l.b16 %v1213
    %v2301 = vunpack.c.h.b16 %v1213
    %v2302 = vunpack.c.l.b16 %v1214
    %v2303 = vunpack.c.h.b16 %v1214
    %v2304 = vunpack.c.l.b16 %v1215
    %v2305 = vunpack.c.h.b16 %v1215
    %v2306 = vunpack.c.l.b16 %v1216
    %v2307 = vunpack.c.h.b16 %v1216
    %v2308 = vunpack.c.l.b16 %v1217
    %v2309 = vunpack.c.h.b16 %v1217
    %v2310 = vunpack.c.l.b16 %v1218
    %v2311 = vunpack.c.h.b16 %v1218
    %v2312 = vunpack.c.l.b16 %v1219
    %v2313 = vunpack.c.h.b16 %v1219
    %v2314 = vunpack.c.l.b16 %v1220
    %v2315 = vunpack.c.h.b16 %v1220
    %v2316 = vunpack.c.l.b16 %v1221
    %v2317 = vunpack.c.h.b16 %v1221
    %v2318 = vunpack.c.l.b16 %v1222
    %v2319 = vunpack.c.h.b16 %v1222
    %v2320 = vunpack.c.l.b16 %v1223
    %v2321 = vunpack.c.h.b16 %v1223
    %v2322 = vunpack.c.l.b16 %v1224
    %v2323 = vunpack.c.h.b16 %v1224
    %v2324 = vunpack.c.l.b16 %v1225
    %v2325 = vunpack.c.h.b16 %v1225
    %v2326 = vunpack.c.l.b16 %v1226
    %v2327 = vunpack.c.h.b16 %v1226
    %v2328 = vunpack.c.l.b16 %v1227
    %v2329 = vunpack.c.h.b16 %v1227
    %v2330 = vunpack.c.l.b16 %v1228
    %v2331 = vunpack.c.h.b16 %v1228
    %v2332 = vunpack.c.l.b16 %v1229
    %v2333 = vunpack.c.h.b16 %v1229
    %v2334 = vunpack.c.l.b16 %v1230
    %v2335 = vunpack.c.h.b16 %v1230
    %v2336 = vunpack.c.l.b16 %v1231
    %v2337 = vunpack.c.h.b16 %v1231
    %v2338 = vunpack.c.l.b16 %v1232
    %v2339 = vunpack.c.h.b16 %v1232
    %v2340 = vunpack.c.l.b16 %v1233
    %v2341 = vunpack.c.h.b16 %v1233
    %v2342 = vunpack.c.l.b16 %v1234
    %v2343 = vunpack.c.h.b16 %v1234
    %v2344 = vunpack.c.l.b16 %v1235
    %v2345 = vunpack.c.h.b16 %v1235
    %v2346 = vpack.c.b16 %v1612, %v1610
    %v2347 = vpack.c.b16 %v1613, %v1611
    %v2348 = vpack.c.b16 %v1616, %v1614
    %v2349 = vpack.c.b16 %v1617, %v1615
    %v2350 = vpack.c.b16 %v1620, %v1618
    %v2351 = vpack.c.b16 %v1621, %v1619
    %v2352 = vpack.c.b16 %v1624, %v1622
    %v2353 = vpack.c.b16 %v1625, %v1623
    %v2354 = vpack.c.b16 %v1628, %v1626
    %v2355 = vpack.c.b16 %v1629, %v1627
    %v2356 = vpack.c.b16 %v1632, %v1630
    %v2357 = vpack.c.b16 %v1633, %v1631
    %v2358 = vpack.c.b16 %v1636, %v1634
    %v2359 = vpack.c.b16 %v1637, %v1635
    %v2360 = vpack.c.b16 %v1640, %v1638
    %v2361 = vpack.c.b16 %v1641, %v1639
    %v2362 = vpack.c.b16 %v1644, %v1642
    %v2363 = vpack.c.b16 %v1645, %v1643
    %v2364 = vpack.c.b16 %v1648, %v1646
    %v2365 = vpack.c.b16 %v1649, %v1647
    %v2366 = vpack.c.b16 %v1652, %v1650
    %v2367 = vpack.c.b16 %v1653, %v1651
    %v2368 = vpack.c.b16 %v1656, %v1654
    %v2369 = vpack.c.b16 %v1657, %v1655
    %v2370 = vpack.c.b16 %v1660, %v1658
    %v2371 = vpack.c.b16 %v1661, %v1659
    %v2372 = vpack.c.b16 %v1664, %v1662
    %v2373 = vpack.c.b16 %v1665, %v1663
    %v2374 = vpack.c.b16 %v1668, %v1666
    %v2375 = vpack.c.b16 %v1669, %v1667
    %v2376 = vpack.c.b16 %v1672, %v1670
    %v2377 = vpack.c.b16 %v1673, %v1671
    %v2378 = vpack.c.b16 %v1676, %v1674
    %v2379 = vpack.c.b16 %v1677, %v1675
    %v2380 = vpack.c.b16 %v1680, %v1678
    %v2381 = vpack.c.b16 %v1681, %v1679
    %v2382 = vpack.c.b16 %v1684, %v1682
    %v2383 = vpack.c.b16 %v1685, %v1683
    %v2384 = vpack.c.b16 %v1688, %v1686
    %v2385 = vpack.c.b16 %v1689, %v1687
    %v2386 = vpack.c.b16 %v1692, %v1690
    %v2387 = vpack.c.b16 %v1693, %v1691
    %v2388 = vpack.c.b16 %v1696, %v1694
    %v2389 = vpack.c.b16 %v1697, %v1695
    %v2390 = vpack.c.b16 %v1700, %v1698
    %v2391 = vpack.c.b16 %v1701, %v1699
    %v2392 = vpack.c.b16 %v1704, %v1702
    %v2393 = vpack.c.b16 %v1705, %v1703
    %v2394 = vpack.c.b16 %v1708, %v1706
    %v2395 = vpack.c.b16 %v1709, %v1707
    %v2396 = vpack.c.b16 %v1712, %v1710
    %v2397 = vpack.c.b16 %v1713, %v1711
    %v2398 = vpack.c.b16 %v1716, %v1714
    %v2399 = vpack.c.b16 %v1717, %v1715
    %v2400 = vpack.c.b16 %v1720, %v1718
    %v2401 = vpack.c.b16 %v1721, %v1719
    %v2402 = vpack.c.b16 %v1724, %v1722
    %v2403 = vpack.c.b16 %v1725, %v1723
    %v2404 = vpack.c.b16 %v1728, %v1726
    %v2405 = vpack.c.b16 %v1729, %v1727
    %v2406 = vpack.c.b16 %v1732, %v1730
    %v2407 = vpack.c.b16 %v1733, %v1731
    %v2408 = vpack.c.b16 %v1736, %v1734
    %v2409 = vpack.c.b16 %v1737, %v1735
    %v2410 = vpack.c.b16 %v1740, %v1738
    %v2411 = vpack.c.b16 %v1741, %v1739
    %v2412 = vpack.c.b16 %v1744, %v1742
    %v2413 = vpack.c.b16 %v1745, %v1743
    %v2414 = vpack.c.b16 %v1748, %v1746
    %v2415 = vpack.c.b16 %v1749, %v1747
    %v2416 = vpack.c.b16 %v1752, %v1750
    %v2417 = vpack.c.b16 %v1753, %v1751
    %v2418 = vpack.c.b16 %v1756, %v1754
    %v2419 = vpack.c.b16 %v1757, %v1755
    %v2420 = vpack.c.b16 %v1760, %v1758
    %v2421 = vpack.c.b16 %v1761, %v1759
    %v2422 = vpack.c.b16 %v1764, %v1762
    %v2423 = vpack.c.b16 %v1765, %v1763
    %v2424 = vpack.c.b16 %v1768, %v1766
    %v2425 = vpack.c.b16 %v1769, %v1767
    %v2426 = vpack.c.b16 %v1772, %v1770
    %v2427 = vpack.c.b16 %v1773, %v1771
    %v2428 = vpack.c.b16 %v1776, %v1774
    %v2429 = vpack.c.b16 %v1777, %v1775
    %v2430 = vpack.c.b16 %v1780, %v1778
    %v2431 = vpack.c.b16 %v1781, %v1779
    %v2432 = vpack.c.b16 %v1784, %v1782
    %v2433 = vpack.c.b16 %v1785, %v1783
    %v2434 = vpack.c.b16 %v1788, %v1786
    %v2435 = vpack.c.b16 %v1789, %v1787
    %v2436 = vpack.c.b16 %v1792, %v1790
    %v2437 = vpack.c.b16 %v1793, %v1791
    %v2438 = vpack.c.b16 %v1796, %v1794
    %v2439 = vpack.c.b16 %v1797, %v1795
    %v2440 = vpack.c.b16 %v1800, %v1798
    %v2441 = vpack.c.b16 %v1801, %v1799
    %v2442 = vpack.c.b16 %v1804, %v1802
    %v2443 = vpack.c.b16 %v1805, %v1803
    %v2444 = vpack.c.b16 %v1808, %v1806
    %v2445 = vpack.c.b16 %v1809, %v1807
    %v2446 = vpack.c.b16 %v1812, %v1810
    %v2447 = vpack.c.b16 %v1813, %v1811
    %v2448 = vpack.c.b16 %v1816, %v1814
    %v2449 = vpack.c.b16 %v1817, %v1815
    %v2450 = vpack.c.b16 %v1820, %v1818
    %v2451 = vpack.c.b16 %v1821, %v1819
    %v2452 = vpack.c.b16 %v1824, %v1822
    %v2453 = vpack.c.b16 %v1825, %v1823
    %v2454 = vpack.c.b16 %v1828, %v1826
    %v2455 = vpack.c.b16 %v1829, %v1827
    %v2456 = vpack.c.b16 %v1832, %v1830
    %v2457 = vpack.c.b16 %v1833, %v1831
    %v2458 = vpack.c.b16 %v1836, %v1834
    %v2459 = vpack.c.b16 %v1837, %v1835
    %v2460 = vpack.c.b16 %v1840, %v1838
    %v2461 = vpack.c.b16 %v1841, %v1839
    %v2462 = vpack.c.b16 %v1844, %v1842
    %v2463 = vpack.c.b16 %v1845, %v1843
    %v2464 = vpack.c.b16 %v1848, %v1846
    %v2465 = vpack.c.b16 %v1849, %v1847
    %v2466 = vpack.c.b16 %v1852, %v1850
    %v2467 = vpack.c.b16 %v1853, %v1851
    %v2468 = vpack.c.b16 %v1856, %v1854
    %v2469 = vpack.c.b16 %v1857, %v1855
    %v2470 = vpack.c.b16 %v1860, %v1858
    %v2471 = vpack.c.b16 %v1861, %v1859
    %v2472 = vpack.c.b16 %v1864, %v1862
    %v2473 = vpack.c.b16 %v1865, %v1863
    %v2474 = vpack.c.b16 %v1868, %v1866
    %v2475 = vpack.c.b16 %v1869, %v1867
    %v2476 = vpack.c.b16 %v1872, %v1870
    %v2477 = vpack.c.b16 %v1873, %v1871
    %v2478 = vpack.c.b16 %v1876, %v1874
    %v2479 = vpack.c.b16 %v1877, %v1875
    %v2480 = vpack.c.b16 %v1880, %v1878
    %v2481 = vpack.c.b16 %v1881, %v1879
    %v2482 = vpack.c.b16 %v1884, %v1882
    %v2483 = vpack.c.b16 %v1885, %v1883
    %v2484 = vpack.c.b16 %v1888, %v1886
    %v2485 = vpack.c.b16 %v1889, %v1887
    %v2486 = vpack.c.b16 %v1892, %v1890
    %v2487 = vpack.c.b16 %v1893, %v1891
    %v2488 = vpack.c.b16 %v1896, %v1894
    %v2489 = vpack.c.b16 %v1897, %v1895
    %v2490 = vpack.c.b16 %v1900, %v1898
    %v2491 = vpack.c.b16 %v1901, %v1899
    %v2492 = vpack.c.b16 %v1904, %v1902
    %v2493 = vpack.c.b16 %v1905, %v1903
    %v2494 = vpack.c.b16 %v1908, %v1906
    %v2495 = vpack.c.b16 %v1909, %v1907
    %v2496 = vpack.c.b16 %v1912, %v1910
    %v2497 = vpack.c.b16 %v1913, %v1911
    %v2498 = vpack.c.b16 %v1916, %v1914
    %v2499 = vpack.c.b16 %v1917, %v1915
    %v2500 = vpack.c.b16 %v1920, %v1918
    %v2501 = vpack.c.b16 %v1921, %v1919
    %v2502 = vpack.c.b16 %v1924, %v1922
    %v2503 = vpack.c.b16 %v1925, %v1923
    %v2504 = vpack.c.b16 %v1928, %v1926
    %v2505 = vpack.c.b16 %v1929, %v1927
    %v2506 = vpack.c.b16 %v1932, %v1930
    %v2507 = vpack.c.b16 %v1933, %v1931
    %v2508 = vpack.c.b16 %v1936, %v1934
    %v2509 = vpack.c.b16 %v1937, %v1935
    %v2510 = vpack.c.b16 %v1940, %v1938
    %v2511 = vpack.c.b16 %v1941, %v1939
    %v2512 = vpack.c.b16 %v1944, %v1942
    %v2513 = vpack.c.b16 %v1945, %v1943
    %v2514 = vpack.c.b16 %v1948, %v1946
    %v2515 = vpack.c.b16 %v1949, %v1947
    %v2516 = vpack.c.b16 %v1952, %v1950
    %v2517 = vpack.c.b16 %v1953, %v1951
    %v2518 = vpack.c.b16 %v1956, %v1954
    %v2519 = vpack.c.b16 %v1957, %v1955
    %v2520 = vpack.c.b16 %v1960, %v1958
    %v2521 = vpack.c.b16 %v1961, %v1959
    %v2522 = vpack.c.b16 %v1964, %v1962
    %v2523 = vpack.c.b16 %v1965, %v1963
    %v2524 = vpack.c.b16 %v1968, %v1966
    %v2525 = vpack.c.b16 %v1969, %v1967
    %v2526 = vpack.c.b16 %v1972, %v1970
    %v2527 = vpack.c.b16 %v1973, %v1971
    %v2528 = vpack.c.b16 %v1976, %v1974
    %v2529 = vpack.c.b16 %v1977, %v1975
    %v2530 = vpack.c.b16 %v1980, %v1978
    %v2531 = vpack.c.b16 %v1981, %v1979
    %v2532 = vpack.c.b16 %v1984, %v1982
    %v2533 = vpack.c.b16 %v1985, %v1983
    %v2534 = vpack.c.b16 %v1988, %v1986
    %v2535 = vpack.c.b16 %v1989, %v1987
    %v2536 = vpack.c.b16 %v1992, %v1990
    %v2537 = vpack.c.b16 %v1993, %v1991
    %v2538 = vpack.c.b16 %v1996, %v1994
    %v2539 = vpack.c.b16 %v1997, %v1995
    %v2540 = vpack.c.b16 %v2000, %v1998
    %v2541 = vpack.c.b16 %v2001, %v1999
    %v2542 = vpack.c.b16 %v2004, %v2002
    %v2543 = vpack.c.b16 %v2005, %v2003
    %v2544 = vpack.c.b16 %v2008, %v2006
    %v2545 = vpack.c.b16 %v2009, %v2007
    %v2546 = vpack.c.b16 %v2012, %v2010
    %v2547 = vpack.c.b16 %v2013, %v2011
    %v2548 = vpack.c.b16 %v2016, %v2014
    %v2549 = vpack.c.b16 %v2017, %v2015
    %v2550 = vpack.c.b16 %v2020, %v2018
    %v2551 = vpack.c.b16 %v2021, %v2019
    %v2552 = vpack.c.b16 %v2024, %v2022
    %v2553 = vpack.c.b16 %v2025, %v2023
    %v2554 = vpack.c.b16 %v2028, %v2026
    %v2555 = vpack.c.b16 %v2029, %v2027
    %v2556 = vpack.c.b16 %v2032, %v2030
    %v2557 = vpack.c.b16 %v2033, %v2031
    %v2558 = vpack.c.b16 %v2036, %v2034
    %v2559 = vpack.c.b16 %v2037, %v2035
    %v2560 = vpack.c.b16 %v2040, %v2038
    %v2561 = vpack.c.b16 %v2041, %v2039
    %v2562 = vpack.c.b16 %v2044, %v2042
    %v2563 = vpack.c.b16 %v2045, %v2043
    %v2564 = vpack.c.b16 %v2048, %v2046
    %v2565 = vpack.c.b16 %v2049, %v2047
    %v2566 = vpack.c.b16 %v2052, %v2050
    %v2567 = vpack.c.b16 %v2053, %v2051
    %v2568 = vpack.c.b16 %v2056, %v2054
    %v2569 = vpack.c.b16 %v2057, %v2055
    %v2570 = vpack.c.b16 %v2060, %v2058
    %v2571 = vpack.c.b16 %v2061, %v2059
    %v2572 = vpack.c.b16 %v2064, %v2062
    %v2573 = vpack.c.b16 %v2065, %v2063
    %v2574 = vpack.c.b16 %v2068, %v2066
    %v2575 = vpack.c.b16 %v2069, %v2067
    %v2576 = vpack.c.b16 %v2072, %v2070
    %v2577 = vpack.c.b16 %v2073, %v2071
    %v2578 = vpack.c.b16 %v2076, %v2074
    %v2579 = vpack.c.b16 %v2077, %v2075
    %v2580 = vpack.c.b16 %v2080, %v2078
    %v2581 = vpack.c.b16 %v2081, %v2079
    %v2582 = vpack.c.b16 %v2084, %v2082
    %v2583 = vpack.c.b16 %v2085, %v2083
    %v2584 = vpack.c.b16 %v2088, %v2086
    %v2585 = vpack.c.b16 %v2089, %v2087
    %v2586 = vpack.c.b16 %v2092, %v2090
    %v2587 = vpack.c.b16 %v2093, %v2091
    %v2588 = vpack.c.b16 %v2096, %v2094
    %v2589 = vpack.c.b16 %v2097, %v2095
    %v2590 = vpack.c.b16 %v2100, %v2098
    %v2591 = vpack.c.b16 %v2101, %v2099
    %v2592 = vpack.c.b16 %v2104, %v2102
    %v2593 = vpack.c.b16 %v2105, %v2103
    %v2594 = vpack.c.b16 %v2108, %v2106
    %v2595 = vpack.c.b16 %v2109, %v2107
    %v2596 = vpack.c.b16 %v2112, %v2110
    %v2597 = vpack.c.b16 %v2113, %v2111
    %v2598 = vpack.c.b16 %v2116, %v2114
    %v2599 = vpack.c.b16 %v2117, %v2115
    %v2600 = vpack.c.b16 %v2120, %v2118
    %v2601 = vpack.c.b16 %v2121, %v2119
    %v2602 = vpack.c.b16 %v2124, %v2122
    %v2603 = vpack.c.b16 %v2125, %v2123
    %v2604 = vpack.c.b16 %v2128, %v2126
    %v2605 = vpack.c.b16 %v2129, %v2127
    %v2606 = vpack.c.b16 %v2132, %v2130
    %v2607 = vpack.c.b16 %v2133, %v2131
    %v2608 = vpack.c.b16 %v2136, %v2134
    %v2609 = vpack.c.b16 %v2137, %v2135
    %v2610 = vpack.c.b16 %v2140, %v2138
    %v2611 = vpack.c.b16 %v2141, %v2139
    %v2612 = vpack.c.b16 %v2144, %v2142
    %v2613 = vpack.c.b16 %v2145, %v2143
    %v2614 = vpack.c.b16 %v2148, %v2146
    %v2615 = vpack.c.b16 %v2149, %v2147
    %v2616 = vpack.c.b16 %v2152, %v2150
    %v2617 = vpack.c.b16 %v2153, %v2151
    %v2618 = vpack.c.b16 %v2156, %v2154
    %v2619 = vpack.c.b16 %v2157, %v2155
    %v2620 = vpack.c.b16 %v2160, %v2158
    %v2621 = vpack.c.b16 %v2161, %v2159
    %v2622 = vpack.c.b16 %v2164, %v2162
    %v2623 = vpack.c.b16 %v2165, %v2163
    %v2624 = vpack.c.b16 %v2168, %v2166
    %v2625 = vpack.c.b16 %v2169, %v2167
    %v2626 = vpack.c.b16 %v2172, %v2170
    %v2627 = vpack.c.b16 %v2173, %v2171
    %v2628 = vpack.c.b16 %v2176, %v2174
    %v2629 = vpack.c.b16 %v2177, %v2175
    %v2630 = vpack.c.b16 %v2180, %v2178
    %v2631 = vpack.c.b16 %v2181, %v2179
    %v2632 = vpack.c.b16 %v2184, %v2182
    %v2633 = vpack.c.b16 %v2185, %v2183
    %v2634 = vpack.c.b16 %v2188, %v2186
    %v2635 = vpack.c.b16 %v2189, %v2187
    %v2636 = vpack.c.b16 %v2192, %v2190
    %v2637 = vpack.c.b16 %v2193, %v2191
    %v2638 = vpack.c.b16 %v2196, %v2194
    %v2639 = vpack.c.b16 %v2197, %v2195
    %v2640 = vpack.c.b16 %v2200, %v2198
    %v2641 = vpack.c.b16 %v2201, %v2199
    %v2642 = vpack.c.b16 %v2204, %v2202
    %v2643 = vpack.c.b16 %v2205, %v2203
    %v2644 = vpack.c.b16 %v2208, %v2206
    %v2645 = vpack.c.b16 %v2209, %v2207
    %v2646 = vpack.c.b16 %v2212, %v2210
    %v2647 = vpack.c.b16 %v2213, %v2211
    %v2648 = vpack.c.b16 %v2216, %v2214
    %v2649 = vpack.c.b16 %v2217, %v2215
    %v2650 = vpack.c.b16 %v2220, %v2218
    %v2651 = vpack.c.b16 %v2221, %v2219
    %v2652 = vpack.c.b16 %v2224, %v2222
    %v2653 = vpack.c.b16 %v2225, %v2223
    %v2654 = vpack.c.b16 %v2228, %v2226
    %v2655 = vpack.c.b16 %v2229, %v2227
    %v2656 = vpack.c.b16 %v2232, %v2230
    %v2657 = vpack.c.b16 %v2233, %v2231
    %v2658 = vpack.c.b16 %v2236, %v2234
    %v2659 = vpack.c.b16 %v2237, %v2235
    %v2660 = vpack.c.b16 %v2240, %v2238
    %v2661 = vpack.c.b16 %v2241, %v2239
    %v2662 = vpack.c.b16 %v2244, %v2242
    %v2663 = vpack.c.b16 %v2245, %v2243
    %v2664 = vpack.c.b16 %v2248, %v2246
    %v2665 = vpack.c.b16 %v2249, %v2247
    %v2666 = vpack.c.b16 %v2252, %v2250
    %v2667 = vpack.c.b16 %v2253, %v2251
    %v2668 = vpack.c.b16 %v2256, %v2254
    %v2669 = vpack.c.b16 %v2257, %v2255
    %v2670 = vpack.c.b16 %v2260, %v2258
    %v2671 = vpack.c.b16 %v2261, %v2259
    %v2672 = vpack.c.b16 %v2264, %v2262
    %v2673 = vpack.c.b16 %v2265, %v2263
    %v2674 = vpack.c.b16 %v2268, %v2266
    %v2675 = vpack.c.b16 %v2269, %v2267
    %v2676 = vpack.c.b16 %v2272, %v2270
    %v2677 = vpack.c.b16 %v2273, %v2271
    %v2678 = vpack.c.b16 %v2276, %v2274
    %v2679 = vpack.c.b16 %v2277, %v2275
    %v2680 = vpack.c.b16 %v2280, %v2278
    %v2681 = vpack.c.b16 %v2281, %v2279
    %v2682 = vpack.c.b16 %v2284, %v2282
    %v2683 = vpack.c.b16 %v2285, %v2283
    %v2684 = vpack.c.b16 %v2288, %v2286
    %v2685 = vpack.c.b16 %v2289, %v2287
    %v2686 = vpack.c.b16 %v2292, %v2290
    %v2687 = vpack.c.b16 %v2293, %v2291
    %v2688 = vpack.c.b16 %v2296, %v2294
    %v2689 = vpack.c.b16 %v2297, %v2295
    %v2690 = vpack.c.b16 %v2300, %v2298
    %v2691 = vpack.c.b16 %v2301, %v2299
    %v2692 = vpack.c.b16 %v2304, %v2302
    %v2693 = vpack.c.b16 %v2305, %v2303
    %v2694 = vpack.c.b16 %v2308, %v2306
    %v2695 = vpack.c.b16 %v2309, %v2307
    %v2696 = vpack.c.b16 %v2312, %v2310
    %v2697 = vpack.c.b16 %v2313, %v2311
    %v2698 = vpack.c.b16 %v2316, %v2314
    %v2699 = vpack.c.b16 %v2317, %v2315
    %v2700 = vpack.c.b16 %v2320, %v2318
    %v2701 = vpack.c.b16 %v2321, %v2319
    %v2702 = vpack.c.b16 %v2324, %v2322
    %v2703 = vpack.c.b16 %v2325, %v2323
    %v2704 = vpack.c.b16 %v2328, %v2326
    %v2705 = vpack.c.b16 %v2329, %v2327
    %v2706 = vpack.c.b16 %v2332, %v2330
    %v2707 = vpack.c.b16 %v2333, %v2331
    %v2708 = vpack.c.b16 %v2336, %v2334
    %v2709 = vpack.c.b16 %v2337, %v2335
    %v2710 = vpack.c.b16 %v2340, %v2338
    %v2711 = vpack.c.b16 %v2341, %v2339
    %v2712 = vpack.c.b16 %v2344, %v2342
    %v2713 = vpack.c.b16 %v2345, %v2343
    %3082 = vmatpush.bf16.msra.mxu0 %v2360
    %3083 = vmatpush.bf16.msra.mxu0 %v2358
    %3084 = vmatpush.bf16.msra.mxu0 %v2356
    %3085 = vmatpush.bf16.msra.mxu0 %v2354
    %3086 = vmatpush.bf16.msra.mxu0 %v2352
    %3087 = vmatpush.bf16.msra.mxu0 %v2350
    %3088 = vmatpush.bf16.msra.mxu0 %v2348
    %3089 = vmatpush.bf16.msra.mxu0 %v2346
    %3090 = vmatmul.bf16.gmra.mxu0 %v845
    %v3091 = vpop.f32.mrf.mxu0
    %v3092 = vadd.f32 %v1238, %v3091
    %v3093 = vpop.f32.mrf.mxu0
    %3094 = vdwg.mxu0
    %3095 = vmatpush.bf16.msra.mxu0 %v2376
    %3096 = vmatpush.bf16.msra.mxu0 %v2374
    %3097 = vmatpush.bf16.msra.mxu0 %v2372
    %3098 = vmatpush.bf16.msra.mxu0 %v2370
    %3099 = vmatpush.bf16.msra.mxu0 %v2368
    %3100 = vmatpush.bf16.msra.mxu0 %v2366
    %3101 = vmatpush.bf16.msra.mxu0 %v2364
    %3102 = vmatpush.bf16.msra.mxu0 %v2362
    %3103 = vmatmul.bf16.gmra.mxu0 %v846
    %v3104 = vpop.f32.mrf.mxu0
    %v3105 = vadd.f32 %v3092, %v3104
    %v3106 = vpop.f32.mrf.mxu0
    %3107 = vdwg.mxu0
    %3108 = vmatpush.bf16.msra.mxu0 %v2392
    %3109 = vmatpush.bf16.msra.mxu0 %v2390
    %3110 = vmatpush.bf16.msra.mxu0 %v2388
    %3111 = vmatpush.bf16.msra.mxu0 %v2386
    %3112 = vmatpush.bf16.msra.mxu0 %v2384
    %3113 = vmatpush.bf16.msra.mxu0 %v2382
    %3114 = vmatpush.bf16.msra.mxu0 %v2380
    %3115 = vmatpush.bf16.msra.mxu0 %v2378
    %3116 = vmatmul.bf16.gmra.mxu0 %v847
    %v3117 = vpop.f32.mrf.mxu0
    %v3118 = vadd.f32 %v3105, %v3117
    %v3119 = vpop.f32.mrf.mxu0
    %3120 = vdwg.mxu0
    %3121 = vmatpush.bf16.msra.mxu0 %v2408
    %3122 = vmatpush.bf16.msra.mxu0 %v2406
    %3123 = vmatpush.bf16.msra.mxu0 %v2404
    %3124 = vmatpush.bf16.msra.mxu0 %v2402
    %3125 = vmatpush.bf16.msra.mxu0 %v2400
    %3126 = vmatpush.bf16.msra.mxu0 %v2398
    %3127 = vmatpush.bf16.msra.mxu0 %v2396
    %3128 = vmatpush.bf16.msra.mxu0 %v2394
    %3129 = vmatmul.bf16.gmra.mxu0 %v848
    %v3130 = vpop.f32.mrf.mxu0
    %v3131 = vadd.f32 %v3118, %v3130
    %v3132 = vpop.f32.mrf.mxu0
    %3133 = vdwg.mxu0
    %3134 = vmatpush.bf16.msra.mxu0 %v2424
    %3135 = vmatpush.bf16.msra.mxu0 %v2422
    %3136 = vmatpush.bf16.msra.mxu0 %v2420
    %3137 = vmatpush.bf16.msra.mxu0 %v2418
    %3138 = vmatpush.bf16.msra.mxu0 %v2416
    %3139 = vmatpush.bf16.msra.mxu0 %v2414
    %3140 = vmatpush.bf16.msra.mxu0 %v2412
    %3141 = vmatpush.bf16.msra.mxu0 %v2410
    %3142 = vmatmul.bf16.gmra.mxu0 %v849
    %v3143 = vpop.f32.mrf.mxu0
    %v3144 = vadd.f32 %v3131, %v3143
    %v3145 = vpop.f32.mrf.mxu0
    %3146 = vdwg.mxu0
    %3147 = vmatpush.bf16.msra.mxu0 %v2440
    %3148 = vmatpush.bf16.msra.mxu0 %v2438
    %3149 = vmatpush.bf16.msra.mxu0 %v2436
    %3150 = vmatpush.bf16.msra.mxu0 %v2434
    %3151 = vmatpush.bf16.msra.mxu0 %v2432
    %3152 = vmatpush.bf16.msra.mxu0 %v2430
    %3153 = vmatpush.bf16.msra.mxu0 %v2428
    %3154 = vmatpush.bf16.msra.mxu0 %v2426
    %3155 = vmatmul.bf16.gmra.mxu0 %v850
    %v3156 = vpop.f32.mrf.mxu0
    %v3157 = vadd.f32 %v3144, %v3156
    %v3158 = vpop.f32.mrf.mxu0
    %3159 = vdwg.mxu0
    %3160 = vmatpush.bf16.msra.mxu0 %v2456
    %3161 = vmatpush.bf16.msra.mxu0 %v2454
    %3162 = vmatpush.bf16.msra.mxu0 %v2452
    %3163 = vmatpush.bf16.msra.mxu0 %v2450
    %3164 = vmatpush.bf16.msra.mxu0 %v2448
    %3165 = vmatpush.bf16.msra.mxu0 %v2446
    %3166 = vmatpush.bf16.msra.mxu0 %v2444
    %3167 = vmatpush.bf16.msra.mxu0 %v2442
    %3168 = vmatmul.bf16.gmra.mxu0 %v851
    %v3169 = vpop.f32.mrf.mxu0
    %v3170 = vadd.f32 %v3157, %v3169
    %v3171 = vpop.f32.mrf.mxu0
    %3172 = vdwg.mxu0
    %3173 = vmatpush.bf16.msra.mxu0 %v2472
    %3174 = vmatpush.bf16.msra.mxu0 %v2470
    %3175 = vmatpush.bf16.msra.mxu0 %v2468
    %3176 = vmatpush.bf16.msra.mxu0 %v2466
    %3177 = vmatpush.bf16.msra.mxu0 %v2464
    %3178 = vmatpush.bf16.msra.mxu0 %v2462
    %3179 = vmatpush.bf16.msra.mxu0 %v2460
    %3180 = vmatpush.bf16.msra.mxu0 %v2458
    %3181 = vmatmul.bf16.gmra.mxu0 %v852
    %v3182 = vpop.f32.mrf.mxu0
    %v3183 = vadd.f32 %v3170, %v3182
    %v3184 = vpop.f32.mrf.mxu0
    %3185 = vdwg.mxu0
    %3186 = vmatpush.bf16.msra.mxu0 %v2488
    %3187 = vmatpush.bf16.msra.mxu0 %v2486
    %3188 = vmatpush.bf16.msra.mxu0 %v2484
    %3189 = vmatpush.bf16.msra.mxu0 %v2482
    %3190 = vmatpush.bf16.msra.mxu0 %v2480
    %3191 = vmatpush.bf16.msra.mxu0 %v2478
    %3192 = vmatpush.bf16.msra.mxu0 %v2476
    %3193 = vmatpush.bf16.msra.mxu0 %v2474
    %3194 = vmatmul.bf16.gmra.mxu0 %v853
    %v3195 = vpop.f32.mrf.mxu0
    %v3196 = vadd.f32 %v3183, %v3195
    %v3197 = vpop.f32.mrf.mxu0
    %3198 = vdwg.mxu0
    %3199 = vmatpush.bf16.msra.mxu0 %v2504
    %3200 = vmatpush.bf16.msra.mxu0 %v2502
    %3201 = vmatpush.bf16.msra.mxu0 %v2500
    %3202 = vmatpush.bf16.msra.mxu0 %v2498
    %3203 = vmatpush.bf16.msra.mxu0 %v2496
    %3204 = vmatpush.bf16.msra.mxu0 %v2494
    %3205 = vmatpush.bf16.msra.mxu0 %v2492
    %3206 = vmatpush.bf16.msra.mxu0 %v2490
    %3207 = vmatmul.bf16.gmra.mxu0 %v854
    %v3208 = vpop.f32.mrf.mxu0
    %v3209 = vadd.f32 %v3196, %v3208
    %v3210 = vpop.f32.mrf.mxu0
    %3211 = vdwg.mxu0
    %3212 = vmatpush.bf16.msra.mxu0 %v2520
    %3213 = vmatpush.bf16.msra.mxu0 %v2518
    %3214 = vmatpush.bf16.msra.mxu0 %v2516
    %3215 = vmatpush.bf16.msra.mxu0 %v2514
    %3216 = vmatpush.bf16.msra.mxu0 %v2512
    %3217 = vmatpush.bf16.msra.mxu0 %v2510
    %3218 = vmatpush.bf16.msra.mxu0 %v2508
    %3219 = vmatpush.bf16.msra.mxu0 %v2506
    %3220 = vmatmul.bf16.gmra.mxu0 %v855
    %v3221 = vpop.f32.mrf.mxu0
    %v3222 = vadd.f32 %v3209, %v3221
    %v3223 = vpop.f32.mrf.mxu0
    %3224 = vdwg.mxu0
    %3225 = vmatpush.bf16.msra.mxu0 %v2536
    %3226 = vmatpush.bf16.msra.mxu0 %v2534
    %3227 = vmatpush.bf16.msra.mxu0 %v2532
    %3228 = vmatpush.bf16.msra.mxu0 %v2530
    %3229 = vmatpush.bf16.msra.mxu0 %v2528
    %3230 = vmatpush.bf16.msra.mxu0 %v2526
    %3231 = vmatpush.bf16.msra.mxu0 %v2524
    %3232 = vmatpush.bf16.msra.mxu0 %v2522
    %3233 = vmatmul.bf16.gmra.mxu0 %v856
    %v3234 = vpop.f32.mrf.mxu0
    %v3235 = vadd.f32 %v3222, %v3234
    %v3236 = vpop.f32.mrf.mxu0
    %3237 = vdwg.mxu0
    %3238 = vmatpush.bf16.msra.mxu0 %v2552
    %3239 = vmatpush.bf16.msra.mxu0 %v2550
    %3240 = vmatpush.bf16.msra.mxu0 %v2548
    %3241 = vmatpush.bf16.msra.mxu0 %v2546
    %3242 = vmatpush.bf16.msra.mxu0 %v2544
    %3243 = vmatpush.bf16.msra.mxu0 %v2542
    %3244 = vmatpush.bf16.msra.mxu0 %v2540
    %3245 = vmatpush.bf16.msra.mxu0 %v2538
    %3246 = vmatmul.bf16.gmra.mxu0 %v857
    %v3247 = vpop.f32.mrf.mxu0
    %v3248 = vadd.f32 %v3235, %v3247
    %v3249 = vpop.f32.mrf.mxu0
    %3250 = vdwg.mxu0
    %3251 = vmatpush.bf16.msra.mxu0 %v2568
    %3252 = vmatpush.bf16.msra.mxu0 %v2566
    %3253 = vmatpush.bf16.msra.mxu0 %v2564
    %3254 = vmatpush.bf16.msra.mxu0 %v2562
    %3255 = vmatpush.bf16.msra.mxu0 %v2560
    %3256 = vmatpush.bf16.msra.mxu0 %v2558
    %3257 = vmatpush.bf16.msra.mxu0 %v2556
    %3258 = vmatpush.bf16.msra.mxu0 %v2554
    %3259 = vmatmul.bf16.gmra.mxu0 %v858
    %v3260 = vpop.f32.mrf.mxu0
    %v3261 = vadd.f32 %v3248, %v3260
    %v3262 = vpop.f32.mrf.mxu0
    %3263 = vdwg.mxu0
    %3264 = vmatpush.bf16.msra.mxu0 %v2584
    %3265 = vmatpush.bf16.msra.mxu0 %v2582
    %3266 = vmatpush.bf16.msra.mxu0 %v2580
    %3267 = vmatpush.bf16.msra.mxu0 %v2578
    %3268 = vmatpush.bf16.msra.mxu0 %v2576
    %3269 = vmatpush.bf16.msra.mxu0 %v2574
    %3270 = vmatpush.bf16.msra.mxu0 %v2572
    %3271 = vmatpush.bf16.msra.mxu0 %v2570
    %3272 = vmatmul.bf16.gmra.mxu0 %v859
    %v3273 = vpop.f32.mrf.mxu0
    %v3274 = vadd.f32 %v3261, %v3273
    %v3275 = vpop.f32.mrf.mxu0
    %3276 = vdwg.mxu0
    %3277 = vmatpush.bf16.msra.mxu0 %v2600
    %3278 = vmatpush.bf16.msra.mxu0 %v2598
    %3279 = vmatpush.bf16.msra.mxu0 %v2596
    %3280 = vmatpush.bf16.msra.mxu0 %v2594
    %3281 = vmatpush.bf16.msra.mxu0 %v2592
    %3282 = vmatpush.bf16.msra.mxu0 %v2590
    %3283 = vmatpush.bf16.msra.mxu0 %v2588
    %3284 = vmatpush.bf16.msra.mxu0 %v2586
    %3285 = vmatmul.bf16.gmra.mxu0 %v860
    %v3286 = vpop.f32.mrf.mxu0
    %v3287 = vadd.f32 %v3274, %v3286
    %v3288 = vpop.f32.mrf.mxu0
    %3289 = vdwg.mxu0
    %3290 = vmatpush.bf16.msra.mxu0 %v2616
    %3291 = vmatpush.bf16.msra.mxu0 %v2614
    %3292 = vmatpush.bf16.msra.mxu0 %v2612
    %3293 = vmatpush.bf16.msra.mxu0 %v2610
    %3294 = vmatpush.bf16.msra.mxu0 %v2608
    %3295 = vmatpush.bf16.msra.mxu0 %v2606
    %3296 = vmatpush.bf16.msra.mxu0 %v2604
    %3297 = vmatpush.bf16.msra.mxu0 %v2602
    %3298 = vmatmul.bf16.gmra.mxu0 %v861
    %v3299 = vpop.f32.mrf.mxu0
    %v3300 = vadd.f32 %v3287, %v3299
    %v3301 = vpop.f32.mrf.mxu0
    %3302 = vdwg.mxu0
    %3303 = vmatpush.bf16.msra.mxu0 %v2632
    %3304 = vmatpush.bf16.msra.mxu0 %v2630
    %3305 = vmatpush.bf16.msra.mxu0 %v2628
    %3306 = vmatpush.bf16.msra.mxu0 %v2626
    %3307 = vmatpush.bf16.msra.mxu0 %v2624
    %3308 = vmatpush.bf16.msra.mxu0 %v2622
    %3309 = vmatpush.bf16.msra.mxu0 %v2620
    %3310 = vmatpush.bf16.msra.mxu0 %v2618
    %3311 = vmatmul.bf16.gmra.mxu0 %v862
    %v3312 = vpop.f32.mrf.mxu0
    %v3313 = vadd.f32 %v3300, %v3312
    %v3314 = vpop.f32.mrf.mxu0
    %3315 = vdwg.mxu0
    %3316 = vmatpush.bf16.msra.mxu0 %v2648
    %3317 = vmatpush.bf16.msra.mxu0 %v2646
    %3318 = vmatpush.bf16.msra.mxu0 %v2644
    %3319 = vmatpush.bf16.msra.mxu0 %v2642
    %3320 = vmatpush.bf16.msra.mxu0 %v2640
    %3321 = vmatpush.bf16.msra.mxu0 %v2638
    %3322 = vmatpush.bf16.msra.mxu0 %v2636
    %3323 = vmatpush.bf16.msra.mxu0 %v2634
    %3324 = vmatmul.bf16.gmra.mxu0 %v863
    %v3325 = vpop.f32.mrf.mxu0
    %v3326 = vadd.f32 %v3313, %v3325
    %v3327 = vpop.f32.mrf.mxu0
    %3328 = vdwg.mxu0
    %3329 = vmatpush.bf16.msra.mxu0 %v2664
    %3330 = vmatpush.bf16.msra.mxu0 %v2662
    %3331 = vmatpush.bf16.msra.mxu0 %v2660
    %3332 = vmatpush.bf16.msra.mxu0 %v2658
    %3333 = vmatpush.bf16.msra.mxu0 %v2656
    %3334 = vmatpush.bf16.msra.mxu0 %v2654
    %3335 = vmatpush.bf16.msra.mxu0 %v2652
    %3336 = vmatpush.bf16.msra.mxu0 %v2650
    %3337 = vmatmul.bf16.gmra.mxu0 %v864
    %v3338 = vpop.f32.mrf.mxu0
    %v3339 = vadd.f32 %v3326, %v3338
    %v3340 = vpop.f32.mrf.mxu0
    %3341 = vdwg.mxu0
    %3342 = vmatpush.bf16.msra.mxu0 %v2680
    %3343 = vmatpush.bf16.msra.mxu0 %v2678
    %3344 = vmatpush.bf16.msra.mxu0 %v2676
    %3345 = vmatpush.bf16.msra.mxu0 %v2674
    %3346 = vmatpush.bf16.msra.mxu0 %v2672
    %3347 = vmatpush.bf16.msra.mxu0 %v2670
    %3348 = vmatpush.bf16.msra.mxu0 %v2668
    %3349 = vmatpush.bf16.msra.mxu0 %v2666
    %3350 = vmatmul.bf16.gmra.mxu0 %v865
    %v3351 = vpop.f32.mrf.mxu0
    %v3352 = vadd.f32 %v3339, %v3351
    %v3353 = vpop.f32.mrf.mxu0
    %3354 = vdwg.mxu0
    %3355 = vmatpush.bf16.msra.mxu0 %v2696
    %3356 = vmatpush.bf16.msra.mxu0 %v2694
    %3357 = vmatpush.bf16.msra.mxu0 %v2692
    %3358 = vmatpush.bf16.msra.mxu0 %v2690
    %3359 = vmatpush.bf16.msra.mxu0 %v2688
    %3360 = vmatpush.bf16.msra.mxu0 %v2686
    %3361 = vmatpush.bf16.msra.mxu0 %v2684
    %3362 = vmatpush.bf16.msra.mxu0 %v2682
    %3363 = vmatmul.bf16.gmra.mxu0 %v866
    %v3364 = vpop.f32.mrf.mxu0
    %v3365 = vadd.f32 %v3352, %v3364
    %v3366 = vpop.f32.mrf.mxu0
    %3367 = vdwg.mxu0
    %3368 = vmatpush.bf16.msra.mxu0 %v2712
    %3369 = vmatpush.bf16.msra.mxu0 %v2710
    %3370 = vmatpush.bf16.msra.mxu0 %v2708
    %3371 = vmatpush.bf16.msra.mxu0 %v2706
    %3372 = vmatpush.bf16.msra.mxu0 %v2704
    %3373 = vmatpush.bf16.msra.mxu0 %v2702
    %3374 = vmatpush.bf16.msra.mxu0 %v2700
    %3375 = vmatpush.bf16.msra.mxu0 %v2698
    %3376 = vmatmul.bf16.gmra.mxu0 %v867
    %v3377 = vpop.f32.mrf.mxu0
    %v3378 = vadd.f32 %v3365, %v3377
    %v3379 = vpop.f32.mrf.mxu0
    %3380 = vdwg.mxu0
    %3381 = vmatpush.bf16.msra.mxu0 %v2361
    %3382 = vmatpush.bf16.msra.mxu0 %v2359
    %3383 = vmatpush.bf16.msra.mxu0 %v2357
    %3384 = vmatpush.bf16.msra.mxu0 %v2355
    %3385 = vmatpush.bf16.msra.mxu0 %v2353
    %3386 = vmatpush.bf16.msra.mxu0 %v2351
    %3387 = vmatpush.bf16.msra.mxu0 %v2349
    %3388 = vmatpush.bf16.msra.mxu0 %v2347
    %3389 = vmatmul.bf16.gmra.mxu0 %v845
    %v3390 = vpop.f32.mrf.mxu0
    %v3391 = vadd.f32 %v1239, %v3390
    %v3392 = vpop.f32.mrf.mxu0
    %3393 = vdwg.mxu0
    %3394 = vmatpush.bf16.msra.mxu0 %v2377
    %3395 = vmatpush.bf16.msra.mxu0 %v2375
    %3396 = vmatpush.bf16.msra.mxu0 %v2373
    %3397 = vmatpush.bf16.msra.mxu0 %v2371
    %3398 = vmatpush.bf16.msra.mxu0 %v2369
    %3399 = vmatpush.bf16.msra.mxu0 %v2367
    %3400 = vmatpush.bf16.msra.mxu0 %v2365
    %3401 = vmatpush.bf16.msra.mxu0 %v2363
    %3402 = vmatmul.bf16.gmra.mxu0 %v846
    %v3403 = vpop.f32.mrf.mxu0
    %v3404 = vadd.f32 %v3391, %v3403
    %v3405 = vpop.f32.mrf.mxu0
    %3406 = vdwg.mxu0
    %3407 = vmatpush.bf16.msra.mxu0 %v2393
    %3408 = vmatpush.bf16.msra.mxu0 %v2391
    %3409 = vmatpush.bf16.msra.mxu0 %v2389
    %3410 = vmatpush.bf16.msra.mxu0 %v2387
    %3411 = vmatpush.bf16.msra.mxu0 %v2385
    %3412 = vmatpush.bf16.msra.mxu0 %v2383
    %3413 = vmatpush.bf16.msra.mxu0 %v2381
    %3414 = vmatpush.bf16.msra.mxu0 %v2379
    %3415 = vmatmul.bf16.gmra.mxu0 %v847
    %v3416 = vpop.f32.mrf.mxu0
    %v3417 = vadd.f32 %v3404, %v3416
    %v3418 = vpop.f32.mrf.mxu0
    %3419 = vdwg.mxu0
    %3420 = vmatpush.bf16.msra.mxu0 %v2409
    %3421 = vmatpush.bf16.msra.mxu0 %v2407
    %3422 = vmatpush.bf16.msra.mxu0 %v2405
    %3423 = vmatpush.bf16.msra.mxu0 %v2403
    %3424 = vmatpush.bf16.msra.mxu0 %v2401
    %3425 = vmatpush.bf16.msra.mxu0 %v2399
    %3426 = vmatpush.bf16.msra.mxu0 %v2397
    %3427 = vmatpush.bf16.msra.mxu0 %v2395
    %3428 = vmatmul.bf16.gmra.mxu0 %v848
    %v3429 = vpop.f32.mrf.mxu0
    %v3430 = vadd.f32 %v3417, %v3429
    %v3431 = vpop.f32.mrf.mxu0
    %3432 = vdwg.mxu0
    %3433 = vmatpush.bf16.msra.mxu0 %v2425
    %3434 = vmatpush.bf16.msra.mxu0 %v2423
    %3435 = vmatpush.bf16.msra.mxu0 %v2421
    %3436 = vmatpush.bf16.msra.mxu0 %v2419
    %3437 = vmatpush.bf16.msra.mxu0 %v2417
    %3438 = vmatpush.bf16.msra.mxu0 %v2415
    %3439 = vmatpush.bf16.msra.mxu0 %v2413
    %3440 = vmatpush.bf16.msra.mxu0 %v2411
    %3441 = vmatmul.bf16.gmra.mxu0 %v849
    %v3442 = vpop.f32.mrf.mxu0
    %v3443 = vadd.f32 %v3430, %v3442
    %v3444 = vpop.f32.mrf.mxu0
    %3445 = vdwg.mxu0
    %3446 = vmatpush.bf16.msra.mxu0 %v2441
    %3447 = vmatpush.bf16.msra.mxu0 %v2439
    %3448 = vmatpush.bf16.msra.mxu0 %v2437
    %3449 = vmatpush.bf16.msra.mxu0 %v2435
    %3450 = vmatpush.bf16.msra.mxu0 %v2433
    %3451 = vmatpush.bf16.msra.mxu0 %v2431
    %3452 = vmatpush.bf16.msra.mxu0 %v2429
    %3453 = vmatpush.bf16.msra.mxu0 %v2427
    %3454 = vmatmul.bf16.gmra.mxu0 %v850
    %v3455 = vpop.f32.mrf.mxu0
    %v3456 = vadd.f32 %v3443, %v3455
    %v3457 = vpop.f32.mrf.mxu0
    %3458 = vdwg.mxu0
    %3459 = vmatpush.bf16.msra.mxu0 %v2457
    %3460 = vmatpush.bf16.msra.mxu0 %v2455
    %3461 = vmatpush.bf16.msra.mxu0 %v2453
    %3462 = vmatpush.bf16.msra.mxu0 %v2451
    %3463 = vmatpush.bf16.msra.mxu0 %v2449
    %3464 = vmatpush.bf16.msra.mxu0 %v2447
    %3465 = vmatpush.bf16.msra.mxu0 %v2445
    %3466 = vmatpush.bf16.msra.mxu0 %v2443
    %3467 = vmatmul.bf16.gmra.mxu0 %v851
    %v3468 = vpop.f32.mrf.mxu0
    %v3469 = vadd.f32 %v3456, %v3468
    %v3470 = vpop.f32.mrf.mxu0
    %3471 = vdwg.mxu0
    %3472 = vmatpush.bf16.msra.mxu0 %v2473
    %3473 = vmatpush.bf16.msra.mxu0 %v2471
    %3474 = vmatpush.bf16.msra.mxu0 %v2469
    %3475 = vmatpush.bf16.msra.mxu0 %v2467
    %3476 = vmatpush.bf16.msra.mxu0 %v2465
    %3477 = vmatpush.bf16.msra.mxu0 %v2463
    %3478 = vmatpush.bf16.msra.mxu0 %v2461
    %3479 = vmatpush.bf16.msra.mxu0 %v2459
    %3480 = vmatmul.bf16.gmra.mxu0 %v852
    %v3481 = vpop.f32.mrf.mxu0
    %v3482 = vadd.f32 %v3469, %v3481
    %v3483 = vpop.f32.mrf.mxu0
    %3484 = vdwg.mxu0
    %3485 = vmatpush.bf16.msra.mxu0 %v2489
    %3486 = vmatpush.bf16.msra.mxu0 %v2487
    %3487 = vmatpush.bf16.msra.mxu0 %v2485
    %3488 = vmatpush.bf16.msra.mxu0 %v2483
    %3489 = vmatpush.bf16.msra.mxu0 %v2481
    %3490 = vmatpush.bf16.msra.mxu0 %v2479
    %3491 = vmatpush.bf16.msra.mxu0 %v2477
    %3492 = vmatpush.bf16.msra.mxu0 %v2475
    %3493 = vmatmul.bf16.gmra.mxu0 %v853
    %v3494 = vpop.f32.mrf.mxu0
    %v3495 = vadd.f32 %v3482, %v3494
    %v3496 = vpop.f32.mrf.mxu0
    %3497 = vdwg.mxu0
    %3498 = vmatpush.bf16.msra.mxu0 %v2505
    %3499 = vmatpush.bf16.msra.mxu0 %v2503
    %3500 = vmatpush.bf16.msra.mxu0 %v2501
    %3501 = vmatpush.bf16.msra.mxu0 %v2499
    %3502 = vmatpush.bf16.msra.mxu0 %v2497
    %3503 = vmatpush.bf16.msra.mxu0 %v2495
    %3504 = vmatpush.bf16.msra.mxu0 %v2493
    %3505 = vmatpush.bf16.msra.mxu0 %v2491
    %3506 = vmatmul.bf16.gmra.mxu0 %v854
    %v3507 = vpop.f32.mrf.mxu0
    %v3508 = vadd.f32 %v3495, %v3507
    %v3509 = vpop.f32.mrf.mxu0
    %3510 = vdwg.mxu0
    %3511 = vmatpush.bf16.msra.mxu0 %v2521
    %3512 = vmatpush.bf16.msra.mxu0 %v2519
    %3513 = vmatpush.bf16.msra.mxu0 %v2517
    %3514 = vmatpush.bf16.msra.mxu0 %v2515
    %3515 = vmatpush.bf16.msra.mxu0 %v2513
    %3516 = vmatpush.bf16.msra.mxu0 %v2511
    %3517 = vmatpush.bf16.msra.mxu0 %v2509
    %3518 = vmatpush.bf16.msra.mxu0 %v2507
    %3519 = vmatmul.bf16.gmra.mxu0 %v855
    %v3520 = vpop.f32.mrf.mxu0
    %v3521 = vadd.f32 %v3508, %v3520
    %v3522 = vpop.f32.mrf.mxu0
    %3523 = vdwg.mxu0
    %3524 = vmatpush.bf16.msra.mxu0 %v2537
    %3525 = vmatpush.bf16.msra.mxu0 %v2535
    %3526 = vmatpush.bf16.msra.mxu0 %v2533
    %3527 = vmatpush.bf16.msra.mxu0 %v2531
    %3528 = vmatpush.bf16.msra.mxu0 %v2529
    %3529 = vmatpush.bf16.msra.mxu0 %v2527
    %3530 = vmatpush.bf16.msra.mxu0 %v2525
    %3531 = vmatpush.bf16.msra.mxu0 %v2523
    %3532 = vmatmul.bf16.gmra.mxu0 %v856
    %v3533 = vpop.f32.mrf.mxu0
    %v3534 = vadd.f32 %v3521, %v3533
    %v3535 = vpop.f32.mrf.mxu0
    %3536 = vdwg.mxu0
    %3537 = vmatpush.bf16.msra.mxu0 %v2553
    %3538 = vmatpush.bf16.msra.mxu0 %v2551
    %3539 = vmatpush.bf16.msra.mxu0 %v2549
    %3540 = vmatpush.bf16.msra.mxu0 %v2547
    %3541 = vmatpush.bf16.msra.mxu0 %v2545
    %3542 = vmatpush.bf16.msra.mxu0 %v2543
    %3543 = vmatpush.bf16.msra.mxu0 %v2541
    %3544 = vmatpush.bf16.msra.mxu0 %v2539
    %3545 = vmatmul.bf16.gmra.mxu0 %v857
    %v3546 = vpop.f32.mrf.mxu0
    %v3547 = vadd.f32 %v3534, %v3546
    %v3548 = vpop.f32.mrf.mxu0
    %3549 = vdwg.mxu0
    %3550 = vmatpush.bf16.msra.mxu0 %v2569
    %3551 = vmatpush.bf16.msra.mxu0 %v2567
    %3552 = vmatpush.bf16.msra.mxu0 %v2565
    %3553 = vmatpush.bf16.msra.mxu0 %v2563
    %3554 = vmatpush.bf16.msra.mxu0 %v2561
    %3555 = vmatpush.bf16.msra.mxu0 %v2559
    %3556 = vmatpush.bf16.msra.mxu0 %v2557
    %3557 = vmatpush.bf16.msra.mxu0 %v2555
    %3558 = vmatmul.bf16.gmra.mxu0 %v858
    %v3559 = vpop.f32.mrf.mxu0
    %v3560 = vadd.f32 %v3547, %v3559
    %v3561 = vpop.f32.mrf.mxu0
    %3562 = vdwg.mxu0
    %3563 = vmatpush.bf16.msra.mxu0 %v2585
    %3564 = vmatpush.bf16.msra.mxu0 %v2583
    %3565 = vmatpush.bf16.msra.mxu0 %v2581
    %3566 = vmatpush.bf16.msra.mxu0 %v2579
    %3567 = vmatpush.bf16.msra.mxu0 %v2577
    %3568 = vmatpush.bf16.msra.mxu0 %v2575
    %3569 = vmatpush.bf16.msra.mxu0 %v2573
    %3570 = vmatpush.bf16.msra.mxu0 %v2571
    %3571 = vmatmul.bf16.gmra.mxu0 %v859
    %v3572 = vpop.f32.mrf.mxu0
    %v3573 = vadd.f32 %v3560, %v3572
    %v3574 = vpop.f32.mrf.mxu0
    %3575 = vdwg.mxu0
    %3576 = vmatpush.bf16.msra.mxu0 %v2601
    %3577 = vmatpush.bf16.msra.mxu0 %v2599
    %3578 = vmatpush.bf16.msra.mxu0 %v2597
    %3579 = vmatpush.bf16.msra.mxu0 %v2595
    %3580 = vmatpush.bf16.msra.mxu0 %v2593
    %3581 = vmatpush.bf16.msra.mxu0 %v2591
    %3582 = vmatpush.bf16.msra.mxu0 %v2589
    %3583 = vmatpush.bf16.msra.mxu0 %v2587
    %3584 = vmatmul.bf16.gmra.mxu0 %v860
    %v3585 = vpop.f32.mrf.mxu0
    %v3586 = vadd.f32 %v3573, %v3585
    %v3587 = vpop.f32.mrf.mxu0
    %3588 = vdwg.mxu0
    %3589 = vmatpush.bf16.msra.mxu0 %v2617
    %3590 = vmatpush.bf16.msra.mxu0 %v2615
    %3591 = vmatpush.bf16.msra.mxu0 %v2613
    %3592 = vmatpush.bf16.msra.mxu0 %v2611
    %3593 = vmatpush.bf16.msra.mxu0 %v2609
    %3594 = vmatpush.bf16.msra.mxu0 %v2607
    %3595 = vmatpush.bf16.msra.mxu0 %v2605
    %3596 = vmatpush.bf16.msra.mxu0 %v2603
    %3597 = vmatmul.bf16.gmra.mxu0 %v861
    %v3598 = vpop.f32.mrf.mxu0
    %v3599 = vadd.f32 %v3586, %v3598
    %v3600 = vpop.f32.mrf.mxu0
    %3601 = vdwg.mxu0
    %3602 = vmatpush.bf16.msra.mxu0 %v2633
    %3603 = vmatpush.bf16.msra.mxu0 %v2631
    %3604 = vmatpush.bf16.msra.mxu0 %v2629
    %3605 = vmatpush.bf16.msra.mxu0 %v2627
    %3606 = vmatpush.bf16.msra.mxu0 %v2625
    %3607 = vmatpush.bf16.msra.mxu0 %v2623
    %3608 = vmatpush.bf16.msra.mxu0 %v2621
    %3609 = vmatpush.bf16.msra.mxu0 %v2619
    %3610 = vmatmul.bf16.gmra.mxu0 %v862
    %v3611 = vpop.f32.mrf.mxu0
    %v3612 = vadd.f32 %v3599, %v3611
    %v3613 = vpop.f32.mrf.mxu0
    %3614 = vdwg.mxu0
    %3615 = vmatpush.bf16.msra.mxu0 %v2649
    %3616 = vmatpush.bf16.msra.mxu0 %v2647
    %3617 = vmatpush.bf16.msra.mxu0 %v2645
    %3618 = vmatpush.bf16.msra.mxu0 %v2643
    %3619 = vmatpush.bf16.msra.mxu0 %v2641
    %3620 = vmatpush.bf16.msra.mxu0 %v2639
    %3621 = vmatpush.bf16.msra.mxu0 %v2637
    %3622 = vmatpush.bf16.msra.mxu0 %v2635
    %3623 = vmatmul.bf16.gmra.mxu0 %v863
    %v3624 = vpop.f32.mrf.mxu0
    %v3625 = vadd.f32 %v3612, %v3624
    %v3626 = vpop.f32.mrf.mxu0
    %3627 = vdwg.mxu0
    %3628 = vmatpush.bf16.msra.mxu0 %v2665
    %3629 = vmatpush.bf16.msra.mxu0 %v2663
    %3630 = vmatpush.bf16.msra.mxu0 %v2661
    %3631 = vmatpush.bf16.msra.mxu0 %v2659
    %3632 = vmatpush.bf16.msra.mxu0 %v2657
    %3633 = vmatpush.bf16.msra.mxu0 %v2655
    %3634 = vmatpush.bf16.msra.mxu0 %v2653
    %3635 = vmatpush.bf16.msra.mxu0 %v2651
    %3636 = vmatmul.bf16.gmra.mxu0 %v864
    %v3637 = vpop.f32.mrf.mxu0
    %v3638 = vadd.f32 %v3625, %v3637
    %v3639 = vpop.f32.mrf.mxu0
    %3640 = vdwg.mxu0
    %3641 = vmatpush.bf16.msra.mxu0 %v2681
    %3642 = vmatpush.bf16.msra.mxu0 %v2679
    %3643 = vmatpush.bf16.msra.mxu0 %v2677
    %3644 = vmatpush.bf16.msra.mxu0 %v2675
    %3645 = vmatpush.bf16.msra.mxu0 %v2673
    %3646 = vmatpush.bf16.msra.mxu0 %v2671
    %3647 = vmatpush.bf16.msra.mxu0 %v2669
    %3648 = vmatpush.bf16.msra.mxu0 %v2667
    %3649 = vmatmul.bf16.gmra.mxu0 %v865
    %v3650 = vpop.f32.mrf.mxu0
    %v3651 = vadd.f32 %v3638, %v3650
    %v3652 = vpop.f32.mrf.mxu0
    %3653 = vdwg.mxu0
    %3654 = vmatpush.bf16.msra.mxu0 %v2697
    %3655 = vmatpush.bf16.msra.mxu0 %v2695
    %3656 = vmatpush.bf16.msra.mxu0 %v2693
    %3657 = vmatpush.bf16.msra.mxu0 %v2691
    %3658 = vmatpush.bf16.msra.mxu0 %v2689
    %3659 = vmatpush.bf16.msra.mxu0 %v2687
    %3660 = vmatpush.bf16.msra.mxu0 %v2685
    %3661 = vmatpush.bf16.msra.mxu0 %v2683
    %3662 = vmatmul.bf16.gmra.mxu0 %v866
    %v3663 = vpop.f32.mrf.mxu0
    %v3664 = vadd.f32 %v3651, %v3663
    %v3665 = vpop.f32.mrf.mxu0
    %3666 = vdwg.mxu0
    %3667 = vmatpush.bf16.msra.mxu0 %v2713
    %3668 = vmatpush.bf16.msra.mxu0 %v2711
    %3669 = vmatpush.bf16.msra.mxu0 %v2709
    %3670 = vmatpush.bf16.msra.mxu0 %v2707
    %3671 = vmatpush.bf16.msra.mxu0 %v2705
    %3672 = vmatpush.bf16.msra.mxu0 %v2703
    %3673 = vmatpush.bf16.msra.mxu0 %v2701
    %3674 = vmatpush.bf16.msra.mxu0 %v2699
    %3675 = vmatmul.bf16.gmra.mxu0 %v867
    %v3676 = vpop.f32.mrf.mxu0
    %v3677 = vadd.f32 %v3664, %v3676
    %v3678 = vpop.f32.mrf.mxu0
    %3679 = vdwg.mxu0
    %v3680 = vmax.f32 %v3378, 0.0
    %v3681 = vmax.f32 %v3677, 0.0
    %v3682 = vld [vmem:[#allocation11] sm:$0xff]
    %v3683 = vld [vmem:[#allocation11 + $0x8] sm:$0xff]
    %v3684 = vld [vmem:[#allocation11 + $0x10] sm:$0xff]
    %v3685 = vld [vmem:[#allocation11 + $0x18] sm:$0xff]
    %v3686 = vld [vmem:[#allocation11 + $0x20] sm:$0xff]
    %v3687 = vld [vmem:[#allocation11 + $0x28] sm:$0xff]
    %v3688 = vld [vmem:[#allocation11 + $0x30] sm:$0xff]
    %v3689 = vld [vmem:[#allocation11 + $0x38] sm:$0xff]
    %v3690 = vld [vmem:[#allocation11 + $0x40] sm:$0xff]
    %v3691 = vld [vmem:[#allocation11 + $0x48] sm:$0xff]
    %v3692 = vld [vmem:[#allocation11 + $0x50] sm:$0xff]
    %v3693 = vld [vmem:[#allocation11 + $0x58] sm:$0xff]
    %v3694 = vld [vmem:[#allocation11 + $0x60] sm:$0xff]
    %v3695 = vld [vmem:[#allocation11 + $0x68] sm:$0xff]
    %v3696 = vld [vmem:[#allocation11 + $0x70] sm:$0xff]
    %v3697 = vld [vmem:[#allocation11 + $0x78] sm:$0xff]
    %v3698 = vld [vmem:[#allocation11 + $0x80] sm:$0xff]
    %v3699 = vld [vmem:[#allocation11 + $0x88] sm:$0xff]
    %v3700 = vld [vmem:[#allocation11 + $0x90] sm:$0xff]
    %v3701 = vld [vmem:[#allocation11 + $0x98] sm:$0xff]
    %v3702 = vld [vmem:[#allocation11 + $0xa0] sm:$0xff]
    %v3703 = vld [vmem:[#allocation11 + $0xa8] sm:$0xff]
    %v3704 = vld [vmem:[#allocation11 + $0xb0] sm:$0xff]
    %v3705 = vld [vmem:[#allocation11 + $0xb8] sm:$0xff]
    %v3706 = vld [vmem:[#allocation11 + $0xc0] sm:$0xff]
    %v3707 = vld [vmem:[#allocation11 + $0xc8] sm:$0xff]
    %v3708 = vld [vmem:[#allocation11 + $0xd0] sm:$0xff]
    %v3709 = vld [vmem:[#allocation11 + $0xd8] sm:$0xff]
    %v3710 = vld [vmem:[#allocation11 + $0xe0] sm:$0xff]
    %v3711 = vld [vmem:[#allocation11 + $0xe8] sm:$0xff]
    %v3712 = vld [vmem:[#allocation11 + $0xf0] sm:$0xff]
    %v3713 = vld [vmem:[#allocation11 + $0xf8] sm:$0xff]
    %v3714 = vld [vmem:[#allocation13] sm:$0x1]
    %v3716 = vperm.slane %v3714, 0
    %3718 = vmatpush.msra.mxu0 %v3697
    %3719 = vmatpush.msra.mxu0 %v3696
    %3720 = vmatpush.msra.mxu0 %v3695
    %3721 = vmatpush.msra.mxu0 %v3694
    %3722 = vmatpush.msra.mxu0 %v3693
    %3723 = vmatpush.msra.mxu0 %v3692
    %3724 = vmatpush.msra.mxu0 %v3691
    %3725 = vmatpush.msra.mxu0 %v3690
    %3726 = vmatpush.msra.mxu0 %v3689
    %3727 = vmatpush.msra.mxu0 %v3688
    %3728 = vmatpush.msra.mxu0 %v3687
    %3729 = vmatpush.msra.mxu0 %v3686
    %3730 = vmatpush.msra.mxu0 %v3685
    %3731 = vmatpush.msra.mxu0 %v3684
    %3732 = vmatpush.msra.mxu0 %v3683
    %3733 = vmatpush.msra.mxu0 %v3682
    %3734 = vmatmul.f32.gmra.mxu0 %v3680
    %v3735 = vpop.f32.mrf.mxu0
    %v3736 = vadd.f32 %v3716, %v3735
    %3737 = vdwg.mxu0
    %3738 = vmatpush.msra.mxu0 %v3713
    %3739 = vmatpush.msra.mxu0 %v3712
    %3740 = vmatpush.msra.mxu0 %v3711
    %3741 = vmatpush.msra.mxu0 %v3710
    %3742 = vmatpush.msra.mxu0 %v3709
    %3743 = vmatpush.msra.mxu0 %v3708
    %3744 = vmatpush.msra.mxu0 %v3707
    %3745 = vmatpush.msra.mxu0 %v3706
    %3746 = vmatpush.msra.mxu0 %v3705
    %3747 = vmatpush.msra.mxu0 %v3704
    %3748 = vmatpush.msra.mxu0 %v3703
    %3749 = vmatpush.msra.mxu0 %v3702
    %3750 = vmatpush.msra.mxu0 %v3701
    %3751 = vmatpush.msra.mxu0 %v3700
    %3752 = vmatpush.msra.mxu0 %v3699
    %3753 = vmatpush.msra.mxu0 %v3698
    %3754 = vmatmul.f32.gmra.mxu0 %v3681
    %v3755 = vpop.f32.mrf.mxu0
    %v3756 = vadd.f32 %v3736, %v3755
    %3757 = vdwg.mxu0
    %v3758 = vmax.f32 %v3756, 0.0
    %v3759 = vld [vmem:[#allocation14] sm:$0xff]
    %v3760 = vld [vmem:[#allocation14 + $0x8] sm:$0xff]
    %v3761 = vld [vmem:[#allocation14 + $0x10] sm:$0xff]
    %v3762 = vld [vmem:[#allocation14 + $0x18] sm:$0xff]
    %v3763 = vld [vmem:[#allocation14 + $0x20] sm:$0xff]
    %v3764 = vld [vmem:[#allocation14 + $0x28] sm:$0xff]
    %v3765 = vld [vmem:[#allocation14 + $0x30] sm:$0xff]
    %v3766 = vld [vmem:[#allocation14 + $0x38] sm:$0xff]
    %v3767 = vld [vmem:[#allocation14 + $0x40] sm:$0xff]
    %v3768 = vld [vmem:[#allocation14 + $0x48] sm:$0xff]
    %v3769 = vld [vmem:[#allocation14 + $0x50] sm:$0xff]
    %v3770 = vld [vmem:[#allocation14 + $0x58] sm:$0xff]
    %v3771 = vld [vmem:[#allocation14 + $0x60] sm:$0xff]
    %v3772 = vld [vmem:[#allocation14 + $0x68] sm:$0xff]
    %v3773 = vld [vmem:[#allocation14 + $0x70] sm:$0xff]
    %v3774 = vld [vmem:[#allocation14 + $0x78] sm:$0xff]
    %v3775 = vld [vmem:[#allocation16] sm:$0x1]
    %v3777 = vperm.slane %v3775, 0
    %3779 = vmatpush.msra.mxu0 %v3774
    %3780 = vmatpush.msra.mxu0 %v3773
    %3781 = vmatpush.msra.mxu0 %v3772
    %3782 = vmatpush.msra.mxu0 %v3771
    %3783 = vmatpush.msra.mxu0 %v3770
    %3784 = vmatpush.msra.mxu0 %v3769
    %3785 = vmatpush.msra.mxu0 %v3768
    %3786 = vmatpush.msra.mxu0 %v3767
    %3787 = vmatpush.msra.mxu0 %v3766
    %3788 = vmatpush.msra.mxu0 %v3765
    %3789 = vmatpush.msra.mxu0 %v3764
    %3790 = vmatpush.msra.mxu0 %v3763
    %3791 = vmatpush.msra.mxu0 %v3762
    %3792 = vmatpush.msra.mxu0 %v3761
    %3793 = vmatpush.msra.mxu0 %v3760
    %3794 = vmatpush.msra.mxu0 %v3759
    %3795 = vmatmul.f32.gmra.mxu0 %v3758
    %v3796 = vpop.f32.mrf.mxu0
    %v3797 = vadd.f32 %v3777, %v3796
    %3798 = vdwg.mxu0
    %v3799 = vmax.f32 %v3797, 0.0
    %v3800 = vld [vmem:[#allocation17] sm:$0x1]
    %v3802 = vperm.slane %v3800, 0
    %v3804 = vmul.f32 %v3799, %v3802
    %3805 = vadd.xlane.f32.xlu0 %v3804
    %v3806 = vpop.xlane.xlu0 %3805
    %v3807 = vld [vmem:[#allocation2] sm:$0x1]
    %v3809 = vperm.slane %v3807, 0
    %v3811 = vadd.f32 %v3806, %v3809
    %vm3812 = vcmask 7168
    %3813 = vst.msk [vmem:[%s11] sm:$0xff] %vm3812, %v3811
    // Predicated region
    $region86: #{tpu_custom_call.1} parent=1 // pred_check
      _
    $region87: #{tpu_custom_call.1} parent=1 // pred_check_branch
      %3815 = sbr.rel (0) target = $region89
    $region88: #{tpu_custom_call.1} parent=1 // pred_region
      _
    $region89: #{tpu_custom_call.1} parent=1 // pred_fallthru
      _
    // Predicated region
    $region90: #{tpu_custom_call.1} parent=1 // pred_check
      _
    $region91: #{tpu_custom_call.1} parent=1 // pred_check_branch
      %3817 = sbr.rel (0) target = $region93
    $region92: #{tpu_custom_call.1} parent=1 // pred_region
      _
    $region93: #{tpu_custom_call.1} parent=1 // pred_fallthru
      _
    %3818 = vsyncpa [#allocation4], 1
    %3819 = vsyncpa [#allocation6], 1
    %3820 = vsyncpa [#allocation9], 1
    %3821 = vsyncpa [#allocation12], 1
    %3822 = vsyncpa [#allocation15], 1
    %3823 = vsyncpa [#allocation18], 1

</llo_original>
